<compile_context>
chip_gen: v7x
topology: tpu7x:2x2x1
jax: 0.10.0
libtpu: 0.0.40
codegen_flags: <defaults>
</compile_context>

<pallas_src>
import numpy as np
import jax
import jax.numpy as jnp
from jax.experimental import pallas as pl
from jax.experimental.pallas import tpu as pltpu

GROUPS = 32
EPS = 1e-5  # PyTorch GroupNorm default


def resnet_block(x_nhwc, params):
    B, H, W, Cin = x_nhwc.shape
    Cout = params["conv1_w"].shape[-1]
    Hp, Wp = H + 2, W + 2
    NP = Hp * Wp                   # padded-flat rows per image (conv1 input layout)
    NV = H * Wp                    # rows of the padded-width conv accumulators
    SUB = 8                        # f32 sublane granularity (keeps all stores aligned)
    BASE = ((Wp + 1 + SUB - 1) // SUB) * SUB        # aligned start of conv2 input in pad2
    NPAD1 = ((NP + 2 + SUB - 1) // SUB) * SUB       # pad1 rows (covers the last tap)
    NPAD2 = ((BASE + NV + Wp + 1 + SUB - 1) // SUB) * SUB
    Z1 = (NP // SUB) * SUB         # aligned start of pad1's never-written tail
    Z2 = ((BASE + NV) // SUB) * SUB  # aligned start of pad2's never-written tail
    cpg_in, cpg_out = Cin // GROUPS, Cout // GROUPS

    # ---- wrapper-side layout glue (plain JAX) ----
    x_pf = jnp.pad(x_nhwc, ((0, 0), (1, 1), (1, 1), (0, 0))).reshape(B, NP, Cin)

    # interior / valid-column masks (tiny; passed in so the kernel needs no iota // div)
    q = np.arange(NP)
    py, px = q // Wp, q % Wp
    mask_in = ((py >= 1) & (py <= H) & (px >= 1) & (px <= W)).astype(np.float32)
    mask_in = jnp.asarray(mask_in.reshape(NP, 1))
    mask_valid = jnp.asarray(((np.arange(NV) % Wp) < W).astype(np.float32).reshape(NV, 1))

    # channel -> group one-hot selectors for GroupNorm stats (replaces the old CxC masks)
    def one_hot(c):
        g = np.arange(c) // (c // GROUPS)
        m = (g[:, None] == np.arange(GROUPS)[None, :]).astype(np.float32)
        return jnp.asarray(m), jnp.asarray(m.T)

    gsel1, gscat1 = one_hot(Cin)
    gsel2, gscat2 = one_hot(Cout)

    # bf16 MXU operands (accumulation stays f32 inside the kernel)
    w1 = params["conv1_w"].astype(jnp.bfloat16)
    w2 = params["conv2_w"].astype(jnp.bfloat16)
    ws = params["sc_w"].astype(jnp.bfloat16)

    def kernel(x_ref, g1_ref, be1_ref, gsel1_ref, gscat1_ref, w1_ref, b1_ref,
               g2_ref, be2_ref, gsel2_ref, gscat2_ref, w2_ref, b2_ref,
               ws_ref, bs_ref, mi_ref, mv_ref, out_ref, pad1, pad2):
        # Re-zero only the small read-but-never-written halo row ranges (aligned
        # supersets; any overlap with the interiors is overwritten right below).
        pad1[pl.ds(Z1, NPAD1 - Z1), :] = jnp.zeros((NPAD1 - Z1, Cin), pad1.dtype)
        pad2[pl.ds(0, BASE), :] = jnp.zeros((BASE, Cout), pad2.dtype)
        pad2[pl.ds(Z2, NPAD2 - Z2), :] = jnp.zeros((NPAD2 - Z2, Cout), pad2.dtype)

        def group_norm_silu(y, n_valid, gsel, gscat, gamma, beta, mask=None):
            # y: (rows, C) f32; stats kept in f32, garbage rows excluded via `mask`.
            ym = y if mask is None else jnp.where(mask > 0, y, 0.0)
            s = jnp.sum(ym, axis=0, keepdims=True)                         # (1, C)
            ss = jnp.sum(ym * ym, axis=0, keepdims=True)                   # (1, C)
            gs = jnp.dot(s, gsel, preferred_element_type=jnp.float32)      # (1, G)
            gss = jnp.dot(ss, gsel, preferred_element_type=jnp.float32)    # (1, G)
            mean_g = gs / n_valid
            var_g = gss / n_valid - mean_g * mean_g
            inv_g = jax.lax.rsqrt(var_g + EPS)
            mean = jnp.dot(mean_g, gscat, preferred_element_type=jnp.float32)  # (1, C)
            inv = jnp.dot(inv_g, gscat, preferred_element_type=jnp.float32)    # (1, C)
            yn = (y - mean) * inv * gamma + beta
            return yn * jax.nn.sigmoid(yn)                                 # SiLU

        def conv3x3(pad_ref, w_ref, base, acc):
            # Tap (dy, dx) = one contiguous NV-row slice of the flat padded buffer,
            # cast to bf16 right before the MXU matmul (f32 accumulation).
            for dy in range(3):
                for dx in range(3):
                    off = base + (dy - 1) * Wp + (dx - 1)
                    patch = pad_ref[pl.ds(off, NV), :].astype(jnp.bfloat16)
                    acc = acc + jnp.dot(patch, w_ref[dy, dx],
                                        preferred_element_type=jnp.float32)
            return acc

        x = x_ref[0].astype(jnp.float32)                     # (NP, Cin), zero halo rows

        # --- norm1 + SiLU, stored as the conv1 input with ONE contiguous write ---
        h = group_norm_silu(x, float(cpg_in * H * W),
                            gsel1_ref[...], gscat1_ref[...], g1_ref[...], be1_ref[...])
        pad1[pl.ds(0, NP), :] = jnp.where(mi_ref[...] > 0, h, 0.0)

        # --- shortcut 1x1 conv, computed directly in accumulator layout; it (plus both
        #     biases) seeds the conv2 accumulator so h3 and sc never coexist ---
        x_sc = x_ref[0, pl.ds(Wp + 1, NV), :].astype(jnp.bfloat16)
        acc = jnp.dot(x_sc, ws_ref[...], preferred_element_type=jnp.float32)
        acc = acc + bs_ref[...] + b2_ref[...]

        # --- conv1 ---
        h1 = conv3x3(pad1, w1_ref, Wp + 1, jnp.broadcast_to(b1_ref[...], (NV, Cout)))

        # --- norm2 + SiLU (stats over valid columns only), stored as the conv2 input ---
        h2 = group_norm_silu(h1, float(cpg_out * H * W),
                             gsel2_ref[...], gscat2_ref[...], g2_ref[...], be2_ref[...],
                             mask=mv_ref[...])
        pad2[pl.ds(BASE, NV), :] = jnp.where(mv_ref[...] > 0, h2, 0.0)

        # --- conv2 accumulated on top of the shortcut ---
        acc = conv3x3(pad2, w2_ref, BASE, acc)
        out_ref[0] = acc.astype(out_ref.dtype)

    def full(shape):
        return pl.BlockSpec(shape, lambda b, n=len(shape): (0,) * n)

    in_specs = [
        pl.BlockSpec((1, NP, Cin), lambda b: (b, 0, 0)),
        full((1, Cin)), full((1, Cin)), full((Cin, GROUPS)), full((GROUPS, Cin)),
        full((3, 3, Cin, Cout)), full((1, Cout)),
        full((1, Cout)), full((1, Cout)), full((Cout, GROUPS)), full((GROUPS, Cout)),
        full((3, 3, Cout, Cout)), full((1, Cout)),
        full((Cin, Cout)), full((1, Cout)),
        full((NP, 1)), full((NV, 1)),
    ]
    out_spec = pl.BlockSpec((1, NV, Cout), lambda b: (b, 0, 0))

    matmul_terms = 9 * Cin * Cout + 9 * Cout * Cout + Cin * Cout
    cost = pl.CostEstimate(
        flops=2 * B * NV * matmul_terms,
        transcendentals=B * (NP * Cin + NV * Cout),
        bytes_accessed=B * NP * Cin * 4 + B * NV * Cout * 4 + 2 * matmul_terms,
    )

    out_flat = pl.pallas_call(
        kernel,
        out_shape=jax.ShapeDtypeStruct((B, NV, Cout), x_nhwc.dtype),
        grid_spec=pltpu.PrefetchScalarGridSpec(
            num_scalar_prefetch=0,
            grid=(B,),
            in_specs=in_specs,
            out_specs=out_spec,
            scratch_shapes=[
                pltpu.VMEM((NPAD1, Cin), jnp.float32),
                pltpu.VMEM((NPAD2, Cout), jnp.float32),
            ]),
        compiler_params=pltpu.CompilerParams(
            dimension_semantics=("parallel",),
            vmem_limit_bytes=48 * 1024 * 1024),
        cost_estimate=cost,
    )(x_pf,
      params["gn1_gamma"], params["gn1_beta"], gsel1, gscat1, w1, params["conv1_b"],
      params["gn2_gamma"], params["gn2_beta"], gsel2, gscat2, w2, params["conv2_b"],
      ws, params["sc_b"], mask_in, mask_valid)

    # Drop the 2 garbage columns per row (wrapper-side glue; keeps the kernel's output
    # store a single contiguous, lane-dense slab).
    return out_flat.reshape(B, H, Wp, Cout)[:, :, :W, :]


def init_params(key, cin, cout):
    ks = jax.random.split(key, 10)
    # PyTorch-shaped conv weights (Cout, Cin, kh, kw) -> kernel layout (kh, kw, Cin, Cout)
    w1_t = 0.1 * jax.random.normal(ks[0], (cout, cin, 3, 3), jnp.float32)
    w2_t = 0.1 * jax.random.normal(ks[1], (cout, cout, 3, 3), jnp.float32)
    ws_t = 0.1 * jax.random.normal(ks[2], (cout, cin, 1, 1), jnp.float32)
    return dict(
        gn1_gamma=(1.0 + 0.1 * jax.random.normal(ks[3], (cin,))).reshape(1, cin),
        gn1_beta=(0.1 * jax.random.normal(ks[4], (cin,))).reshape(1, cin),
        conv1_w=jnp.transpose(w1_t, (2, 3, 1, 0)),
        conv1_b=(0.1 * jax.random.normal(ks[5], (cout,))).reshape(1, cout),
        gn2_gamma=(1.0 + 0.1 * jax.random.normal(ks[6], (cout,))).reshape(1, cout),
        gn2_beta=(0.1 * jax.random.normal(ks[7], (cout,))).reshape(1, cout),
        conv2_w=jnp.transpose(w2_t, (2, 3, 1, 0)),
        conv2_b=(0.1 * jax.random.normal(ks[8], (cout,))).reshape(1, cout),
        sc_w=ws_t[:, :, 0, 0].T,                                   # (Cin, Cout)
        sc_b=(0.1 * jax.random.normal(ks[9], (cout,))).reshape(1, cout),
    )


def reference_forward(x_nhwc, p):
    """Pure-JAX (f32) NHWC reference matching the PyTorch forward semantics."""
    def gn(y, gamma, beta):
        B, H, W, C = y.shape
        cpg = C // GROUPS
        yg = y.reshape(B, H, W, GROUPS, cpg)
        mean = yg.mean(axis=(1, 2, 4), keepdims=True)
        var = ((yg - mean) ** 2).mean(axis=(1, 2, 4), keepdims=True)
        yn = ((yg - mean) / jnp.sqrt(var + EPS)).reshape(B, H, W, C)
        return yn * gamma.reshape(1, 1, 1, C) + beta.reshape(1, 1, 1, C)

    def silu(y):
        return y * jax.nn.sigmoid(y)

    def conv3x3(y, w, b):
        B, H, W, _ = y.shape
        yp = jnp.pad(y, ((0, 0), (1, 1), (1, 1), (0, 0)))
        out = jnp.zeros((B, H, W, w.shape[-1]), jnp.float32) + b.reshape(1, 1, 1, -1)
        for dy in range(3):
            for dx in range(3):
                out = out + jnp.einsum('bhwc,cd->bhwd',
                                       yp[:, dy:dy + H, dx:dx + W, :], w[dy, dx])
        return out

    h = conv3x3(silu(gn(x_nhwc, p["gn1_gamma"], p["gn1_beta"])), p["conv1_w"], p["conv1_b"])
    h = conv3x3(silu(gn(h, p["gn2_gamma"], p["gn2_beta"])), p["conv2_w"], p["conv2_b"])
    sc = jnp.einsum('bhwc,cd->bhwd', x_nhwc, p["sc_w"]) + p["sc_b"].reshape(1, 1, 1, -1)
    return h + sc


if __name__ == "__main__":
    key = jax.random.PRNGKey(0)
    kx, kp = jax.random.split(key)

    B, Cin, Cout, H, W = 2, 32, 64, 8, 8          # GroupNorm(32, C) needs C % 32 == 0
    x_nchw = jax.random.normal(kx, (B, Cin, H, W), jnp.float32)   # PyTorch NCHW input
    x_nhwc = jnp.transpose(x_nchw, (0, 2, 3, 1))                   # kernel layout (NHWC)
    params = init_params(kp, Cin, Cout)

    out = resnet_block(x_nhwc, params)
    out = jax.block_until_ready(out)

    ref = reference_forward(x_nhwc, params)
    err = float(jnp.max(jnp.abs(out - ref)))
    # bf16 MXU operands (per perf review) with f32 accumulation / f32 GroupNorm stats:
    # tolerance is relaxed vs. the pure-f32 version accordingly.
    assert err < 1e-1, f"max abs error too large: {err}"
    print("KERNEL_OK")
</pallas_src>

<mosaic_0001>
module attributes {stable_mosaic.version = 11 : i64} {
  func.func @kernel(%arg0: i32, %arg1: memref<1x100x32xf32, #tpu.memory_space<vmem>>, %arg2: memref<1x32xf32, #tpu.memory_space<vmem>>, %arg3: memref<1x32xf32, #tpu.memory_space<vmem>>, %arg4: memref<32x32xf32, #tpu.memory_space<vmem>>, %arg5: memref<32x32xf32, #tpu.memory_space<vmem>>, %arg6: memref<3x3x32x64xbf16, #tpu.memory_space<vmem>>, %arg7: memref<1x64xf32, #tpu.memory_space<vmem>>, %arg8: memref<1x64xf32, #tpu.memory_space<vmem>>, %arg9: memref<1x64xf32, #tpu.memory_space<vmem>>, %arg10: memref<64x32xf32, #tpu.memory_space<vmem>>, %arg11: memref<32x64xf32, #tpu.memory_space<vmem>>, %arg12: memref<3x3x64x64xbf16, #tpu.memory_space<vmem>>, %arg13: memref<1x64xf32, #tpu.memory_space<vmem>>, %arg14: memref<32x64xbf16, #tpu.memory_space<vmem>>, %arg15: memref<1x64xf32, #tpu.memory_space<vmem>>, %arg16: memref<100x1xf32, #tpu.memory_space<vmem>>, %arg17: memref<80x1xf32, #tpu.memory_space<vmem>>, %arg18: memref<1x80x64xf32, #tpu.memory_space<vmem>>, %arg19: memref<104x32xf32, #tpu.memory_space<vmem>>, %arg20: memref<112x64xf32, #tpu.memory_space<vmem>>) attributes {dimension_semantics = [#tpu.dimension_semantics<parallel>], iteration_bounds = array<i64: 2>, scalar_prefetch = 0 : i64, scratch_operands = 2 : i64, tpu.core_type = #tpu.core_type<tc>, window_params = [{transform_indices = @transform_0, window_bounds = array<i64: 1, 100, 32>}, {pipeline_mode = #tpu.pipeline_mode<synchronous>, transform_indices = @transform_1, window_bounds = array<i64: 1, 32>}, {pipeline_mode = #tpu.pipeline_mode<synchronous>, transform_indices = @transform_2, window_bounds = array<i64: 1, 32>}, {pipeline_mode = #tpu.pipeline_mode<synchronous>, transform_indices = @transform_3, window_bounds = array<i64: 32, 32>}, {pipeline_mode = #tpu.pipeline_mode<synchronous>, transform_indices = @transform_4, window_bounds = array<i64: 32, 32>}, {pipeline_mode = #tpu.pipeline_mode<synchronous>, transform_indices = @transform_5, window_bounds = array<i64: 3, 3, 32, 64>}, {pipeline_mode = #tpu.pipeline_mode<synchronous>, transform_indices = @transform_6, window_bounds = array<i64: 1, 64>}, {pipeline_mode = #tpu.pipeline_mode<synchronous>, transform_indices = @transform_7, window_bounds = array<i64: 1, 64>}, {pipeline_mode = #tpu.pipeline_mode<synchronous>, transform_indices = @transform_8, window_bounds = array<i64: 1, 64>}, {pipeline_mode = #tpu.pipeline_mode<synchronous>, transform_indices = @transform_9, window_bounds = array<i64: 64, 32>}, {pipeline_mode = #tpu.pipeline_mode<synchronous>, transform_indices = @transform_10, window_bounds = array<i64: 32, 64>}, {pipeline_mode = #tpu.pipeline_mode<synchronous>, transform_indices = @transform_11, window_bounds = array<i64: 3, 3, 64, 64>}, {pipeline_mode = #tpu.pipeline_mode<synchronous>, transform_indices = @transform_12, window_bounds = array<i64: 1, 64>}, {pipeline_mode = #tpu.pipeline_mode<synchronous>, transform_indices = @transform_13, window_bounds = array<i64: 32, 64>}, {pipeline_mode = #tpu.pipeline_mode<synchronous>, transform_indices = @transform_14, window_bounds = array<i64: 1, 64>}, {pipeline_mode = #tpu.pipeline_mode<synchronous>, transform_indices = @transform_15, window_bounds = array<i64: 100, 1>}, {pipeline_mode = #tpu.pipeline_mode<synchronous>, transform_indices = @transform_16, window_bounds = array<i64: 80, 1>}, {transform_indices = @transform_17, window_bounds = array<i64: 1, 80, 64>}]} {
    %cst = arith.constant 0.000000e+00 : f32
    %0 = vector.broadcast %cst : f32 to vector<8x32xf32>
    %c96 = arith.constant 96 : index
    %c0 = arith.constant 0 : index
    %1 = vector.load %arg19[%c96, %c0] : memref<104x32xf32, #tpu.memory_space<vmem>>, vector<8x32xf32>
    tpu.vector_store %arg19[%c96, %c0], %0 {strides = array<i32>} : memref<104x32xf32, #tpu.memory_space<vmem>>, vector<8x32xf32>,
    %cst_0 = arith.constant 0.000000e+00 : f32
    %2 = vector.broadcast %cst_0 : f32 to vector<16x64xf32>
    %c0_1 = arith.constant 0 : index
    %c0_2 = arith.constant 0 : index
    %3 = vector.load %arg20[%c0_1, %c0_2] : memref<112x64xf32, #tpu.memory_space<vmem>>, vector<16x64xf32>
    tpu.vector_store %arg20[%c0_1, %c0_2], %2 {strides = array<i32>} : memref<112x64xf32, #tpu.memory_space<vmem>>, vector<16x64xf32>,
    %cst_3 = arith.constant 0.000000e+00 : f32
    %4 = vector.broadcast %cst_3 : f32 to vector<16x64xf32>
    %c96_4 = arith.constant 96 : index
    %c0_5 = arith.constant 0 : index
    %5 = vector.load %arg20[%c96_4, %c0_5] : memref<112x64xf32, #tpu.memory_space<vmem>>, vector<16x64xf32>
    tpu.vector_store %arg20[%c96_4, %c0_5], %4 {strides = array<i32>} : memref<112x64xf32, #tpu.memory_space<vmem>>, vector<16x64xf32>,
    %c0_6 = arith.constant 0 : index
    %c0_7 = arith.constant 0 : index
    %c0_8 = arith.constant 0 : index
    %6 = vector.load %arg1[%c0_6, %c0_7, %c0_8] : memref<1x100x32xf32, #tpu.memory_space<vmem>>, vector<1x100x32xf32>
    %7 = vector.shape_cast %6 : vector<1x100x32xf32> to vector<100x32xf32>
    %c0_9 = arith.constant 0 : index
    %c0_10 = arith.constant 0 : index
    %8 = vector.load %arg4[%c0_9, %c0_10] : memref<32x32xf32, #tpu.memory_space<vmem>>, vector<32x32xf32>
    %c0_11 = arith.constant 0 : index
    %c0_12 = arith.constant 0 : index
    %9 = vector.load %arg5[%c0_11, %c0_12] : memref<32x32xf32, #tpu.memory_space<vmem>>, vector<32x32xf32>
    %c0_13 = arith.constant 0 : index
    %c0_14 = arith.constant 0 : index
    %10 = vector.load %arg2[%c0_13, %c0_14] : memref<1x32xf32, #tpu.memory_space<vmem>>, vector<1x32xf32>
    %c0_15 = arith.constant 0 : index
    %c0_16 = arith.constant 0 : index
    %11 = vector.load %arg3[%c0_15, %c0_16] : memref<1x32xf32, #tpu.memory_space<vmem>>, vector<1x32xf32>
    %cst_17 = arith.constant dense<0.000000e+00> : vector<32xf32>
    %12 = vector.multi_reduction <add>, %7, %cst_17 [0] : vector<100x32xf32> to vector<32xf32>
    %13 = vector.shape_cast %12 : vector<32xf32> to vector<1x32xf32>
    %14 = arith.mulf %7, %7 : vector<100x32xf32>
    %cst_18 = arith.constant dense<0.000000e+00> : vector<32xf32>
    %15 = vector.multi_reduction <add>, %14, %cst_18 [0] : vector<100x32xf32> to vector<32xf32>
    %16 = vector.shape_cast %15 : vector<32xf32> to vector<1x32xf32>
    %cst_19 = arith.constant dense<0.000000e+00> : vector<1x32xf32>
    %17 = tpu.matmul %13, %8, %cst_19 {dimension_numbers = #tpu.dot_dimension_numbers<[1], [0], [0], [1], [0, 0, 1, 1], [], []>} : vector<1x32xf32>, vector<32x32xf32>, vector<1x32xf32> -> vector<1x32xf32>
    %cst_20 = arith.constant dense<0.000000e+00> : vector<1x32xf32>
    %18 = tpu.matmul %16, %8, %cst_20 {dimension_numbers = #tpu.dot_dimension_numbers<[1], [0], [0], [1], [0, 0, 1, 1], [], []>} : vector<1x32xf32>, vector<32x32xf32>, vector<1x32xf32> -> vector<1x32xf32>
    %cst_21 = arith.constant 6.400000e+01 : f32
    %19 = vector.broadcast %cst_21 : f32 to vector<1x32xf32>
    %20 = arith.divf %17, %19 : vector<1x32xf32>
    %cst_22 = arith.constant 6.400000e+01 : f32
    %21 = vector.broadcast %cst_22 : f32 to vector<1x32xf32>
    %22 = arith.divf %18, %21 : vector<1x32xf32>
    %23 = arith.mulf %20, %20 : vector<1x32xf32>
    %24 = arith.subf %22, %23 : vector<1x32xf32>
    %cst_23 = arith.constant 9.99999974E-6 : f32
    %25 = vector.broadcast %cst_23 : f32 to vector<1x32xf32>
    %26 = arith.addf %24, %25 : vector<1x32xf32>
    %27 = math.rsqrt %26 : vector<1x32xf32>
    %cst_24 = arith.constant dense<0.000000e+00> : vector<1x32xf32>
    %28 = tpu.matmul %20, %9, %cst_24 {dimension_numbers = #tpu.dot_dimension_numbers<[1], [0], [0], [1], [0, 0, 1, 1], [], []>} : vector<1x32xf32>, vector<32x32xf32>, vector<1x32xf32> -> vector<1x32xf32>
    %cst_25 = arith.constant dense<0.000000e+00> : vector<1x32xf32>
    %29 = tpu.matmul %27, %9, %cst_25 {dimension_numbers = #tpu.dot_dimension_numbers<[1], [0], [0], [1], [0, 0, 1, 1], [], []>} : vector<1x32xf32>, vector<32x32xf32>, vector<1x32xf32> -> vector<1x32xf32>
    %30 = vector.broadcast %28 : vector<1x32xf32> to vector<100x32xf32>
    %31 = arith.subf %7, %30 : vector<100x32xf32>
    %32 = vector.broadcast %29 : vector<1x32xf32> to vector<100x32xf32>
    %33 = arith.mulf %31, %32 : vector<100x32xf32>
    %34 = vector.broadcast %10 : vector<1x32xf32> to vector<100x32xf32>
    %35 = arith.mulf %33, %34 : vector<100x32xf32>
    %36 = vector.broadcast %11 : vector<1x32xf32> to vector<100x32xf32>
    %37 = arith.addf %35, %36 : vector<100x32xf32>
    %38 = arith.negf %37 : vector<100x32xf32>
    %39 = math.exp %38 : vector<100x32xf32>
    %cst_26 = arith.constant 1.000000e+00 : f32
    %40 = vector.broadcast %cst_26 : f32 to vector<100x32xf32>
    %41 = arith.addf %40, %39 : vector<100x32xf32>
    %42 = arith.divf %40, %41 : vector<100x32xf32>
    %43 = arith.mulf %37, %42 : vector<100x32xf32>
    %c0_27 = arith.constant 0 : index
    %c0_28 = arith.constant 0 : index
    %44 = vector.load %arg16[%c0_27, %c0_28] : memref<100x1xf32, #tpu.memory_space<vmem>>, vector<100x1xf32>
    %cst_29 = arith.constant 0.000000e+00 : f32
    %45 = vector.broadcast %cst_29 : f32 to vector<100x1xf32>
    %46 = arith.cmpf ogt, %44, %45 : vector<100x1xf32>
    %cst_30 = arith.constant 0.000000e+00 : f32
    %47 = vector.shape_cast %46 : vector<100x1xi1> to vector<100x1xi1>
    %48 = vector.broadcast %47 : vector<100x1xi1> to vector<100x32xi1>
    %49 = vector.broadcast %cst_30 : f32 to vector<100x32xf32>
    %50 = arith.select %48, %43, %49 : vector<100x32xi1>, vector<100x32xf32>
    %c0_31 = arith.constant 0 : index
    %c0_32 = arith.constant 0 : index
    %51 = vector.load %arg19[%c0_31, %c0_32] : memref<104x32xf32, #tpu.memory_space<vmem>>, vector<100x32xf32>
    tpu.vector_store %arg19[%c0_31, %c0_32], %50 {strides = array<i32>} : memref<104x32xf32, #tpu.memory_space<vmem>>, vector<100x32xf32>,
    %c0_33 = arith.constant 0 : index
    %c11 = arith.constant 11 : index
    %c0_34 = arith.constant 0 : index
    %52 = vector.load %arg1[%c0_33, %c11, %c0_34] : memref<1x100x32xf32, #tpu.memory_space<vmem>>, vector<1x80x32xf32>
    %53 = vector.shape_cast %52 : vector<1x80x32xf32> to vector<80x32xf32>
    %54 = arith.truncf %53 : vector<80x32xf32> to vector<80x32xbf16>
    %c0_35 = arith.constant 0 : index
    %c0_36 = arith.constant 0 : index
    %55 = vector.load %arg14[%c0_35, %c0_36] : memref<32x64xbf16, #tpu.memory_space<vmem>>, vector<32x64xbf16>
    %cst_37 = arith.constant dense<0.000000e+00> : vector<80x64xf32>
    %56 = tpu.matmul %54, %55, %cst_37 {dimension_numbers = #tpu.dot_dimension_numbers<[1], [0], [0], [1], [0, 0, 1, 1], [], []>} : vector<80x32xbf16>, vector<32x64xbf16>, vector<80x64xf32> -> vector<80x64xf32>
    %c0_38 = arith.constant 0 : index
    %c0_39 = arith.constant 0 : index
    %57 = vector.load %arg15[%c0_38, %c0_39] : memref<1x64xf32, #tpu.memory_space<vmem>>, vector<1x64xf32>
    %58 = vector.broadcast %57 : vector<1x64xf32> to vector<80x64xf32>
    %59 = arith.addf %56, %58 : vector<80x64xf32>
    %c0_40 = arith.constant 0 : index
    %c0_41 = arith.constant 0 : index
    %60 = vector.load %arg13[%c0_40, %c0_41] : memref<1x64xf32, #tpu.memory_space<vmem>>, vector<1x64xf32>
    %61 = vector.broadcast %60 : vector<1x64xf32> to vector<80x64xf32>
    %62 = arith.addf %59, %61 : vector<80x64xf32>
    %c0_42 = arith.constant 0 : index
    %c0_43 = arith.constant 0 : index
    %63 = vector.load %arg7[%c0_42, %c0_43] : memref<1x64xf32, #tpu.memory_space<vmem>>, vector<1x64xf32>
    %64 = vector.shape_cast %63 : vector<1x64xf32> to vector<1x64xf32>
    %65 = vector.broadcast %64 : vector<1x64xf32> to vector<80x64xf32>
    %c0_44 = arith.constant 0 : index
    %c0_45 = arith.constant 0 : index
    %66 = vector.load %arg19[%c0_44, %c0_45] : memref<104x32xf32, #tpu.memory_space<vmem>>, vector<80x32xf32>
    %67 = arith.truncf %66 : vector<80x32xf32> to vector<80x32xbf16>
    %c0_46 = arith.constant 0 : index
    %c0_47 = arith.constant 0 : index
    %c0_48 = arith.constant 0 : index
    %c0_49 = arith.constant 0 : index
    %68 = vector.load %arg6[%c0_46, %c0_47, %c0_48, %c0_49] : memref<3x3x32x64xbf16, #tpu.memory_space<vmem>>, vector<1x1x32x64xbf16>
    %69 = vector.shape_cast %68 : vector<1x1x32x64xbf16> to vector<32x64xbf16>
    %cst_50 = arith.constant dense<0.000000e+00> : vector<80x64xf32>
    %70 = tpu.matmul %67, %69, %cst_50 {dimension_numbers = #tpu.dot_dimension_numbers<[1], [0], [0], [1], [0, 0, 1, 1], [], []>} : vector<80x32xbf16>, vector<32x64xbf16>, vector<80x64xf32> -> vector<80x64xf32>
    %71 = arith.addf %65, %70 : vector<80x64xf32>
    %c1 = arith.constant 1 : index
    %c0_51 = arith.constant 0 : index
    %72 = vector.load %arg19[%c1, %c0_51] : memref<104x32xf32, #tpu.memory_space<vmem>>, vector<80x32xf32>
    %73 = arith.truncf %72 : vector<80x32xf32> to vector<80x32xbf16>
    %c0_52 = arith.constant 0 : index
    %c1_53 = arith.constant 1 : index
    %c0_54 = arith.constant 0 : index
    %c0_55 = arith.constant 0 : index
    %74 = vector.load %arg6[%c0_52, %c1_53, %c0_54, %c0_55] : memref<3x3x32x64xbf16, #tpu.memory_space<vmem>>, vector<1x1x32x64xbf16>
    %75 = vector.shape_cast %74 : vector<1x1x32x64xbf16> to vector<32x64xbf16>
    %cst_56 = arith.constant dense<0.000000e+00> : vector<80x64xf32>
    %76 = tpu.matmul %73, %75, %cst_56 {dimension_numbers = #tpu.dot_dimension_numbers<[1], [0], [0], [1], [0, 0, 1, 1], [], []>} : vector<80x32xbf16>, vector<32x64xbf16>, vector<80x64xf32> -> vector<80x64xf32>
    %77 = arith.addf %71, %76 : vector<80x64xf32>
    %c2 = arith.constant 2 : index
    %c0_57 = arith.constant 0 : index
    %78 = vector.load %arg19[%c2, %c0_57] : memref<104x32xf32, #tpu.memory_space<vmem>>, vector<80x32xf32>
    %79 = arith.truncf %78 : vector<80x32xf32> to vector<80x32xbf16>
    %c0_58 = arith.constant 0 : index
    %c2_59 = arith.constant 2 : index
    %c0_60 = arith.constant 0 : index
    %c0_61 = arith.constant 0 : index
    %80 = vector.load %arg6[%c0_58, %c2_59, %c0_60, %c0_61] : memref<3x3x32x64xbf16, #tpu.memory_space<vmem>>, vector<1x1x32x64xbf16>
    %81 = vector.shape_cast %80 : vector<1x1x32x64xbf16> to vector<32x64xbf16>
    %cst_62 = arith.constant dense<0.000000e+00> : vector<80x64xf32>
    %82 = tpu.matmul %79, %81, %cst_62 {dimension_numbers = #tpu.dot_dimension_numbers<[1], [0], [0], [1], [0, 0, 1, 1], [], []>} : vector<80x32xbf16>, vector<32x64xbf16>, vector<80x64xf32> -> vector<80x64xf32>
    %83 = arith.addf %77, %82 : vector<80x64xf32>
    %c10 = arith.constant 10 : index
    %c0_63 = arith.constant 0 : index
    %84 = vector.load %arg19[%c10, %c0_63] : memref<104x32xf32, #tpu.memory_space<vmem>>, vector<80x32xf32>
    %85 = arith.truncf %84 : vector<80x32xf32> to vector<80x32xbf16>
    %c1_64 = arith.constant 1 : index
    %c0_65 = arith.constant 0 : index
    %c0_66 = arith.constant 0 : index
    %c0_67 = arith.constant 0 : index
    %86 = vector.load %arg6[%c1_64, %c0_65, %c0_66, %c0_67] : memref<3x3x32x64xbf16, #tpu.memory_space<vmem>>, vector<1x1x32x64xbf16>
    %87 = vector.shape_cast %86 : vector<1x1x32x64xbf16> to vector<32x64xbf16>
    %cst_68 = arith.constant dense<0.000000e+00> : vector<80x64xf32>
    %88 = tpu.matmul %85, %87, %cst_68 {dimension_numbers = #tpu.dot_dimension_numbers<[1], [0], [0], [1], [0, 0, 1, 1], [], []>} : vector<80x32xbf16>, vector<32x64xbf16>, vector<80x64xf32> -> vector<80x64xf32>
    %89 = arith.addf %83, %88 : vector<80x64xf32>
    %c11_69 = arith.constant 11 : index
    %c0_70 = arith.constant 0 : index
    %90 = vector.load %arg19[%c11_69, %c0_70] : memref<104x32xf32, #tpu.memory_space<vmem>>, vector<80x32xf32>
    %91 = arith.truncf %90 : vector<80x32xf32> to vector<80x32xbf16>
    %c1_71 = arith.constant 1 : index
    %c1_72 = arith.constant 1 : index
    %c0_73 = arith.constant 0 : index
    %c0_74 = arith.constant 0 : index
    %92 = vector.load %arg6[%c1_71, %c1_72, %c0_73, %c0_74] : memref<3x3x32x64xbf16, #tpu.memory_space<vmem>>, vector<1x1x32x64xbf16>
    %93 = vector.shape_cast %92 : vector<1x1x32x64xbf16> to vector<32x64xbf16>
    %cst_75 = arith.constant dense<0.000000e+00> : vector<80x64xf32>
    %94 = tpu.matmul %91, %93, %cst_75 {dimension_numbers = #tpu.dot_dimension_numbers<[1], [0], [0], [1], [0, 0, 1, 1], [], []>} : vector<80x32xbf16>, vector<32x64xbf16>, vector<80x64xf32> -> vector<80x64xf32>
    %95 = arith.addf %89, %94 : vector<80x64xf32>
    %c12 = arith.constant 12 : index
    %c0_76 = arith.constant 0 : index
    %96 = vector.load %arg19[%c12, %c0_76] : memref<104x32xf32, #tpu.memory_space<vmem>>, vector<80x32xf32>
    %97 = arith.truncf %96 : vector<80x32xf32> to vector<80x32xbf16>
    %c1_77 = arith.constant 1 : index
    %c2_78 = arith.constant 2 : index
    %c0_79 = arith.constant 0 : index
    %c0_80 = arith.constant 0 : index
    %98 = vector.load %arg6[%c1_77, %c2_78, %c0_79, %c0_80] : memref<3x3x32x64xbf16, #tpu.memory_space<vmem>>, vector<1x1x32x64xbf16>
    %99 = vector.shape_cast %98 : vector<1x1x32x64xbf16> to vector<32x64xbf16>
    %cst_81 = arith.constant dense<0.000000e+00> : vector<80x64xf32>
    %100 = tpu.matmul %97, %99, %cst_81 {dimension_numbers = #tpu.dot_dimension_numbers<[1], [0], [0], [1], [0, 0, 1, 1], [], []>} : vector<80x32xbf16>, vector<32x64xbf16>, vector<80x64xf32> -> vector<80x64xf32>
    %101 = arith.addf %95, %100 : vector<80x64xf32>
    %c20 = arith.constant 20 : index
    %c0_82 = arith.constant 0 : index
    %102 = vector.load %arg19[%c20, %c0_82] : memref<104x32xf32, #tpu.memory_space<vmem>>, vector<80x32xf32>
    %103 = arith.truncf %102 : vector<80x32xf32> to vector<80x32xbf16>
    %c2_83 = arith.constant 2 : index
    %c0_84 = arith.constant 0 : index
    %c0_85 = arith.constant 0 : index
    %c0_86 = arith.constant 0 : index
    %104 = vector.load %arg6[%c2_83, %c0_84, %c0_85, %c0_86] : memref<3x3x32x64xbf16, #tpu.memory_space<vmem>>, vector<1x1x32x64xbf16>
    %105 = vector.shape_cast %104 : vector<1x1x32x64xbf16> to vector<32x64xbf16>
    %cst_87 = arith.constant dense<0.000000e+00> : vector<80x64xf32>
    %106 = tpu.matmul %103, %105, %cst_87 {dimension_numbers = #tpu.dot_dimension_numbers<[1], [0], [0], [1], [0, 0, 1, 1], [], []>} : vector<80x32xbf16>, vector<32x64xbf16>, vector<80x64xf32> -> vector<80x64xf32>
    %107 = arith.addf %101, %106 : vector<80x64xf32>
    %c21 = arith.constant 21 : index
    %c0_88 = arith.constant 0 : index
    %108 = vector.load %arg19[%c21, %c0_88] : memref<104x32xf32, #tpu.memory_space<vmem>>, vector<80x32xf32>
    %109 = arith.truncf %108 : vector<80x32xf32> to vector<80x32xbf16>
    %c2_89 = arith.constant 2 : index
    %c1_90 = arith.constant 1 : index
    %c0_91 = arith.constant 0 : index
    %c0_92 = arith.constant 0 : index
    %110 = vector.load %arg6[%c2_89, %c1_90, %c0_91, %c0_92] : memref<3x3x32x64xbf16, #tpu.memory_space<vmem>>, vector<1x1x32x64xbf16>
    %111 = vector.shape_cast %110 : vector<1x1x32x64xbf16> to vector<32x64xbf16>
    %cst_93 = arith.constant dense<0.000000e+00> : vector<80x64xf32>
    %112 = tpu.matmul %109, %111, %cst_93 {dimension_numbers = #tpu.dot_dimension_numbers<[1], [0], [0], [1], [0, 0, 1, 1], [], []>} : vector<80x32xbf16>, vector<32x64xbf16>, vector<80x64xf32> -> vector<80x64xf32>
    %113 = arith.addf %107, %112 : vector<80x64xf32>
    %c22 = arith.constant 22 : index
    %c0_94 = arith.constant 0 : index
    %114 = vector.load %arg19[%c22, %c0_94] : memref<104x32xf32, #tpu.memory_space<vmem>>, vector<80x32xf32>
    %115 = arith.truncf %114 : vector<80x32xf32> to vector<80x32xbf16>
    %c2_95 = arith.constant 2 : index
    %c2_96 = arith.constant 2 : index
    %c0_97 = arith.constant 0 : index
    %c0_98 = arith.constant 0 : index
    %116 = vector.load %arg6[%c2_95, %c2_96, %c0_97, %c0_98] : memref<3x3x32x64xbf16, #tpu.memory_space<vmem>>, vector<1x1x32x64xbf16>
    %117 = vector.shape_cast %116 : vector<1x1x32x64xbf16> to vector<32x64xbf16>
    %cst_99 = arith.constant dense<0.000000e+00> : vector<80x64xf32>
    %118 = tpu.matmul %115, %117, %cst_99 {dimension_numbers = #tpu.dot_dimension_numbers<[1], [0], [0], [1], [0, 0, 1, 1], [], []>} : vector<80x32xbf16>, vector<32x64xbf16>, vector<80x64xf32> -> vector<80x64xf32>
    %119 = arith.addf %113, %118 : vector<80x64xf32>
    %c0_100 = arith.constant 0 : index
    %c0_101 = arith.constant 0 : index
    %120 = vector.load %arg10[%c0_100, %c0_101] : memref<64x32xf32, #tpu.memory_space<vmem>>, vector<64x32xf32>
    %c0_102 = arith.constant 0 : index
    %c0_103 = arith.constant 0 : index
    %121 = vector.load %arg11[%c0_102, %c0_103] : memref<32x64xf32, #tpu.memory_space<vmem>>, vector<32x64xf32>
    %c0_104 = arith.constant 0 : index
    %c0_105 = arith.constant 0 : index
    %122 = vector.load %arg8[%c0_104, %c0_105] : memref<1x64xf32, #tpu.memory_space<vmem>>, vector<1x64xf32>
    %c0_106 = arith.constant 0 : index
    %c0_107 = arith.constant 0 : index
    %123 = vector.load %arg9[%c0_106, %c0_107] : memref<1x64xf32, #tpu.memory_space<vmem>>, vector<1x64xf32>
    %c0_108 = arith.constant 0 : index
    %c0_109 = arith.constant 0 : index
    %124 = vector.load %arg17[%c0_108, %c0_109] : memref<80x1xf32, #tpu.memory_space<vmem>>, vector<80x1xf32>
    %cst_110 = arith.constant 0.000000e+00 : f32
    %125 = vector.broadcast %cst_110 : f32 to vector<80x1xf32>
    %126 = arith.cmpf ogt, %124, %125 : vector<80x1xf32>
    %cst_111 = arith.constant 0.000000e+00 : f32
    %127 = vector.shape_cast %126 : vector<80x1xi1> to vector<80x1xi1>
    %128 = vector.broadcast %127 : vector<80x1xi1> to vector<80x64xi1>
    %129 = vector.broadcast %cst_111 : f32 to vector<80x64xf32>
    %130 = arith.select %128, %119, %129 : vector<80x64xi1>, vector<80x64xf32>
    %cst_112 = arith.constant dense<0.000000e+00> : vector<64xf32>
    %131 = vector.multi_reduction <add>, %130, %cst_112 [0] : vector<80x64xf32> to vector<64xf32>
    %132 = vector.shape_cast %131 : vector<64xf32> to vector<1x64xf32>
    %133 = arith.mulf %130, %130 : vector<80x64xf32>
    %cst_113 = arith.constant dense<0.000000e+00> : vector<64xf32>
    %134 = vector.multi_reduction <add>, %133, %cst_113 [0] : vector<80x64xf32> to vector<64xf32>
    %135 = vector.shape_cast %134 : vector<64xf32> to vector<1x64xf32>
    %cst_114 = arith.constant dense<0.000000e+00> : vector<1x32xf32>
    %136 = tpu.matmul %132, %120, %cst_114 {dimension_numbers = #tpu.dot_dimension_numbers<[1], [0], [0], [1], [0, 0, 1, 1], [], []>} : vector<1x64xf32>, vector<64x32xf32>, vector<1x32xf32> -> vector<1x32xf32>
    %cst_115 = arith.constant dense<0.000000e+00> : vector<1x32xf32>
    %137 = tpu.matmul %135, %120, %cst_115 {dimension_numbers = #tpu.dot_dimension_numbers<[1], [0], [0], [1], [0, 0, 1, 1], [], []>} : vector<1x64xf32>, vector<64x32xf32>, vector<1x32xf32> -> vector<1x32xf32>
    %cst_116 = arith.constant 1.280000e+02 : f32
    %138 = vector.broadcast %cst_116 : f32 to vector<1x32xf32>
    %139 = arith.divf %136, %138 : vector<1x32xf32>
    %cst_117 = arith.constant 1.280000e+02 : f32
    %140 = vector.broadcast %cst_117 : f32 to vector<1x32xf32>
    %141 = arith.divf %137, %140 : vector<1x32xf32>
    %142 = arith.mulf %139, %139 : vector<1x32xf32>
    %143 = arith.subf %141, %142 : vector<1x32xf32>
    %cst_118 = arith.constant 9.99999974E-6 : f32
    %144 = vector.broadcast %cst_118 : f32 to vector<1x32xf32>
    %145 = arith.addf %143, %144 : vector<1x32xf32>
    %146 = math.rsqrt %145 : vector<1x32xf32>
    %cst_119 = arith.constant dense<0.000000e+00> : vector<1x64xf32>
    %147 = tpu.matmul %139, %121, %cst_119 {dimension_numbers = #tpu.dot_dimension_numbers<[1], [0], [0], [1], [0, 0, 1, 1], [], []>} : vector<1x32xf32>, vector<32x64xf32>, vector<1x64xf32> -> vector<1x64xf32>
    %cst_120 = arith.constant dense<0.000000e+00> : vector<1x64xf32>
    %148 = tpu.matmul %146, %121, %cst_120 {dimension_numbers = #tpu.dot_dimension_numbers<[1], [0], [0], [1], [0, 0, 1, 1], [], []>} : vector<1x32xf32>, vector<32x64xf32>, vector<1x64xf32> -> vector<1x64xf32>
    %149 = vector.broadcast %147 : vector<1x64xf32> to vector<80x64xf32>
    %150 = arith.subf %119, %149 : vector<80x64xf32>
    %151 = vector.broadcast %148 : vector<1x64xf32> to vector<80x64xf32>
    %152 = arith.mulf %150, %151 : vector<80x64xf32>
    %153 = vector.broadcast %122 : vector<1x64xf32> to vector<80x64xf32>
    %154 = arith.mulf %152, %153 : vector<80x64xf32>
    %155 = vector.broadcast %123 : vector<1x64xf32> to vector<80x64xf32>
    %156 = arith.addf %154, %155 : vector<80x64xf32>
    %157 = arith.negf %156 : vector<80x64xf32>
    %158 = math.exp %157 : vector<80x64xf32>
    %cst_121 = arith.constant 1.000000e+00 : f32
    %159 = vector.broadcast %cst_121 : f32 to vector<80x64xf32>
    %160 = arith.addf %159, %158 : vector<80x64xf32>
    %161 = arith.divf %159, %160 : vector<80x64xf32>
    %162 = arith.mulf %156, %161 : vector<80x64xf32>
    %c0_122 = arith.constant 0 : index
    %c0_123 = arith.constant 0 : index
    %163 = vector.load %arg17[%c0_122, %c0_123] : memref<80x1xf32, #tpu.memory_space<vmem>>, vector<80x1xf32>
    %cst_124 = arith.constant 0.000000e+00 : f32
    %164 = vector.broadcast %cst_124 : f32 to vector<80x1xf32>
    %165 = arith.cmpf ogt, %163, %164 : vector<80x1xf32>
    %cst_125 = arith.constant 0.000000e+00 : f32
    %166 = vector.shape_cast %165 : vector<80x1xi1> to vector<80x1xi1>
    %167 = vector.broadcast %166 : vector<80x1xi1> to vector<80x64xi1>
    %168 = vector.broadcast %cst_125 : f32 to vector<80x64xf32>
    %169 = arith.select %167, %162, %168 : vector<80x64xi1>, vector<80x64xf32>
    %c16 = arith.constant 16 : index
    %c0_126 = arith.constant 0 : index
    %170 = vector.load %arg20[%c16, %c0_126] : memref<112x64xf32, #tpu.memory_space<vmem>>, vector<80x64xf32>
    tpu.vector_store %arg20[%c16, %c0_126], %169 {strides = array<i32>} : memref<112x64xf32, #tpu.memory_space<vmem>>, vector<80x64xf32>,
    %c5 = arith.constant 5 : index
    %c0_127 = arith.constant 0 : index
    %171 = vector.load %arg20[%c5, %c0_127] : memref<112x64xf32, #tpu.memory_space<vmem>>, vector<80x64xf32>
    %172 = arith.truncf %171 : vector<80x64xf32> to vector<80x64xbf16>
    %c0_128 = arith.constant 0 : index
    %c0_129 = arith.constant 0 : index
    %c0_130 = arith.constant 0 : index
    %c0_131 = arith.constant 0 : index
    %173 = vector.load %arg12[%c0_128, %c0_129, %c0_130, %c0_131] : memref<3x3x64x64xbf16, #tpu.memory_space<vmem>>, vector<1x1x64x64xbf16>
    %174 = vector.shape_cast %173 : vector<1x1x64x64xbf16> to vector<64x64xbf16>
    %cst_132 = arith.constant dense<0.000000e+00> : vector<80x64xf32>
    %175 = tpu.matmul %172, %174, %cst_132 {dimension_numbers = #tpu.dot_dimension_numbers<[1], [0], [0], [1], [0, 0, 1, 1], [], []>} : vector<80x64xbf16>, vector<64x64xbf16>, vector<80x64xf32> -> vector<80x64xf32>
    %176 = arith.addf %62, %175 : vector<80x64xf32>
    %c6 = arith.constant 6 : index
    %c0_133 = arith.constant 0 : index
    %177 = vector.load %arg20[%c6, %c0_133] : memref<112x64xf32, #tpu.memory_space<vmem>>, vector<80x64xf32>
    %178 = arith.truncf %177 : vector<80x64xf32> to vector<80x64xbf16>
    %c0_134 = arith.constant 0 : index
    %c1_135 = arith.constant 1 : index
    %c0_136 = arith.constant 0 : index
    %c0_137 = arith.constant 0 : index
    %179 = vector.load %arg12[%c0_134, %c1_135, %c0_136, %c0_137] : memref<3x3x64x64xbf16, #tpu.memory_space<vmem>>, vector<1x1x64x64xbf16>
    %180 = vector.shape_cast %179 : vector<1x1x64x64xbf16> to vector<64x64xbf16>
    %cst_138 = arith.constant dense<0.000000e+00> : vector<80x64xf32>
    %181 = tpu.matmul %178, %180, %cst_138 {dimension_numbers = #tpu.dot_dimension_numbers<[1], [0], [0], [1], [0, 0, 1, 1], [], []>} : vector<80x64xbf16>, vector<64x64xbf16>, vector<80x64xf32> -> vector<80x64xf32>
    %182 = arith.addf %176, %181 : vector<80x64xf32>
    %c7 = arith.constant 7 : index
    %c0_139 = arith.constant 0 : index
    %183 = vector.load %arg20[%c7, %c0_139] : memref<112x64xf32, #tpu.memory_space<vmem>>, vector<80x64xf32>
    %184 = arith.truncf %183 : vector<80x64xf32> to vector<80x64xbf16>
    %c0_140 = arith.constant 0 : index
    %c2_141 = arith.constant 2 : index
    %c0_142 = arith.constant 0 : index
    %c0_143 = arith.constant 0 : index
    %185 = vector.load %arg12[%c0_140, %c2_141, %c0_142, %c0_143] : memref<3x3x64x64xbf16, #tpu.memory_space<vmem>>, vector<1x1x64x64xbf16>
    %186 = vector.shape_cast %185 : vector<1x1x64x64xbf16> to vector<64x64xbf16>
    %cst_144 = arith.constant dense<0.000000e+00> : vector<80x64xf32>
    %187 = tpu.matmul %184, %186, %cst_144 {dimension_numbers = #tpu.dot_dimension_numbers<[1], [0], [0], [1], [0, 0, 1, 1], [], []>} : vector<80x64xbf16>, vector<64x64xbf16>, vector<80x64xf32> -> vector<80x64xf32>
    %188 = arith.addf %182, %187 : vector<80x64xf32>
    %c15 = arith.constant 15 : index
    %c0_145 = arith.constant 0 : index
    %189 = vector.load %arg20[%c15, %c0_145] : memref<112x64xf32, #tpu.memory_space<vmem>>, vector<80x64xf32>
    %190 = arith.truncf %189 : vector<80x64xf32> to vector<80x64xbf16>
    %c1_146 = arith.constant 1 : index
    %c0_147 = arith.constant 0 : index
    %c0_148 = arith.constant 0 : index
    %c0_149 = arith.constant 0 : index
    %191 = vector.load %arg12[%c1_146, %c0_147, %c0_148, %c0_149] : memref<3x3x64x64xbf16, #tpu.memory_space<vmem>>, vector<1x1x64x64xbf16>
    %192 = vector.shape_cast %191 : vector<1x1x64x64xbf16> to vector<64x64xbf16>
    %cst_150 = arith.constant dense<0.000000e+00> : vector<80x64xf32>
    %193 = tpu.matmul %190, %192, %cst_150 {dimension_numbers = #tpu.dot_dimension_numbers<[1], [0], [0], [1], [0, 0, 1, 1], [], []>} : vector<80x64xbf16>, vector<64x64xbf16>, vector<80x64xf32> -> vector<80x64xf32>
    %194 = arith.addf %188, %193 : vector<80x64xf32>
    %c16_151 = arith.constant 16 : index
    %c0_152 = arith.constant 0 : index
    %195 = vector.load %arg20[%c16_151, %c0_152] : memref<112x64xf32, #tpu.memory_space<vmem>>, vector<80x64xf32>
    %196 = arith.truncf %195 : vector<80x64xf32> to vector<80x64xbf16>
    %c1_153 = arith.constant 1 : index
    %c1_154 = arith.constant 1 : index
    %c0_155 = arith.constant 0 : index
    %c0_156 = arith.constant 0 : index
    %197 = vector.load %arg12[%c1_153, %c1_154, %c0_155, %c0_156] : memref<3x3x64x64xbf16, #tpu.memory_space<vmem>>, vector<1x1x64x64xbf16>
    %198 = vector.shape_cast %197 : vector<1x1x64x64xbf16> to vector<64x64xbf16>
    %cst_157 = arith.constant dense<0.000000e+00> : vector<80x64xf32>
    %199 = tpu.matmul %196, %198, %cst_157 {dimension_numbers = #tpu.dot_dimension_numbers<[1], [0], [0], [1], [0, 0, 1, 1], [], []>} : vector<80x64xbf16>, vector<64x64xbf16>, vector<80x64xf32> -> vector<80x64xf32>
    %200 = arith.addf %194, %199 : vector<80x64xf32>
    %c17 = arith.constant 17 : index
    %c0_158 = arith.constant 0 : index
    %201 = vector.load %arg20[%c17, %c0_158] : memref<112x64xf32, #tpu.memory_space<vmem>>, vector<80x64xf32>
    %202 = arith.truncf %201 : vector<80x64xf32> to vector<80x64xbf16>
    %c1_159 = arith.constant 1 : index
    %c2_160 = arith.constant 2 : index
    %c0_161 = arith.constant 0 : index
    %c0_162 = arith.constant 0 : index
    %203 = vector.load %arg12[%c1_159, %c2_160, %c0_161, %c0_162] : memref<3x3x64x64xbf16, #tpu.memory_space<vmem>>, vector<1x1x64x64xbf16>
    %204 = vector.shape_cast %203 : vector<1x1x64x64xbf16> to vector<64x64xbf16>
    %cst_163 = arith.constant dense<0.000000e+00> : vector<80x64xf32>
    %205 = tpu.matmul %202, %204, %cst_163 {dimension_numbers = #tpu.dot_dimension_numbers<[1], [0], [0], [1], [0, 0, 1, 1], [], []>} : vector<80x64xbf16>, vector<64x64xbf16>, vector<80x64xf32> -> vector<80x64xf32>
    %206 = arith.addf %200, %205 : vector<80x64xf32>
    %c25 = arith.constant 25 : index
    %c0_164 = arith.constant 0 : index
    %207 = vector.load %arg20[%c25, %c0_164] : memref<112x64xf32, #tpu.memory_space<vmem>>, vector<80x64xf32>
    %208 = arith.truncf %207 : vector<80x64xf32> to vector<80x64xbf16>
    %c2_165 = arith.constant 2 : index
    %c0_166 = arith.constant 0 : index
    %c0_167 = arith.constant 0 : index
    %c0_168 = arith.constant 0 : index
    %209 = vector.load %arg12[%c2_165, %c0_166, %c0_167, %c0_168] : memref<3x3x64x64xbf16, #tpu.memory_space<vmem>>, vector<1x1x64x64xbf16>
    %210 = vector.shape_cast %209 : vector<1x1x64x64xbf16> to vector<64x64xbf16>
    %cst_169 = arith.constant dense<0.000000e+00> : vector<80x64xf32>
    %211 = tpu.matmul %208, %210, %cst_169 {dimension_numbers = #tpu.dot_dimension_numbers<[1], [0], [0], [1], [0, 0, 1, 1], [], []>} : vector<80x64xbf16>, vector<64x64xbf16>, vector<80x64xf32> -> vector<80x64xf32>
    %212 = arith.addf %206, %211 : vector<80x64xf32>
    %c26 = arith.constant 26 : index
    %c0_170 = arith.constant 0 : index
    %213 = vector.load %arg20[%c26, %c0_170] : memref<112x64xf32, #tpu.memory_space<vmem>>, vector<80x64xf32>
    %214 = arith.truncf %213 : vector<80x64xf32> to vector<80x64xbf16>
    %c2_171 = arith.constant 2 : index
    %c1_172 = arith.constant 1 : index
    %c0_173 = arith.constant 0 : index
    %c0_174 = arith.constant 0 : index
    %215 = vector.load %arg12[%c2_171, %c1_172, %c0_173, %c0_174] : memref<3x3x64x64xbf16, #tpu.memory_space<vmem>>, vector<1x1x64x64xbf16>
    %216 = vector.shape_cast %215 : vector<1x1x64x64xbf16> to vector<64x64xbf16>
    %cst_175 = arith.constant dense<0.000000e+00> : vector<80x64xf32>
    %217 = tpu.matmul %214, %216, %cst_175 {dimension_numbers = #tpu.dot_dimension_numbers<[1], [0], [0], [1], [0, 0, 1, 1], [], []>} : vector<80x64xbf16>, vector<64x64xbf16>, vector<80x64xf32> -> vector<80x64xf32>
    %218 = arith.addf %212, %217 : vector<80x64xf32>
    %c27 = arith.constant 27 : index
    %c0_176 = arith.constant 0 : index
    %219 = vector.load %arg20[%c27, %c0_176] : memref<112x64xf32, #tpu.memory_space<vmem>>, vector<80x64xf32>
    %220 = arith.truncf %219 : vector<80x64xf32> to vector<80x64xbf16>
    %c2_177 = arith.constant 2 : index
    %c2_178 = arith.constant 2 : index
    %c0_179 = arith.constant 0 : index
    %c0_180 = arith.constant 0 : index
    %221 = vector.load %arg12[%c2_177, %c2_178, %c0_179, %c0_180] : memref<3x3x64x64xbf16, #tpu.memory_space<vmem>>, vector<1x1x64x64xbf16>
    %222 = vector.shape_cast %221 : vector<1x1x64x64xbf16> to vector<64x64xbf16>
    %cst_181 = arith.constant dense<0.000000e+00> : vector<80x64xf32>
    %223 = tpu.matmul %220, %222, %cst_181 {dimension_numbers = #tpu.dot_dimension_numbers<[1], [0], [0], [1], [0, 0, 1, 1], [], []>} : vector<80x64xbf16>, vector<64x64xbf16>, vector<80x64xf32> -> vector<80x64xf32>
    %224 = arith.addf %218, %223 : vector<80x64xf32>
    %c0_182 = arith.constant 0 : index
    %c0_183 = arith.constant 0 : index
    %c0_184 = arith.constant 0 : index
    %225 = vector.load %arg18[%c0_182, %c0_183, %c0_184] : memref<1x80x64xf32, #tpu.memory_space<vmem>>, vector<1x80x64xf32>
    %226 = vector.shape_cast %225 : vector<1x80x64xf32> to vector<80x64xf32>
    %227 = vector.shape_cast %224 : vector<80x64xf32> to vector<1x80x64xf32>
    tpu.vector_store %arg18[%c0_182, %c0_183, %c0_184], %227 {strides = array<i32>} : memref<1x80x64xf32, #tpu.memory_space<vmem>>, vector<1x80x64xf32>,
    return
  }
  func.func @transform_0(%arg0: i32) -> (i32, i32, i32) {
    %c0_i32 = arith.constant 0 : i32
    %c0_i32_0 = arith.constant 0 : i32
    %c0_i32_1 = arith.constant 0 : i32
    return %arg0, %c0_i32, %c0_i32_0 : i32, i32, i32
  }
  func.func @transform_1(%arg0: i32) -> (i32, i32) {
    %c0_i32 = arith.constant 0 : i32
    %c0_i32_0 = arith.constant 0 : i32
    %c0_i32_1 = arith.constant 0 : i32
    return %c0_i32, %c0_i32_0 : i32, i32
  }
  func.func @transform_2(%arg0: i32) -> (i32, i32) {
    %c0_i32 = arith.constant 0 : i32
    %c0_i32_0 = arith.constant 0 : i32
    %c0_i32_1 = arith.constant 0 : i32
    return %c0_i32, %c0_i32_0 : i32, i32
  }
  func.func @transform_3(%arg0: i32) -> (i32, i32) {
    %c0_i32 = arith.constant 0 : i32
    %c0_i32_0 = arith.constant 0 : i32
    %c0_i32_1 = arith.constant 0 : i32
    return %c0_i32, %c0_i32_0 : i32, i32
  }
  func.func @transform_4(%arg0: i32) -> (i32, i32) {
    %c0_i32 = arith.constant 0 : i32
    %c0_i32_0 = arith.constant 0 : i32
    %c0_i32_1 = arith.constant 0 : i32
    return %c0_i32, %c0_i32_0 : i32, i32
  }
  func.func @transform_5(%arg0: i32) -> (i32, i32, i32, i32) {
    %c0_i32 = arith.constant 0 : i32
    %c0_i32_0 = arith.constant 0 : i32
    %c0_i32_1 = arith.constant 0 : i32
    %c0_i32_2 = arith.constant 0 : i32
    %c0_i32_3 = arith.constant 0 : i32
    return %c0_i32, %c0_i32_0, %c0_i32_1, %c0_i32_2 : i32, i32, i32, i32
  }
  func.func @transform_6(%arg0: i32) -> (i32, i32) {
    %c0_i32 = arith.constant 0 : i32
    %c0_i32_0 = arith.constant 0 : i32
    %c0_i32_1 = arith.constant 0 : i32
    return %c0_i32, %c0_i32_0 : i32, i32
  }
  func.func @transform_7(%arg0: i32) -> (i32, i32) {
    %c0_i32 = arith.constant 0 : i32
    %c0_i32_0 = arith.constant 0 : i32
    %c0_i32_1 = arith.constant 0 : i32
    return %c0_i32, %c0_i32_0 : i32, i32
  }
  func.func @transform_8(%arg0: i32) -> (i32, i32) {
    %c0_i32 = arith.constant 0 : i32
    %c0_i32_0 = arith.constant 0 : i32
    %c0_i32_1 = arith.constant 0 : i32
    return %c0_i32, %c0_i32_0 : i32, i32
  }
  func.func @transform_9(%arg0: i32) -> (i32, i32) {
    %c0_i32 = arith.constant 0 : i32
    %c0_i32_0 = arith.constant 0 : i32
    %c0_i32_1 = arith.constant 0 : i32
    return %c0_i32, %c0_i32_0 : i32, i32
  }
  func.func @transform_10(%arg0: i32) -> (i32, i32) {
    %c0_i32 = arith.constant 0 : i32
    %c0_i32_0 = arith.constant 0 : i32
    %c0_i32_1 = arith.constant 0 : i32
    return %c0_i32, %c0_i32_0 : i32, i32
  }
  func.func @transform_11(%arg0: i32) -> (i32, i32, i32, i32) {
    %c0_i32 = arith.constant 0 : i32
    %c0_i32_0 = arith.constant 0 : i32
    %c0_i32_1 = arith.constant 0 : i32
    %c0_i32_2 = arith.constant 0 : i32
    %c0_i32_3 = arith.constant 0 : i32
    return %c0_i32, %c0_i32_0, %c0_i32_1, %c0_i32_2 : i32, i32, i32, i32
  }
  func.func @transform_12(%arg0: i32) -> (i32, i32) {
    %c0_i32 = arith.constant 0 : i32
    %c0_i32_0 = arith.constant 0 : i32
    %c0_i32_1 = arith.constant 0 : i32
    return %c0_i32, %c0_i32_0 : i32, i32
  }
  func.func @transform_13(%arg0: i32) -> (i32, i32) {
    %c0_i32 = arith.constant 0 : i32
    %c0_i32_0 = arith.constant 0 : i32
    %c0_i32_1 = arith.constant 0 : i32
    return %c0_i32, %c0_i32_0 : i32, i32
  }
  func.func @transform_14(%arg0: i32) -> (i32, i32) {
    %c0_i32 = arith.constant 0 : i32
    %c0_i32_0 = arith.constant 0 : i32
    %c0_i32_1 = arith.constant 0 : i32
    return %c0_i32, %c0_i32_0 : i32, i32
  }
  func.func @transform_15(%arg0: i32) -> (i32, i32) {
    %c0_i32 = arith.constant 0 : i32
    %c0_i32_0 = arith.constant 0 : i32
    %c0_i32_1 = arith.constant 0 : i32
    return %c0_i32, %c0_i32_0 : i32, i32
  }
  func.func @transform_16(%arg0: i32) -> (i32, i32) {
    %c0_i32 = arith.constant 0 : i32
    %c0_i32_0 = arith.constant 0 : i32
    %c0_i32_1 = arith.constant 0 : i32
    return %c0_i32, %c0_i32_0 : i32, i32
  }
  func.func @transform_17(%arg0: i32) -> (i32, i32, i32) {
    %c0_i32 = arith.constant 0 : i32
    %c0_i32_0 = arith.constant 0 : i32
    %c0_i32_1 = arith.constant 0 : i32
    return %arg0, %c0_i32, %c0_i32_0 : i32, i32, i32
  }
}

</mosaic_0001>

<llo_original>
// kernel: tpu_custom_call.1
$region0: #{tpu_custom_call.1}
  #allocation0 [shape = 'u32[]', space=smem, size = 0x4, offset = 0x4, fixed_abs, tag = 'smem constant byte address 0x4 - core index']
  #allocation1 [shape = 'u32[144,128]{1,0:T(1,128)}', space=vmem, size = 0x12000, scoped, tag = 'internal scratch']
  #allocation2 [shape = 'f32[104,32]{1,0:T(8,128)}', space=vmem, size = 0xd000, scoped, tag = 'scratch operand']
  #allocation3 [shape = 'f32[112,64]{1,0:T(8,128)}', space=vmem, size = 0xe000, scoped, tag = 'scratch operand']
  %s0 = inlined_call_operand.vmem [shape: f32[2,100,32], index: 0, kind: input, shape index: {}]
  %s1 = inlined_call_operand.vmem [shape: f32[1,32], index: 1, kind: input, shape index: {}]
  %s2 = inlined_call_operand.vmem [shape: f32[1,32], index: 2, kind: input, shape index: {}]
  %s3 = inlined_call_operand.vmem [shape: f32[32,32], index: 3, kind: input, shape index: {}]
  %s4 = inlined_call_operand.vmem [shape: f32[32,32], index: 4, kind: input, shape index: {}]
  %s5 = inlined_call_operand.vmem [shape: bf16[3,3,32,64], index: 5, kind: input, shape index: {}]
  %s6 = inlined_call_operand.vmem [shape: f32[1,64], index: 6, kind: input, shape index: {}]
  %s7 = inlined_call_operand.vmem [shape: f32[1,64], index: 7, kind: input, shape index: {}]
  %s8 = inlined_call_operand.vmem [shape: f32[1,64], index: 8, kind: input, shape index: {}]
  %s9 = inlined_call_operand.vmem [shape: f32[64,32], index: 9, kind: input, shape index: {}]
  %s10 = inlined_call_operand.vmem [shape: f32[32,64], index: 10, kind: input, shape index: {}]
  %s11 = inlined_call_operand.vmem [shape: bf16[3,3,64,64], index: 11, kind: input, shape index: {}]
  %s12 = inlined_call_operand.vmem [shape: f32[1,64], index: 12, kind: input, shape index: {}]
  %s13 = inlined_call_operand.vmem [shape: bf16[32,64], index: 13, kind: input, shape index: {}]
  %s14 = inlined_call_operand.vmem [shape: f32[1,64], index: 14, kind: input, shape index: {}]
  %s15 = inlined_call_operand.vmem [shape: f32[100,1], index: 15, kind: input, shape index: {}]
  %s16 = inlined_call_operand.vmem [shape: f32[80,1], index: 16, kind: input, shape index: {}]
  %s17 = inlined_call_operand.vmem [shape: f32[2,80,64], index: 17, kind: output, shape index: {}]
  %s18 = sld [smem:[#allocation0]]
  $region101: #{tpu_custom_call.1} parent=0
    _
  %s20 = ssub.s32 1, %s18
  %s21 = scalar_select 0, %s20, %s18
  loop: start=0, step=1, limit=4
  $region2: #{tpu_custom_call.1} parent=0 // loop_pre_header
    _
  $region3: #{tpu_custom_call.1} parent=0 // loop_header
    %s23 = sphi 0, %s27
    %p24 = scmp.ge.s32.totalorder %s23, 4
    %s33 = sphi 0, %s35
    %s36 = sphi 0, %s33
    %s37 = sphi 0, %s36
    %s53 = sphi 0, %s37
    %s57 = sphi 0, %s57
    %s59 = sphi 0, %s57
    %s60 = sphi 0, %s59
    %s74 = sphi 0, %s60
    %s78 = sphi 0, %s78
    %s80 = sphi 0, %s78
    %s81 = sphi 0, %s80
    %s95 = sphi 0, %s81
    %s99 = sphi 0, %s99
    %s101 = sphi 0, %s99
    %s102 = sphi 0, %s101
    %s116 = sphi 0, %s102
    %s120 = sphi 0, %s120
    %s122 = sphi 0, %s120
    %s123 = sphi 0, %s122
    %s137 = sphi 0, %s123
    %s141 = sphi 0, %s141
    %s143 = sphi 0, %s141
    %s144 = sphi 0, %s143
    %s158 = sphi 0, %s144
    %s162 = sphi 0, %s162
    %s164 = sphi 0, %s162
    %s165 = sphi 0, %s164
    %s179 = sphi 0, %s165
    %s183 = sphi 0, %s183
    %s185 = sphi 0, %s183
    %s186 = sphi 0, %s185
    %s200 = sphi 0, %s186
    %s204 = sphi 0, %s204
    %s206 = sphi 0, %s204
    %s207 = sphi 0, %s206
    %s221 = sphi 0, %s207
    %s225 = sphi 0, %s225
    %s227 = sphi 0, %s225
    %s228 = sphi 0, %s227
    %s242 = sphi 0, %s228
    %s246 = sphi 0, %s246
    %s248 = sphi 0, %s246
    %s249 = sphi 0, %s248
    %s263 = sphi 0, %s249
    %s267 = sphi 0, %s267
    %s269 = sphi 0, %s267
    %s270 = sphi 0, %s269
    %s284 = sphi 0, %s270
    %s288 = sphi 0, %s288
    %s290 = sphi 0, %s288
    %s291 = sphi 0, %s290
    %s305 = sphi 0, %s291
    %s309 = sphi 0, %s309
    %s311 = sphi 0, %s309
    %s312 = sphi 0, %s311
    %s326 = sphi 0, %s312
    %s330 = sphi 0, %s330
    %s332 = sphi 0, %s330
    %s333 = sphi 0, %s332
    %s347 = sphi 0, %s333
    %s351 = sphi 0, %s351
    %s353 = sphi 0, %s351
    %s354 = sphi 0, %s353
    %s368 = sphi 0, %s354
    %s372 = sphi 0, %s372
    %s374 = sphi 0, %s372
    %s375 = sphi 0, %s374
    %s389 = sphi 0, %s375
    %s395 = sphi 0, %s397
    %s398 = sphi 0, %s395
    %s399 = sphi 0, %s398
    %s415 = sphi 0, %s399
  $region4: #{tpu_custom_call.1} parent=0 // loop_header_branch
    %26 = sbr.rel (%p24) target = $region8
  $region5: #{tpu_custom_call.1} parent=0 // loop_body
    %s28 = ssub.s32 %s23, 1
    %s29 = ssub.s32 %s23, 2
    %s30 = sadd.s32 %s23, 1
    %s31 = ssub.s32 %s23, %s30
    %p32 = scmp.eq.s32.totalorder %s31, 0
    %s34 = sadd.s32 %s33, 1
    %s35 = scalar_select %p32, %s33, %s34
    %p38 = pneg %p32
    %p39 = scmp.eq.s32.totalorder %s23, 1
    %p40 = por %p38, %p39
    %p41 = scmp.ne.s32.totalorder %s33, %s36
    %p42 = scmp.eq.s32.totalorder %s23, 0
    %p43 = por %p41, %p42
    %p44 = scmp.ne.s32.totalorder %s33, %s36
    %p45 = scmp.eq.s32.totalorder %s28, 1
    %p46 = por %p44, %p45
    %p47 = scmp.ne.s32.totalorder %s36, %s37
    %p48 = scmp.eq.s32.totalorder %s28, 0
    %p49 = por %p47, %p48
    %p50 = scmp.ne.s32.totalorder %s36, %s37
    %p51 = scmp.eq.s32.totalorder %s29, 1
    %p52 = por %p50, %p51
    %p54 = scmp.ne.s32.totalorder %s37, %s53
    %p55 = scmp.eq.s32.totalorder %s29, 0
    %p56 = por %p54, %p55
    %s58 = sadd.s32 %s57, 1
    %p61 = scmp.eq.s32.totalorder %s23, 1
    %p62 = scmp.ne.s32.totalorder %s57, %s59
    %p63 = scmp.eq.s32.totalorder %s23, 0
    %p64 = por %p62, %p63
    %p65 = scmp.ne.s32.totalorder %s57, %s59
    %p66 = scmp.eq.s32.totalorder %s28, 1
    %p67 = por %p65, %p66
    %p68 = scmp.ne.s32.totalorder %s59, %s60
    %p69 = scmp.eq.s32.totalorder %s28, 0
    %p70 = por %p68, %p69
    %p71 = scmp.ne.s32.totalorder %s59, %s60
    %p72 = scmp.eq.s32.totalorder %s29, 1
    %p73 = por %p71, %p72
    %p75 = scmp.ne.s32.totalorder %s60, %s74
    %p76 = scmp.eq.s32.totalorder %s29, 0
    %p77 = por %p75, %p76
    %s79 = sadd.s32 %s78, 1
    %p82 = scmp.eq.s32.totalorder %s23, 1
    %p83 = scmp.ne.s32.totalorder %s78, %s80
    %p84 = scmp.eq.s32.totalorder %s23, 0
    %p85 = por %p83, %p84
    %p86 = scmp.ne.s32.totalorder %s78, %s80
    %p87 = scmp.eq.s32.totalorder %s28, 1
    %p88 = por %p86, %p87
    %p89 = scmp.ne.s32.totalorder %s80, %s81
    %p90 = scmp.eq.s32.totalorder %s28, 0
    %p91 = por %p89, %p90
    %p92 = scmp.ne.s32.totalorder %s80, %s81
    %p93 = scmp.eq.s32.totalorder %s29, 1
    %p94 = por %p92, %p93
    %p96 = scmp.ne.s32.totalorder %s81, %s95
    %p97 = scmp.eq.s32.totalorder %s29, 0
    %p98 = por %p96, %p97
    %s100 = sadd.s32 %s99, 1
    %p103 = scmp.eq.s32.totalorder %s23, 1
    %p104 = scmp.ne.s32.totalorder %s99, %s101
    %p105 = scmp.eq.s32.totalorder %s23, 0
    %p106 = por %p104, %p105
    %p107 = scmp.ne.s32.totalorder %s99, %s101
    %p108 = scmp.eq.s32.totalorder %s28, 1
    %p109 = por %p107, %p108
    %p110 = scmp.ne.s32.totalorder %s101, %s102
    %p111 = scmp.eq.s32.totalorder %s28, 0
    %p112 = por %p110, %p111
    %p113 = scmp.ne.s32.totalorder %s101, %s102
    %p114 = scmp.eq.s32.totalorder %s29, 1
    %p115 = por %p113, %p114
    %p117 = scmp.ne.s32.totalorder %s102, %s116
    %p118 = scmp.eq.s32.totalorder %s29, 0
    %p119 = por %p117, %p118
    %s121 = sadd.s32 %s120, 1
    %p124 = scmp.eq.s32.totalorder %s23, 1
    %p125 = scmp.ne.s32.totalorder %s120, %s122
    %p126 = scmp.eq.s32.totalorder %s23, 0
    %p127 = por %p125, %p126
    %p128 = scmp.ne.s32.totalorder %s120, %s122
    %p129 = scmp.eq.s32.totalorder %s28, 1
    %p130 = por %p128, %p129
    %p131 = scmp.ne.s32.totalorder %s122, %s123
    %p132 = scmp.eq.s32.totalorder %s28, 0
    %p133 = por %p131, %p132
    %p134 = scmp.ne.s32.totalorder %s122, %s123
    %p135 = scmp.eq.s32.totalorder %s29, 1
    %p136 = por %p134, %p135
    %p138 = scmp.ne.s32.totalorder %s123, %s137
    %p139 = scmp.eq.s32.totalorder %s29, 0
    %p140 = por %p138, %p139
    %s142 = sadd.s32 %s141, 1
    %p145 = scmp.eq.s32.totalorder %s23, 1
    %p146 = scmp.ne.s32.totalorder %s141, %s143
    %p147 = scmp.eq.s32.totalorder %s23, 0
    %p148 = por %p146, %p147
    %p149 = scmp.ne.s32.totalorder %s141, %s143
    %p150 = scmp.eq.s32.totalorder %s28, 1
    %p151 = por %p149, %p150
    %p152 = scmp.ne.s32.totalorder %s143, %s144
    %p153 = scmp.eq.s32.totalorder %s28, 0
    %p154 = por %p152, %p153
    %p155 = scmp.ne.s32.totalorder %s143, %s144
    %p156 = scmp.eq.s32.totalorder %s29, 1
    %p157 = por %p155, %p156
    %p159 = scmp.ne.s32.totalorder %s144, %s158
    %p160 = scmp.eq.s32.totalorder %s29, 0
    %p161 = por %p159, %p160
    %s163 = sadd.s32 %s162, 1
    %p166 = scmp.eq.s32.totalorder %s23, 1
    %p167 = scmp.ne.s32.totalorder %s162, %s164
    %p168 = scmp.eq.s32.totalorder %s23, 0
    %p169 = por %p167, %p168
    %p170 = scmp.ne.s32.totalorder %s162, %s164
    %p171 = scmp.eq.s32.totalorder %s28, 1
    %p172 = por %p170, %p171
    %p173 = scmp.ne.s32.totalorder %s164, %s165
    %p174 = scmp.eq.s32.totalorder %s28, 0
    %p175 = por %p173, %p174
    %p176 = scmp.ne.s32.totalorder %s164, %s165
    %p177 = scmp.eq.s32.totalorder %s29, 1
    %p178 = por %p176, %p177
    %p180 = scmp.ne.s32.totalorder %s165, %s179
    %p181 = scmp.eq.s32.totalorder %s29, 0
    %p182 = por %p180, %p181
    %s184 = sadd.s32 %s183, 1
    %p187 = scmp.eq.s32.totalorder %s23, 1
    %p188 = scmp.ne.s32.totalorder %s183, %s185
    %p189 = scmp.eq.s32.totalorder %s23, 0
    %p190 = por %p188, %p189
    %p191 = scmp.ne.s32.totalorder %s183, %s185
    %p192 = scmp.eq.s32.totalorder %s28, 1
    %p193 = por %p191, %p192
    %p194 = scmp.ne.s32.totalorder %s185, %s186
    %p195 = scmp.eq.s32.totalorder %s28, 0
    %p196 = por %p194, %p195
    %p197 = scmp.ne.s32.totalorder %s185, %s186
    %p198 = scmp.eq.s32.totalorder %s29, 1
    %p199 = por %p197, %p198
    %p201 = scmp.ne.s32.totalorder %s186, %s200
    %p202 = scmp.eq.s32.totalorder %s29, 0
    %p203 = por %p201, %p202
    %s205 = sadd.s32 %s204, 1
    %p208 = scmp.eq.s32.totalorder %s23, 1
    %p209 = scmp.ne.s32.totalorder %s204, %s206
    %p210 = scmp.eq.s32.totalorder %s23, 0
    %p211 = por %p209, %p210
    %p212 = scmp.ne.s32.totalorder %s204, %s206
    %p213 = scmp.eq.s32.totalorder %s28, 1
    %p214 = por %p212, %p213
    %p215 = scmp.ne.s32.totalorder %s206, %s207
    %p216 = scmp.eq.s32.totalorder %s28, 0
    %p217 = por %p215, %p216
    %p218 = scmp.ne.s32.totalorder %s206, %s207
    %p219 = scmp.eq.s32.totalorder %s29, 1
    %p220 = por %p218, %p219
    %p222 = scmp.ne.s32.totalorder %s207, %s221
    %p223 = scmp.eq.s32.totalorder %s29, 0
    %p224 = por %p222, %p223
    %s226 = sadd.s32 %s225, 1
    %p229 = scmp.eq.s32.totalorder %s23, 1
    %p230 = scmp.ne.s32.totalorder %s225, %s227
    %p231 = scmp.eq.s32.totalorder %s23, 0
    %p232 = por %p230, %p231
    %p233 = scmp.ne.s32.totalorder %s225, %s227
    %p234 = scmp.eq.s32.totalorder %s28, 1
    %p235 = por %p233, %p234
    %p236 = scmp.ne.s32.totalorder %s227, %s228
    %p237 = scmp.eq.s32.totalorder %s28, 0
    %p238 = por %p236, %p237
    %p239 = scmp.ne.s32.totalorder %s227, %s228
    %p240 = scmp.eq.s32.totalorder %s29, 1
    %p241 = por %p239, %p240
    %p243 = scmp.ne.s32.totalorder %s228, %s242
    %p244 = scmp.eq.s32.totalorder %s29, 0
    %p245 = por %p243, %p244
    %s247 = sadd.s32 %s246, 1
    %p250 = scmp.eq.s32.totalorder %s23, 1
    %p251 = scmp.ne.s32.totalorder %s246, %s248
    %p252 = scmp.eq.s32.totalorder %s23, 0
    %p253 = por %p251, %p252
    %p254 = scmp.ne.s32.totalorder %s246, %s248
    %p255 = scmp.eq.s32.totalorder %s28, 1
    %p256 = por %p254, %p255
    %p257 = scmp.ne.s32.totalorder %s248, %s249
    %p258 = scmp.eq.s32.totalorder %s28, 0
    %p259 = por %p257, %p258
    %p260 = scmp.ne.s32.totalorder %s248, %s249
    %p261 = scmp.eq.s32.totalorder %s29, 1
    %p262 = por %p260, %p261
    %p264 = scmp.ne.s32.totalorder %s249, %s263
    %p265 = scmp.eq.s32.totalorder %s29, 0
    %p266 = por %p264, %p265
    %s268 = sadd.s32 %s267, 1
    %p271 = scmp.eq.s32.totalorder %s23, 1
    %p272 = scmp.ne.s32.totalorder %s267, %s269
    %p273 = scmp.eq.s32.totalorder %s23, 0
    %p274 = por %p272, %p273
    %p275 = scmp.ne.s32.totalorder %s267, %s269
    %p276 = scmp.eq.s32.totalorder %s28, 1
    %p277 = por %p275, %p276
    %p278 = scmp.ne.s32.totalorder %s269, %s270
    %p279 = scmp.eq.s32.totalorder %s28, 0
    %p280 = por %p278, %p279
    %p281 = scmp.ne.s32.totalorder %s269, %s270
    %p282 = scmp.eq.s32.totalorder %s29, 1
    %p283 = por %p281, %p282
    %p285 = scmp.ne.s32.totalorder %s270, %s284
    %p286 = scmp.eq.s32.totalorder %s29, 0
    %p287 = por %p285, %p286
    %s289 = sadd.s32 %s288, 1
    %p292 = scmp.eq.s32.totalorder %s23, 1
    %p293 = scmp.ne.s32.totalorder %s288, %s290
    %p294 = scmp.eq.s32.totalorder %s23, 0
    %p295 = por %p293, %p294
    %p296 = scmp.ne.s32.totalorder %s288, %s290
    %p297 = scmp.eq.s32.totalorder %s28, 1
    %p298 = por %p296, %p297
    %p299 = scmp.ne.s32.totalorder %s290, %s291
    %p300 = scmp.eq.s32.totalorder %s28, 0
    %p301 = por %p299, %p300
    %p302 = scmp.ne.s32.totalorder %s290, %s291
    %p303 = scmp.eq.s32.totalorder %s29, 1
    %p304 = por %p302, %p303
    %p306 = scmp.ne.s32.totalorder %s291, %s305
    %p307 = scmp.eq.s32.totalorder %s29, 0
    %p308 = por %p306, %p307
    %s310 = sadd.s32 %s309, 1
    %p313 = scmp.eq.s32.totalorder %s23, 1
    %p314 = scmp.ne.s32.totalorder %s309, %s311
    %p315 = scmp.eq.s32.totalorder %s23, 0
    %p316 = por %p314, %p315
    %p317 = scmp.ne.s32.totalorder %s309, %s311
    %p318 = scmp.eq.s32.totalorder %s28, 1
    %p319 = por %p317, %p318
    %p320 = scmp.ne.s32.totalorder %s311, %s312
    %p321 = scmp.eq.s32.totalorder %s28, 0
    %p322 = por %p320, %p321
    %p323 = scmp.ne.s32.totalorder %s311, %s312
    %p324 = scmp.eq.s32.totalorder %s29, 1
    %p325 = por %p323, %p324
    %p327 = scmp.ne.s32.totalorder %s312, %s326
    %p328 = scmp.eq.s32.totalorder %s29, 0
    %p329 = por %p327, %p328
    %s331 = sadd.s32 %s330, 1
    %p334 = scmp.eq.s32.totalorder %s23, 1
    %p335 = scmp.ne.s32.totalorder %s330, %s332
    %p336 = scmp.eq.s32.totalorder %s23, 0
    %p337 = por %p335, %p336
    %p338 = scmp.ne.s32.totalorder %s330, %s332
    %p339 = scmp.eq.s32.totalorder %s28, 1
    %p340 = por %p338, %p339
    %p341 = scmp.ne.s32.totalorder %s332, %s333
    %p342 = scmp.eq.s32.totalorder %s28, 0
    %p343 = por %p341, %p342
    %p344 = scmp.ne.s32.totalorder %s332, %s333
    %p345 = scmp.eq.s32.totalorder %s29, 1
    %p346 = por %p344, %p345
    %p348 = scmp.ne.s32.totalorder %s333, %s347
    %p349 = scmp.eq.s32.totalorder %s29, 0
    %p350 = por %p348, %p349
    %s352 = sadd.s32 %s351, 1
    %p355 = scmp.eq.s32.totalorder %s23, 1
    %p356 = scmp.ne.s32.totalorder %s351, %s353
    %p357 = scmp.eq.s32.totalorder %s23, 0
    %p358 = por %p356, %p357
    %p359 = scmp.ne.s32.totalorder %s351, %s353
    %p360 = scmp.eq.s32.totalorder %s28, 1
    %p361 = por %p359, %p360
    %p362 = scmp.ne.s32.totalorder %s353, %s354
    %p363 = scmp.eq.s32.totalorder %s28, 0
    %p364 = por %p362, %p363
    %p365 = scmp.ne.s32.totalorder %s353, %s354
    %p366 = scmp.eq.s32.totalorder %s29, 1
    %p367 = por %p365, %p366
    %p369 = scmp.ne.s32.totalorder %s354, %s368
    %p370 = scmp.eq.s32.totalorder %s29, 0
    %p371 = por %p369, %p370
    %s373 = sadd.s32 %s372, 1
    %p376 = scmp.eq.s32.totalorder %s23, 1
    %p377 = scmp.ne.s32.totalorder %s372, %s374
    %p378 = scmp.eq.s32.totalorder %s23, 0
    %p379 = por %p377, %p378
    %p380 = scmp.ne.s32.totalorder %s372, %s374
    %p381 = scmp.eq.s32.totalorder %s28, 1
    %p382 = por %p380, %p381
    %p383 = scmp.ne.s32.totalorder %s374, %s375
    %p384 = scmp.eq.s32.totalorder %s28, 0
    %p385 = por %p383, %p384
    %p386 = scmp.ne.s32.totalorder %s374, %s375
    %p387 = scmp.eq.s32.totalorder %s29, 1
    %p388 = por %p386, %p387
    %p390 = scmp.ne.s32.totalorder %s375, %s389
    %p391 = scmp.eq.s32.totalorder %s29, 0
    %p392 = por %p390, %p391
    %s393 = ssub.s32 %s23, %s30
    %p394 = scmp.eq.s32.totalorder %s393, 0
    %s396 = sadd.s32 %s395, 1
    %s397 = scalar_select %p394, %s395, %s396
    %p400 = pneg %p394
    %p401 = scmp.eq.s32.totalorder %s23, 1
    %p402 = por %p400, %p401
    %p403 = scmp.ne.s32.totalorder %s395, %s398
    %p404 = scmp.eq.s32.totalorder %s23, 0
    %p405 = por %p403, %p404
    %p406 = scmp.ne.s32.totalorder %s395, %s398
    %p407 = scmp.eq.s32.totalorder %s28, 1
    %p408 = por %p406, %p407
    %p409 = scmp.ne.s32.totalorder %s398, %s399
    %p410 = scmp.eq.s32.totalorder %s28, 0
    %p411 = por %p409, %p410
    %p412 = scmp.ne.s32.totalorder %s398, %s399
    %p413 = scmp.eq.s32.totalorder %s29, 1
    %p414 = por %p412, %p413
    %p416 = scmp.ne.s32.totalorder %s399, %s415
    %p417 = scmp.eq.s32.totalorder %s29, 0
    %p418 = por %p416, %p417
    %p419 = scmp.le.s32.totalorder 1, %s23
    %p420 = scmp.lt.s32.totalorder %s23, 3
    %p421 = pnand %p419, %p420
    %p422 = pneg %p421
    // Predicated region
    $region9: #{tpu_custom_call.1} parent=5 // pred_check
      _
    $region10: #{tpu_custom_call.1} parent=5 // pred_check_branch
      %424 = sbr.rel (%p421) target = $region12
    $region11: #{tpu_custom_call.1} parent=5 // pred_region
      %s425 = ssub.s32 %s23, 1
      // Predicated region
      $region13: #{tpu_custom_call.1} parent=11 // pred_check
        %p426 = pneg %p70
      $region14: #{tpu_custom_call.1} parent=11 // pred_check_branch
        %428 = sbr.rel (%p426) target = $region16
      $region15: #{tpu_custom_call.1} parent=11 // pred_region
        _
      $region16: #{tpu_custom_call.1} parent=11 // pred_fallthru
        _
      // Predicated region
      $region17: #{tpu_custom_call.1} parent=11 // pred_check
        %p429 = pneg %p91
      $region18: #{tpu_custom_call.1} parent=11 // pred_check_branch
        %431 = sbr.rel (%p429) target = $region20
      $region19: #{tpu_custom_call.1} parent=11 // pred_region
        _
      $region20: #{tpu_custom_call.1} parent=11 // pred_fallthru
        _
      // Predicated region
      $region21: #{tpu_custom_call.1} parent=11 // pred_check
        %p432 = pneg %p112
      $region22: #{tpu_custom_call.1} parent=11 // pred_check_branch
        %434 = sbr.rel (%p432) target = $region24
      $region23: #{tpu_custom_call.1} parent=11 // pred_region
        _
      $region24: #{tpu_custom_call.1} parent=11 // pred_fallthru
        _
      // Predicated region
      $region25: #{tpu_custom_call.1} parent=11 // pred_check
        %p435 = pneg %p133
      $region26: #{tpu_custom_call.1} parent=11 // pred_check_branch
        %437 = sbr.rel (%p435) target = $region28
      $region27: #{tpu_custom_call.1} parent=11 // pred_region
        _
      $region28: #{tpu_custom_call.1} parent=11 // pred_fallthru
        _
      // Predicated region
      $region29: #{tpu_custom_call.1} parent=11 // pred_check
        %p438 = pneg %p154
      $region30: #{tpu_custom_call.1} parent=11 // pred_check_branch
        %440 = sbr.rel (%p438) target = $region32
      $region31: #{tpu_custom_call.1} parent=11 // pred_region
        _
      $region32: #{tpu_custom_call.1} parent=11 // pred_fallthru
        _
      // Predicated region
      $region33: #{tpu_custom_call.1} parent=11 // pred_check
        %p441 = pneg %p175
      $region34: #{tpu_custom_call.1} parent=11 // pred_check_branch
        %443 = sbr.rel (%p441) target = $region36
      $region35: #{tpu_custom_call.1} parent=11 // pred_region
        _
      $region36: #{tpu_custom_call.1} parent=11 // pred_fallthru
        _
      // Predicated region
      $region37: #{tpu_custom_call.1} parent=11 // pred_check
        %p444 = pneg %p196
      $region38: #{tpu_custom_call.1} parent=11 // pred_check_branch
        %446 = sbr.rel (%p444) target = $region40
      $region39: #{tpu_custom_call.1} parent=11 // pred_region
        _
      $region40: #{tpu_custom_call.1} parent=11 // pred_fallthru
        _
      // Predicated region
      $region41: #{tpu_custom_call.1} parent=11 // pred_check
        %p447 = pneg %p217
      $region42: #{tpu_custom_call.1} parent=11 // pred_check_branch
        %449 = sbr.rel (%p447) target = $region44
      $region43: #{tpu_custom_call.1} parent=11 // pred_region
        _
      $region44: #{tpu_custom_call.1} parent=11 // pred_fallthru
        _
      // Predicated region
      $region45: #{tpu_custom_call.1} parent=11 // pred_check
        %p450 = pneg %p238
      $region46: #{tpu_custom_call.1} parent=11 // pred_check_branch
        %452 = sbr.rel (%p450) target = $region48
      $region47: #{tpu_custom_call.1} parent=11 // pred_region
        _
      $region48: #{tpu_custom_call.1} parent=11 // pred_fallthru
        _
      // Predicated region
      $region49: #{tpu_custom_call.1} parent=11 // pred_check
        %p453 = pneg %p259
      $region50: #{tpu_custom_call.1} parent=11 // pred_check_branch
        %455 = sbr.rel (%p453) target = $region52
      $region51: #{tpu_custom_call.1} parent=11 // pred_region
        _
      $region52: #{tpu_custom_call.1} parent=11 // pred_fallthru
        _
      // Predicated region
      $region53: #{tpu_custom_call.1} parent=11 // pred_check
        %p456 = pneg %p280
      $region54: #{tpu_custom_call.1} parent=11 // pred_check_branch
        %458 = sbr.rel (%p456) target = $region56
      $region55: #{tpu_custom_call.1} parent=11 // pred_region
        _
      $region56: #{tpu_custom_call.1} parent=11 // pred_fallthru
        _
      // Predicated region
      $region57: #{tpu_custom_call.1} parent=11 // pred_check
        %p459 = pneg %p301
      $region58: #{tpu_custom_call.1} parent=11 // pred_check_branch
        %461 = sbr.rel (%p459) target = $region60
      $region59: #{tpu_custom_call.1} parent=11 // pred_region
        _
      $region60: #{tpu_custom_call.1} parent=11 // pred_fallthru
        _
      // Predicated region
      $region61: #{tpu_custom_call.1} parent=11 // pred_check
        %p462 = pneg %p322
      $region62: #{tpu_custom_call.1} parent=11 // pred_check_branch
        %464 = sbr.rel (%p462) target = $region64
      $region63: #{tpu_custom_call.1} parent=11 // pred_region
        _
      $region64: #{tpu_custom_call.1} parent=11 // pred_fallthru
        _
      // Predicated region
      $region65: #{tpu_custom_call.1} parent=11 // pred_check
        %p465 = pneg %p343
      $region66: #{tpu_custom_call.1} parent=11 // pred_check_branch
        %467 = sbr.rel (%p465) target = $region68
      $region67: #{tpu_custom_call.1} parent=11 // pred_region
        _
      $region68: #{tpu_custom_call.1} parent=11 // pred_fallthru
        _
      // Predicated region
      $region69: #{tpu_custom_call.1} parent=11 // pred_check
        %p468 = pneg %p364
      $region70: #{tpu_custom_call.1} parent=11 // pred_check_branch
        %470 = sbr.rel (%p468) target = $region72
      $region71: #{tpu_custom_call.1} parent=11 // pred_region
        _
      $region72: #{tpu_custom_call.1} parent=11 // pred_fallthru
        _
      // Predicated region
      $region73: #{tpu_custom_call.1} parent=11 // pred_check
        %p471 = pneg %p385
      $region74: #{tpu_custom_call.1} parent=11 // pred_check_branch
        %473 = sbr.rel (%p471) target = $region76
      $region75: #{tpu_custom_call.1} parent=11 // pred_region
        _
      $region76: #{tpu_custom_call.1} parent=11 // pred_fallthru
        _
    $region12: #{tpu_custom_call.1} parent=5 // pred_fallthru
      _
    %p474 = scmp.lt.s32.totalorder %s23, 2
    // Predicated region
    $region77: #{tpu_custom_call.1} parent=5 // pred_check
      %p475 = pneg %p474
    $region78: #{tpu_custom_call.1} parent=5 // pred_check_branch
      %477 = sbr.rel (%p475) target = $region80
    $region79: #{tpu_custom_call.1} parent=5 // pred_region
      // Predicated region
      $region81: #{tpu_custom_call.1} parent=79 // pred_check
        %p478 = pneg %p43
      $region82: #{tpu_custom_call.1} parent=79 // pred_check_branch
        %480 = sbr.rel (%p478) target = $region84
      $region83: #{tpu_custom_call.1} parent=79 // pred_region
        %p481 = scmp.lt.s32.totalorder %s23, 1
        %s482 = scalar_select %p481, %s23, 1
        %s483 = smul.addr %s482, 13
        %s484 = smul.addr %s483, 8
        %s485 = scalar_lea.vmem %s0, %s484
      $region84: #{tpu_custom_call.1} parent=79 // pred_fallthru
        _
    $region80: #{tpu_custom_call.1} parent=5 // pred_fallthru
      _
    %p486 = scmp.le.s32.totalorder 1, %s23
    %p487 = scmp.lt.s32.totalorder %s23, 3
    %p488 = pnand %p486, %p487
    %p489 = pneg %p488
    // Predicated region
    $region85: #{tpu_custom_call.1} parent=5 // pred_check
      _
    $region86: #{tpu_custom_call.1} parent=5 // pred_check_branch
      %491 = sbr.rel (%p488) target = $region88
    $region87: #{tpu_custom_call.1} parent=5 // pred_region
      %s492 = ssub.s32 %s23, 1
      %p493 = scmp.lt.s32.totalorder %s28, 1
      %s494 = scalar_select %p493, %s28, 1
      %s495 = smul.addr %s494, 13
      %s496 = smul.addr %s495, 8
      %s497 = scalar_lea.vmem %s0, %s496
      %p498 = pneg %p49
      %p499 = pneg %p46
      %p500 = pneg %p70
      %p501 = pneg %p67
      %p502 = pneg %p91
      %p503 = pneg %p88
      %p504 = pneg %p112
      %p505 = pneg %p109
      %p506 = pneg %p133
      %p507 = pneg %p130
      %p508 = pneg %p154
      %p509 = pneg %p151
      %p510 = pneg %p175
      %p511 = pneg %p172
      %p512 = pneg %p196
      %p513 = pneg %p193
      %p514 = pneg %p217
      %p515 = pneg %p214
      %p516 = pneg %p238
      %p517 = pneg %p235
      %p518 = pneg %p259
      %p519 = pneg %p256
      %p520 = pneg %p280
      %p521 = pneg %p277
      %p522 = pneg %p301
      %p523 = pneg %p298
      %p524 = pneg %p322
      %p525 = pneg %p319
      %p526 = pneg %p343
      %p527 = pneg %p340
      %p528 = pneg %p364
      %p529 = pneg %p361
      %p530 = pneg %p385
      %p531 = pneg %p382
      %p532 = pneg %p411
      %p533 = pneg %p408
      %p534 = scmp.lt.s32.totalorder %s28, 1
      %s535 = scalar_select %p534, %s28, 1
      %s536 = smul.addr %s535, 10
      %s537 = smul.addr %s536, 8
      %s538 = scalar_lea.vmem %s17, %s537
      %p539 = scmp.lt.s32.totalorder %s28, 1
      %s540 = scalar_select %p539, %s28, 1
      %s541 = smul.addr %s540, 13
      %s542 = smul.addr %s541, 8
      %s543 = scalar_lea.vmem %s0, %s542
      %p544 = scmp.lt.s32.totalorder %s28, 1
      %s545 = scalar_select %p544, %s28, 1
      %s546 = smul.addr %s545, 10
      %s547 = smul.addr %s546, 8
      %s548 = scalar_lea.vmem %s17, %s547
      %vm550 = vcmask 261120
      %551 = vst.msk [vmem:[#allocation2 + $0x60] sm:$0xff] %vm550, 0.0
      %vm552 = vcmask 523264
      %553 = vst.msk [vmem:[#allocation3] sm:$0xff] %vm552, 0.0
      %554 = vst.msk [vmem:[#allocation3 + $0x8] sm:$0xff] %vm552, 0.0
      %555 = vst.msk [vmem:[#allocation3 + $0x60] sm:$0xff] %vm552, 0.0
      %556 = vst.msk [vmem:[#allocation3 + $0x68] sm:$0xff] %vm552, 0.0
      %v557 = vld [vmem:[%s543] sm:$0xff]
      %v558 = vld [vmem:[%s543 + $0x8] sm:$0xff]
      %v559 = vld [vmem:[%s543 + $0x10] sm:$0xff]
      %v560 = vld [vmem:[%s543 + $0x18] sm:$0xff]
      %v561 = vld [vmem:[%s543 + $0x20] sm:$0xff]
      %v562 = vld [vmem:[%s543 + $0x28] sm:$0xff]
      %v563 = vld [vmem:[%s543 + $0x30] sm:$0xff]
      %v564 = vld [vmem:[%s543 + $0x38] sm:$0xff]
      %v565 = vld [vmem:[%s543 + $0x40] sm:$0xff]
      %v566 = vld [vmem:[%s543 + $0x48] sm:$0xff]
      %v567 = vld [vmem:[%s543 + $0x50] sm:$0xff]
      %v568 = vld [vmem:[%s543 + $0x58] sm:$0xff]
      %v569 = vld [vmem:[%s543 + $0x60] sm:$0xf]
      %v570 = vld [vmem:[%s3] sm:$0xff]
      %v571 = vld [vmem:[%s3 + $0x8] sm:$0xff]
      %v572 = vld [vmem:[%s3 + $0x10] sm:$0xff]
      %v573 = vld [vmem:[%s3 + $0x18] sm:$0xff]
      %v574 = vld [vmem:[%s4] sm:$0xff]
      %v575 = vld [vmem:[%s4 + $0x8] sm:$0xff]
      %v576 = vld [vmem:[%s4 + $0x10] sm:$0xff]
      %v577 = vld [vmem:[%s4 + $0x18] sm:$0xff]
      %v578 = vld [vmem:[%s1] sm:$0x1]
      %v579 = vld [vmem:[%s2] sm:$0x1]
      %v580 = vsel %vm550, %v557, 0.0
      %v581 = vsel %vm550, %v558, 0.0
      %v582 = vadd.f32 %v580, %v581
      %v583 = vsel %vm550, %v559, 0.0
      %v584 = vadd.f32 %v582, %v583
      %v585 = vsel %vm550, %v560, 0.0
      %v586 = vadd.f32 %v584, %v585
      %v587 = vsel %vm550, %v561, 0.0
      %v588 = vadd.f32 %v586, %v587
      %v589 = vsel %vm550, %v562, 0.0
      %v590 = vadd.f32 %v588, %v589
      %v591 = vsel %vm550, %v563, 0.0
      %v592 = vadd.f32 %v590, %v591
      %v593 = vsel %vm550, %v564, 0.0
      %v594 = vadd.f32 %v592, %v593
      %v595 = vsel %vm550, %v565, 0.0
      %v596 = vadd.f32 %v594, %v595
      %v597 = vsel %vm550, %v566, 0.0
      %v598 = vadd.f32 %v596, %v597
      %v599 = vsel %vm550, %v567, 0.0
      %v600 = vadd.f32 %v598, %v599
      %v601 = vsel %vm550, %v568, 0.0
      %v602 = vadd.f32 %v600, %v601
      %vm603 = vcmask 257024
      %v604 = vsel %vm603, %v569, 0.0
      %v605 = vadd.f32 %v602, %v604
      %v606 = vrot.slane %v605, 4
      %v607 = vadd.f32 %v605, %v606
      %v608 = vrot.slane %v607, 2
      %v609 = vadd.f32 %v607, %v608
      %v610 = vrot.slane %v609, 1
      %v611 = vadd.f32 %v609, %v610
      %v612 = vmul.f32 %v557, %v557
      %v613 = vmul.f32 %v558, %v558
      %v614 = vmul.f32 %v559, %v559
      %v615 = vmul.f32 %v560, %v560
      %v616 = vmul.f32 %v561, %v561
      %v617 = vmul.f32 %v562, %v562
      %v618 = vmul.f32 %v563, %v563
      %v619 = vmul.f32 %v564, %v564
      %v620 = vmul.f32 %v565, %v565
      %v621 = vmul.f32 %v566, %v566
      %v622 = vmul.f32 %v567, %v567
      %v623 = vmul.f32 %v568, %v568
      %v624 = vmul.f32 %v569, %v569
      %v625 = vsel %vm550, %v612, 0.0
      %v626 = vsel %vm550, %v613, 0.0
      %v627 = vadd.f32 %v625, %v626
      %v628 = vsel %vm550, %v614, 0.0
      %v629 = vadd.f32 %v627, %v628
      %v630 = vsel %vm550, %v615, 0.0
      %v631 = vadd.f32 %v629, %v630
      %v632 = vsel %vm550, %v616, 0.0
      %v633 = vadd.f32 %v631, %v632
      %v634 = vsel %vm550, %v617, 0.0
      %v635 = vadd.f32 %v633, %v634
      %v636 = vsel %vm550, %v618, 0.0
      %v637 = vadd.f32 %v635, %v636
      %v638 = vsel %vm550, %v619, 0.0
      %v639 = vadd.f32 %v637, %v638
      %v640 = vsel %vm550, %v620, 0.0
      %v641 = vadd.f32 %v639, %v640
      %v642 = vsel %vm550, %v621, 0.0
      %v643 = vadd.f32 %v641, %v642
      %v644 = vsel %vm550, %v622, 0.0
      %v645 = vadd.f32 %v643, %v644
      %v646 = vsel %vm550, %v623, 0.0
      %v647 = vadd.f32 %v645, %v646
      %v648 = vsel %vm603, %v624, 0.0
      %v649 = vadd.f32 %v647, %v648
      %v650 = vrot.slane %v649, 4
      %v651 = vadd.f32 %v649, %v650
      %v652 = vrot.slane %v651, 2
      %v653 = vadd.f32 %v651, %v652
      %v654 = vrot.slane %v653, 1
      %v655 = vadd.f32 %v653, %v654
      %v657 = vsel %vm550, %v611, 0
      %659 = vmatprep.subr.mxu0 0.0
      %660 = vmatpush1.msra.mxu0 %v570
      %661 = vmatprep.subr.mxu0 0.0
      %662 = vmatpush1.msra.mxu0 %v571
      %663 = vmatprep.subr.mxu0 0.0
      %664 = vmatpush1.msra.mxu0 %v572
      %665 = vmatprep.subr.mxu0 0.0
      %666 = vmatpush1.msra.mxu0 %v573
      %667 = vmatprep.subr.mxu0 0.0
      %668 = vmatpush1.msra.mxu0 0.0
      %669 = vmatprep.subr.mxu0 0.0
      %670 = vmatpush1.msra.mxu0 0.0
      %671 = vmatprep.subr.mxu0 0.0
      %672 = vmatpush1.msra.mxu0 0.0
      %673 = vmatprep.subr.mxu0 0.0
      %674 = vmatpush1.msra.mxu0 0.0
      %675 = vmatprep.subr.mxu0 0.0
      %676 = vmatpush1.msra.mxu0 0.0
      %677 = vmatprep.subr.mxu0 0.0
      %678 = vmatpush1.msra.mxu0 0.0
      %679 = vmatprep.subr.mxu0 0.0
      %680 = vmatpush1.msra.mxu0 0.0
      %681 = vmatprep.subr.mxu0 0.0
      %682 = vmatpush1.msra.mxu0 0.0
      %683 = vmatprep.subr.mxu0 0.0
      %684 = vmatpush1.msra.mxu0 0.0
      %685 = vmatprep.subr.mxu0 0.0
      %686 = vmatpush1.msra.mxu0 0.0
      %687 = vmatprep.subr.mxu0 0.0
      %688 = vmatpush1.msra.mxu0 0.0
      %689 = vmatprep.subr.mxu0 0.0
      %690 = vmatpush1.msra.mxu0 0.0
      %691 = vmatprep.subr.mxu0 0.0
      %692 = vmatpush1.msra.mxu0 0.0
      %693 = vmatprep.subr.mxu0 0.0
      %694 = vmatpush1.msra.mxu0 0.0
      %695 = vmatprep.subr.mxu0 0.0
      %696 = vmatpush1.msra.mxu0 0.0
      %697 = vmatprep.subr.mxu0 0.0
      %698 = vmatpush1.msra.mxu0 0.0
      %699 = vmatprep.subr.mxu0 0.0
      %700 = vmatpush1.msra.mxu0 0.0
      %701 = vmatprep.subr.mxu0 0.0
      %702 = vmatpush1.msra.mxu0 0.0
      %703 = vmatprep.subr.mxu0 0.0
      %704 = vmatpush1.msra.mxu0 0.0
      %705 = vmatprep.subr.mxu0 0.0
      %706 = vmatpush1.msra.mxu0 0.0
      %707 = vmatprep.subr.mxu0 0.0
      %708 = vmatpush1.msra.mxu0 0.0
      %709 = vmatprep.subr.mxu0 0.0
      %710 = vmatpush1.msra.mxu0 0.0
      %711 = vmatprep.subr.mxu0 0.0
      %712 = vmatpush1.msra.mxu0 0.0
      %713 = vmatprep.subr.mxu0 0.0
      %714 = vmatpush1.msra.mxu0 0.0
      %715 = vmatprep.subr.mxu0 0.0
      %716 = vmatpush1.msra.mxu0 0.0
      %717 = vmatprep.subr.mxu0 0.0
      %718 = vmatpush1.msra.mxu0 0.0
      %719 = vmatprep.subr.mxu0 0.0
      %720 = vmatpush1.msra.mxu0 0.0
      %721 = vmatprep.subr.mxu0 0.0
      %722 = vmatpush1.msra.mxu0 0.0
      %723 = vmatprep.mubr.f32.mxu0 0.0
      %724 = vmatmul.mubr.f32.gmra.mrb[0].mxu0 %v657
      %v725 = vpop.f32.mrb[0].mxu0
      %v726 = vadd.f32 0.0, %v725
      %v727 = vpop.f32.mrb[0].mxu0
      %728 = vdwg.mxu0
      %v730 = vsel %vm550, %v655, 0
      %732 = vmatprep.subr.mxu0 0.0
      %733 = vmatpush1.msra.mxu0 %v570
      %734 = vmatprep.subr.mxu0 0.0
      %735 = vmatpush1.msra.mxu0 %v571
      %736 = vmatprep.subr.mxu0 0.0
      %737 = vmatpush1.msra.mxu0 %v572
      %738 = vmatprep.subr.mxu0 0.0
      %739 = vmatpush1.msra.mxu0 %v573
      %740 = vmatprep.subr.mxu0 0.0
      %741 = vmatpush1.msra.mxu0 0.0
      %742 = vmatprep.subr.mxu0 0.0
      %743 = vmatpush1.msra.mxu0 0.0
      %744 = vmatprep.subr.mxu0 0.0
      %745 = vmatpush1.msra.mxu0 0.0
      %746 = vmatprep.subr.mxu0 0.0
      %747 = vmatpush1.msra.mxu0 0.0
      %748 = vmatprep.subr.mxu0 0.0
      %749 = vmatpush1.msra.mxu0 0.0
      %750 = vmatprep.subr.mxu0 0.0
      %751 = vmatpush1.msra.mxu0 0.0
      %752 = vmatprep.subr.mxu0 0.0
      %753 = vmatpush1.msra.mxu0 0.0
      %754 = vmatprep.subr.mxu0 0.0
      %755 = vmatpush1.msra.mxu0 0.0
      %756 = vmatprep.subr.mxu0 0.0
      %757 = vmatpush1.msra.mxu0 0.0
      %758 = vmatprep.subr.mxu0 0.0
      %759 = vmatpush1.msra.mxu0 0.0
      %760 = vmatprep.subr.mxu0 0.0
      %761 = vmatpush1.msra.mxu0 0.0
      %762 = vmatprep.subr.mxu0 0.0
      %763 = vmatpush1.msra.mxu0 0.0
      %764 = vmatprep.subr.mxu0 0.0
      %765 = vmatpush1.msra.mxu0 0.0
      %766 = vmatprep.subr.mxu0 0.0
      %767 = vmatpush1.msra.mxu0 0.0
      %768 = vmatprep.subr.mxu0 0.0
      %769 = vmatpush1.msra.mxu0 0.0
      %770 = vmatprep.subr.mxu0 0.0
      %771 = vmatpush1.msra.mxu0 0.0
      %772 = vmatprep.subr.mxu0 0.0
      %773 = vmatpush1.msra.mxu0 0.0
      %774 = vmatprep.subr.mxu0 0.0
      %775 = vmatpush1.msra.mxu0 0.0
      %776 = vmatprep.subr.mxu0 0.0
      %777 = vmatpush1.msra.mxu0 0.0
      %778 = vmatprep.subr.mxu0 0.0
      %779 = vmatpush1.msra.mxu0 0.0
      %780 = vmatprep.subr.mxu0 0.0
      %781 = vmatpush1.msra.mxu0 0.0
      %782 = vmatprep.subr.mxu0 0.0
      %783 = vmatpush1.msra.mxu0 0.0
      %784 = vmatprep.subr.mxu0 0.0
      %785 = vmatpush1.msra.mxu0 0.0
      %786 = vmatprep.subr.mxu0 0.0
      %787 = vmatpush1.msra.mxu0 0.0
      %788 = vmatprep.subr.mxu0 0.0
      %789 = vmatpush1.msra.mxu0 0.0
      %790 = vmatprep.subr.mxu0 0.0
      %791 = vmatpush1.msra.mxu0 0.0
      %792 = vmatprep.subr.mxu0 0.0
      %793 = vmatpush1.msra.mxu0 0.0
      %794 = vmatprep.subr.mxu0 0.0
      %795 = vmatpush1.msra.mxu0 0.0
      %796 = vmatprep.mubr.f32.mxu0 0.0
      %797 = vmatmul.mubr.f32.gmra.mrb[0].mxu0 %v730
      %v798 = vpop.f32.mrb[0].mxu0
      %v799 = vadd.f32 0.0, %v798
      %v800 = vpop.f32.mrb[0].mxu0
      %801 = vdwg.mxu0
      %v802 = vrcp.pop 64.0
      %v803 = vmul.f32 %v726, %v802
      %v804 = vmul.f32 %v799, %v802
      %v805 = vmul.f32 %v803, %v803
      %v806 = vsub.f32 %v804, %v805
      %v807 = vadd.f32 %v806, 1e-05
      %v808 = vrsqrt.pop %v807
      %v810 = vsel %vm550, %v803, 0
      %812 = vmatprep.subr.mxu0 0.0
      %813 = vmatpush1.msra.mxu0 %v574
      %814 = vmatprep.subr.mxu0 0.0
      %815 = vmatpush1.msra.mxu0 %v575
      %816 = vmatprep.subr.mxu0 0.0
      %817 = vmatpush1.msra.mxu0 %v576
      %818 = vmatprep.subr.mxu0 0.0
      %819 = vmatpush1.msra.mxu0 %v577
      %820 = vmatprep.subr.mxu0 0.0
      %821 = vmatpush1.msra.mxu0 0.0
      %822 = vmatprep.subr.mxu0 0.0
      %823 = vmatpush1.msra.mxu0 0.0
      %824 = vmatprep.subr.mxu0 0.0
      %825 = vmatpush1.msra.mxu0 0.0
      %826 = vmatprep.subr.mxu0 0.0
      %827 = vmatpush1.msra.mxu0 0.0
      %828 = vmatprep.subr.mxu0 0.0
      %829 = vmatpush1.msra.mxu0 0.0
      %830 = vmatprep.subr.mxu0 0.0
      %831 = vmatpush1.msra.mxu0 0.0
      %832 = vmatprep.subr.mxu0 0.0
      %833 = vmatpush1.msra.mxu0 0.0
      %834 = vmatprep.subr.mxu0 0.0
      %835 = vmatpush1.msra.mxu0 0.0
      %836 = vmatprep.subr.mxu0 0.0
      %837 = vmatpush1.msra.mxu0 0.0
      %838 = vmatprep.subr.mxu0 0.0
      %839 = vmatpush1.msra.mxu0 0.0
      %840 = vmatprep.subr.mxu0 0.0
      %841 = vmatpush1.msra.mxu0 0.0
      %842 = vmatprep.subr.mxu0 0.0
      %843 = vmatpush1.msra.mxu0 0.0
      %844 = vmatprep.subr.mxu0 0.0
      %845 = vmatpush1.msra.mxu0 0.0
      %846 = vmatprep.subr.mxu0 0.0
      %847 = vmatpush1.msra.mxu0 0.0
      %848 = vmatprep.subr.mxu0 0.0
      %849 = vmatpush1.msra.mxu0 0.0
      %850 = vmatprep.subr.mxu0 0.0
      %851 = vmatpush1.msra.mxu0 0.0
      %852 = vmatprep.subr.mxu0 0.0
      %853 = vmatpush1.msra.mxu0 0.0
      %854 = vmatprep.subr.mxu0 0.0
      %855 = vmatpush1.msra.mxu0 0.0
      %856 = vmatprep.subr.mxu0 0.0
      %857 = vmatpush1.msra.mxu0 0.0
      %858 = vmatprep.subr.mxu0 0.0
      %859 = vmatpush1.msra.mxu0 0.0
      %860 = vmatprep.subr.mxu0 0.0
      %861 = vmatpush1.msra.mxu0 0.0
      %862 = vmatprep.subr.mxu0 0.0
      %863 = vmatpush1.msra.mxu0 0.0
      %864 = vmatprep.subr.mxu0 0.0
      %865 = vmatpush1.msra.mxu0 0.0
      %866 = vmatprep.subr.mxu0 0.0
      %867 = vmatpush1.msra.mxu0 0.0
      %868 = vmatprep.subr.mxu0 0.0
      %869 = vmatpush1.msra.mxu0 0.0
      %870 = vmatprep.subr.mxu0 0.0
      %871 = vmatpush1.msra.mxu0 0.0
      %872 = vmatprep.subr.mxu0 0.0
      %873 = vmatpush1.msra.mxu0 0.0
      %874 = vmatprep.subr.mxu0 0.0
      %875 = vmatpush1.msra.mxu0 0.0
      %876 = vmatprep.mubr.f32.mxu0 0.0
      %877 = vmatmul.mubr.f32.gmra.mrb[0].mxu0 %v810
      %v878 = vpop.f32.mrb[0].mxu0
      %v879 = vadd.f32 0.0, %v878
      %v880 = vpop.f32.mrb[0].mxu0
      %881 = vdwg.mxu0
      %v883 = vsel %vm550, %v808, 0
      %885 = vmatprep.subr.mxu0 0.0
      %886 = vmatpush1.msra.mxu0 %v574
      %887 = vmatprep.subr.mxu0 0.0
      %888 = vmatpush1.msra.mxu0 %v575
      %889 = vmatprep.subr.mxu0 0.0
      %890 = vmatpush1.msra.mxu0 %v576
      %891 = vmatprep.subr.mxu0 0.0
      %892 = vmatpush1.msra.mxu0 %v577
      %893 = vmatprep.subr.mxu0 0.0
      %894 = vmatpush1.msra.mxu0 0.0
      %895 = vmatprep.subr.mxu0 0.0
      %896 = vmatpush1.msra.mxu0 0.0
      %897 = vmatprep.subr.mxu0 0.0
      %898 = vmatpush1.msra.mxu0 0.0
      %899 = vmatprep.subr.mxu0 0.0
      %900 = vmatpush1.msra.mxu0 0.0
      %901 = vmatprep.subr.mxu0 0.0
      %902 = vmatpush1.msra.mxu0 0.0
      %903 = vmatprep.subr.mxu0 0.0
      %904 = vmatpush1.msra.mxu0 0.0
      %905 = vmatprep.subr.mxu0 0.0
      %906 = vmatpush1.msra.mxu0 0.0
      %907 = vmatprep.subr.mxu0 0.0
      %908 = vmatpush1.msra.mxu0 0.0
      %909 = vmatprep.subr.mxu0 0.0
      %910 = vmatpush1.msra.mxu0 0.0
      %911 = vmatprep.subr.mxu0 0.0
      %912 = vmatpush1.msra.mxu0 0.0
      %913 = vmatprep.subr.mxu0 0.0
      %914 = vmatpush1.msra.mxu0 0.0
      %915 = vmatprep.subr.mxu0 0.0
      %916 = vmatpush1.msra.mxu0 0.0
      %917 = vmatprep.subr.mxu0 0.0
      %918 = vmatpush1.msra.mxu0 0.0
      %919 = vmatprep.subr.mxu0 0.0
      %920 = vmatpush1.msra.mxu0 0.0
      %921 = vmatprep.subr.mxu0 0.0
      %922 = vmatpush1.msra.mxu0 0.0
      %923 = vmatprep.subr.mxu0 0.0
      %924 = vmatpush1.msra.mxu0 0.0
      %925 = vmatprep.subr.mxu0 0.0
      %926 = vmatpush1.msra.mxu0 0.0
      %927 = vmatprep.subr.mxu0 0.0
      %928 = vmatpush1.msra.mxu0 0.0
      %929 = vmatprep.subr.mxu0 0.0
      %930 = vmatpush1.msra.mxu0 0.0
      %931 = vmatprep.subr.mxu0 0.0
      %932 = vmatpush1.msra.mxu0 0.0
      %933 = vmatprep.subr.mxu0 0.0
      %934 = vmatpush1.msra.mxu0 0.0
      %935 = vmatprep.subr.mxu0 0.0
      %936 = vmatpush1.msra.mxu0 0.0
      %937 = vmatprep.subr.mxu0 0.0
      %938 = vmatpush1.msra.mxu0 0.0
      %939 = vmatprep.subr.mxu0 0.0
      %940 = vmatpush1.msra.mxu0 0.0
      %941 = vmatprep.subr.mxu0 0.0
      %942 = vmatpush1.msra.mxu0 0.0
      %943 = vmatprep.subr.mxu0 0.0
      %944 = vmatpush1.msra.mxu0 0.0
      %945 = vmatprep.subr.mxu0 0.0
      %946 = vmatpush1.msra.mxu0 0.0
      %947 = vmatprep.subr.mxu0 0.0
      %948 = vmatpush1.msra.mxu0 0.0
      %949 = vmatprep.mubr.f32.mxu0 0.0
      %950 = vmatmul.mubr.f32.gmra.mrb[0].mxu0 %v883
      %v951 = vpop.f32.mrb[0].mxu0
      %v952 = vadd.f32 0.0, %v951
      %v953 = vpop.f32.mrb[0].mxu0
      %954 = vdwg.mxu0
      %v955 = vlaneseq
      %v956 = vshrl.u32 %v955, 7
      %v957 = vsub.s32 0, %v956
      %v958 = vrot.slane %v879, %v957
      %v959 = vsub.f32 %v557, %v958
      %v960 = vsub.f32 %v558, %v958
      %v961 = vsub.f32 %v559, %v958
      %v962 = vsub.f32 %v560, %v958
      %v963 = vsub.f32 %v561, %v958
      %v964 = vsub.f32 %v562, %v958
      %v965 = vsub.f32 %v563, %v958
      %v966 = vsub.f32 %v564, %v958
      %v967 = vsub.f32 %v565, %v958
      %v968 = vsub.f32 %v566, %v958
      %v969 = vsub.f32 %v567, %v958
      %v970 = vsub.f32 %v568, %v958
      %v971 = vsub.f32 %v569, %v958
      %v972 = vlaneseq
      %v973 = vshrl.u32 %v972, 7
      %v974 = vsub.s32 0, %v973
      %v975 = vrot.slane %v952, %v974
      %v976 = vmul.f32 %v959, %v975
      %v977 = vmul.f32 %v960, %v975
      %v978 = vmul.f32 %v961, %v975
      %v979 = vmul.f32 %v962, %v975
      %v980 = vmul.f32 %v963, %v975
      %v981 = vmul.f32 %v964, %v975
      %v982 = vmul.f32 %v965, %v975
      %v983 = vmul.f32 %v966, %v975
      %v984 = vmul.f32 %v967, %v975
      %v985 = vmul.f32 %v968, %v975
      %v986 = vmul.f32 %v969, %v975
      %v987 = vmul.f32 %v970, %v975
      %v988 = vmul.f32 %v971, %v975
      %v990 = vlaneseq
      %v991 = vshrl.u32 %v990, 7
      %v992 = vsub.s32 0, %v991
      %v993 = vrot.slane %v578, %v992
      %v995 = vmul.f32 %v976, %v993
      %v996 = vmul.f32 %v977, %v993
      %v997 = vmul.f32 %v978, %v993
      %v998 = vmul.f32 %v979, %v993
      %v999 = vmul.f32 %v980, %v993
      %v1000 = vmul.f32 %v981, %v993
      %v1001 = vmul.f32 %v982, %v993
      %v1002 = vmul.f32 %v983, %v993
      %v1003 = vmul.f32 %v984, %v993
      %v1004 = vmul.f32 %v985, %v993
      %v1005 = vmul.f32 %v986, %v993
      %v1006 = vmul.f32 %v987, %v993
      %v1007 = vmul.f32 %v988, %v993
      %v1009 = vlaneseq
      %v1010 = vshrl.u32 %v1009, 7
      %v1011 = vsub.s32 0, %v1010
      %v1012 = vrot.slane %v579, %v1011
      %v1014 = vadd.f32 %v995, %v1012
      %v1015 = vadd.f32 %v996, %v1012
      %v1016 = vadd.f32 %v997, %v1012
      %v1017 = vadd.f32 %v998, %v1012
      %v1018 = vadd.f32 %v999, %v1012
      %v1019 = vadd.f32 %v1000, %v1012
      %v1020 = vadd.f32 %v1001, %v1012
      %v1021 = vadd.f32 %v1002, %v1012
      %v1022 = vadd.f32 %v1003, %v1012
      %v1023 = vadd.f32 %v1004, %v1012
      %v1024 = vadd.f32 %v1005, %v1012
      %v1025 = vadd.f32 %v1006, %v1012
      %v1026 = vadd.f32 %v1007, %v1012
      %v1027 = vxor.u32 %v1014, 2147483648
      %v1028 = vxor.u32 %v1015, 2147483648
      %v1029 = vxor.u32 %v1016, 2147483648
      %v1030 = vxor.u32 %v1017, 2147483648
      %v1031 = vxor.u32 %v1018, 2147483648
      %v1032 = vxor.u32 %v1019, 2147483648
      %v1033 = vxor.u32 %v1020, 2147483648
      %v1034 = vxor.u32 %v1021, 2147483648
      %v1035 = vxor.u32 %v1022, 2147483648
      %v1036 = vxor.u32 %v1023, 2147483648
      %v1037 = vxor.u32 %v1024, 2147483648
      %v1038 = vxor.u32 %v1025, 2147483648
      %v1039 = vxor.u32 %v1026, 2147483648
      %v1040 = vmul.f32 %v1027, 1.442695
      %v1041 = vpow.pop %v1040
      %v1042 = vmul.f32 %v1028, 1.442695
      %v1043 = vpow.pop %v1042
      %v1044 = vmul.f32 %v1029, 1.442695
      %v1045 = vpow.pop %v1044
      %v1046 = vmul.f32 %v1030, 1.442695
      %v1047 = vpow.pop %v1046
      %v1048 = vmul.f32 %v1031, 1.442695
      %v1049 = vpow.pop %v1048
      %v1050 = vmul.f32 %v1032, 1.442695
      %v1051 = vpow.pop %v1050
      %v1052 = vmul.f32 %v1033, 1.442695
      %v1053 = vpow.pop %v1052
      %v1054 = vmul.f32 %v1034, 1.442695
      %v1055 = vpow.pop %v1054
      %v1056 = vmul.f32 %v1035, 1.442695
      %v1057 = vpow.pop %v1056
      %v1058 = vmul.f32 %v1036, 1.442695
      %v1059 = vpow.pop %v1058
      %v1060 = vmul.f32 %v1037, 1.442695
      %v1061 = vpow.pop %v1060
      %v1062 = vmul.f32 %v1038, 1.442695
      %v1063 = vpow.pop %v1062
      %v1064 = vmul.f32 %v1039, 1.442695
      %v1065 = vpow.pop %v1064
      %v1066 = vadd.f32 %v1041, 1.0
      %v1067 = vadd.f32 %v1043, 1.0
      %v1068 = vadd.f32 %v1045, 1.0
      %v1069 = vadd.f32 %v1047, 1.0
      %v1070 = vadd.f32 %v1049, 1.0
      %v1071 = vadd.f32 %v1051, 1.0
      %v1072 = vadd.f32 %v1053, 1.0
      %v1073 = vadd.f32 %v1055, 1.0
      %v1074 = vadd.f32 %v1057, 1.0
      %v1075 = vadd.f32 %v1059, 1.0
      %v1076 = vadd.f32 %v1061, 1.0
      %v1077 = vadd.f32 %v1063, 1.0
      %v1078 = vadd.f32 %v1065, 1.0
      %v1079 = vrcp.pop %v1066
      %v1080 = vmul.f32 1.0, %v1079
      %v1081 = vrcp.pop %v1067
      %v1082 = vmul.f32 1.0, %v1081
      %v1083 = vrcp.pop %v1068
      %v1084 = vmul.f32 1.0, %v1083
      %v1085 = vrcp.pop %v1069
      %v1086 = vmul.f32 1.0, %v1085
      %v1087 = vrcp.pop %v1070
      %v1088 = vmul.f32 1.0, %v1087
      %v1089 = vrcp.pop %v1071
      %v1090 = vmul.f32 1.0, %v1089
      %v1091 = vrcp.pop %v1072
      %v1092 = vmul.f32 1.0, %v1091
      %v1093 = vrcp.pop %v1073
      %v1094 = vmul.f32 1.0, %v1093
      %v1095 = vrcp.pop %v1074
      %v1096 = vmul.f32 1.0, %v1095
      %v1097 = vrcp.pop %v1075
      %v1098 = vmul.f32 1.0, %v1097
      %v1099 = vrcp.pop %v1076
      %v1100 = vmul.f32 1.0, %v1099
      %v1101 = vrcp.pop %v1077
      %v1102 = vmul.f32 1.0, %v1101
      %v1103 = vrcp.pop %v1078
      %v1104 = vmul.f32 1.0, %v1103
      %v1105 = vmul.f32 %v1014, %v1080
      %v1106 = vmul.f32 %v1015, %v1082
      %v1107 = vmul.f32 %v1016, %v1084
      %v1108 = vmul.f32 %v1017, %v1086
      %v1109 = vmul.f32 %v1018, %v1088
      %v1110 = vmul.f32 %v1019, %v1090
      %v1111 = vmul.f32 %v1020, %v1092
      %v1112 = vmul.f32 %v1021, %v1094
      %v1113 = vmul.f32 %v1022, %v1096
      %v1114 = vmul.f32 %v1023, %v1098
      %v1115 = vmul.f32 %v1024, %v1100
      %v1116 = vmul.f32 %v1025, %v1102
      %v1117 = vmul.f32 %v1026, %v1104
      %v1118 = vld [vmem:[%s15] sm:$0xff]
      %v1119 = vld [vmem:[%s15 + $0x8] sm:$0xff]
      %v1120 = vld [vmem:[%s15 + $0x10] sm:$0xff]
      %v1121 = vld [vmem:[%s15 + $0x18] sm:$0xff]
      %v1122 = vld [vmem:[%s15 + $0x20] sm:$0xff]
      %v1123 = vld [vmem:[%s15 + $0x28] sm:$0xff]
      %v1124 = vld [vmem:[%s15 + $0x30] sm:$0xff]
      %v1125 = vld [vmem:[%s15 + $0x38] sm:$0xff]
      %v1126 = vld [vmem:[%s15 + $0x40] sm:$0xff]
      %v1127 = vld [vmem:[%s15 + $0x48] sm:$0xff]
      %v1128 = vld [vmem:[%s15 + $0x50] sm:$0xff]
      %v1129 = vld [vmem:[%s15 + $0x58] sm:$0xff]
      %v1130 = vld [vmem:[%s15 + $0x60] sm:$0xf]
      %vm1131 = vcmp.gt.f32.partialorder %v1118, 0.0
      %vm1132 = vcmp.gt.f32.partialorder %v1119, 0.0
      %vm1133 = vcmp.gt.f32.partialorder %v1120, 0.0
      %vm1134 = vcmp.gt.f32.partialorder %v1121, 0.0
      %vm1135 = vcmp.gt.f32.partialorder %v1122, 0.0
      %vm1136 = vcmp.gt.f32.partialorder %v1123, 0.0
      %vm1137 = vcmp.gt.f32.partialorder %v1124, 0.0
      %vm1138 = vcmp.gt.f32.partialorder %v1125, 0.0
      %vm1139 = vcmp.gt.f32.partialorder %v1126, 0.0
      %vm1140 = vcmp.gt.f32.partialorder %v1127, 0.0
      %vm1141 = vcmp.gt.f32.partialorder %v1128, 0.0
      %vm1142 = vcmp.gt.f32.partialorder %v1129, 0.0
      %vm1143 = vcmp.gt.f32.partialorder %v1130, 0.0
      %v1144 = vsel %vm1131, 1, 0
      %v1145 = vsel %vm1132, 1, 0
      %v1146 = vsel %vm1133, 1, 0
      %v1147 = vsel %vm1134, 1, 0
      %v1148 = vsel %vm1135, 1, 0
      %v1149 = vsel %vm1136, 1, 0
      %v1150 = vsel %vm1137, 1, 0
      %v1151 = vsel %vm1138, 1, 0
      %v1152 = vsel %vm1139, 1, 0
      %v1153 = vsel %vm1140, 1, 0
      %v1154 = vsel %vm1141, 1, 0
      %v1155 = vsel %vm1142, 1, 0
      %v1156 = vsel %vm1143, 1, 0
      %1157 = vset.pattern.permute.xlu0 0
      %1158 = vperm.xlu0 %1157, %v1144
      %v1159 = vpop.permute.xlu0 %1158
      %1160 = vset.pattern.permute.xlu0 0
      %1161 = vperm.xlu0 %1160, %v1145
      %v1162 = vpop.permute.xlu0 %1161
      %1163 = vset.pattern.permute.xlu0 0
      %1164 = vperm.xlu0 %1163, %v1146
      %v1165 = vpop.permute.xlu0 %1164
      %1166 = vset.pattern.permute.xlu0 0
      %1167 = vperm.xlu0 %1166, %v1147
      %v1168 = vpop.permute.xlu0 %1167
      %1169 = vset.pattern.permute.xlu0 0
      %1170 = vperm.xlu0 %1169, %v1148
      %v1171 = vpop.permute.xlu0 %1170
      %1172 = vset.pattern.permute.xlu0 0
      %1173 = vperm.xlu0 %1172, %v1149
      %v1174 = vpop.permute.xlu0 %1173
      %1175 = vset.pattern.permute.xlu0 0
      %1176 = vperm.xlu0 %1175, %v1150
      %v1177 = vpop.permute.xlu0 %1176
      %1178 = vset.pattern.permute.xlu0 0
      %1179 = vperm.xlu0 %1178, %v1151
      %v1180 = vpop.permute.xlu0 %1179
      %1181 = vset.pattern.permute.xlu0 0
      %1182 = vperm.xlu0 %1181, %v1152
      %v1183 = vpop.permute.xlu0 %1182
      %1184 = vset.pattern.permute.xlu0 0
      %1185 = vperm.xlu0 %1184, %v1153
      %v1186 = vpop.permute.xlu0 %1185
      %1187 = vset.pattern.permute.xlu0 0
      %1188 = vperm.xlu0 %1187, %v1154
      %v1189 = vpop.permute.xlu0 %1188
      %1190 = vset.pattern.permute.xlu0 0
      %1191 = vperm.xlu0 %1190, %v1155
      %v1192 = vpop.permute.xlu0 %1191
      %1193 = vset.pattern.permute.xlu0 0
      %1194 = vperm.xlu0 %1193, %v1156
      %v1195 = vpop.permute.xlu0 %1194
      %vm1196 = vcmp.eq.s32.totalorder %v1159, 1
      %vm1197 = vcmp.eq.s32.totalorder %v1162, 1
      %vm1198 = vcmp.eq.s32.totalorder %v1165, 1
      %vm1199 = vcmp.eq.s32.totalorder %v1168, 1
      %vm1200 = vcmp.eq.s32.totalorder %v1171, 1
      %vm1201 = vcmp.eq.s32.totalorder %v1174, 1
      %vm1202 = vcmp.eq.s32.totalorder %v1177, 1
      %vm1203 = vcmp.eq.s32.totalorder %v1180, 1
      %vm1204 = vcmp.eq.s32.totalorder %v1183, 1
      %vm1205 = vcmp.eq.s32.totalorder %v1186, 1
      %vm1206 = vcmp.eq.s32.totalorder %v1189, 1
      %vm1207 = vcmp.eq.s32.totalorder %v1192, 1
      %vm1208 = vcmp.eq.s32.totalorder %v1195, 1
      %v1209 = vsel %vm1196, %v1105, 0.0
      %v1210 = vsel %vm1197, %v1106, 0.0
      %v1211 = vsel %vm1198, %v1107, 0.0
      %v1212 = vsel %vm1199, %v1108, 0.0
      %v1213 = vsel %vm1200, %v1109, 0.0
      %v1214 = vsel %vm1201, %v1110, 0.0
      %v1215 = vsel %vm1202, %v1111, 0.0
      %v1216 = vsel %vm1203, %v1112, 0.0
      %v1217 = vsel %vm1204, %v1113, 0.0
      %v1218 = vsel %vm1205, %v1114, 0.0
      %v1219 = vsel %vm1206, %v1115, 0.0
      %v1220 = vsel %vm1207, %v1116, 0.0
      %v1221 = vsel %vm1208, %v1117, 0.0
      %1222 = vst.msk [vmem:[#allocation2] sm:$0xff] %vm550, %v1209
      %1223 = vst.msk [vmem:[#allocation2 + $0x8] sm:$0xff] %vm550, %v1210
      %1224 = vst.msk [vmem:[#allocation2 + $0x10] sm:$0xff] %vm550, %v1211
      %1225 = vst.msk [vmem:[#allocation2 + $0x18] sm:$0xff] %vm550, %v1212
      %1226 = vst.msk [vmem:[#allocation2 + $0x20] sm:$0xff] %vm550, %v1213
      %1227 = vst.msk [vmem:[#allocation2 + $0x28] sm:$0xff] %vm550, %v1214
      %1228 = vst.msk [vmem:[#allocation2 + $0x30] sm:$0xff] %vm550, %v1215
      %1229 = vst.msk [vmem:[#allocation2 + $0x38] sm:$0xff] %vm550, %v1216
      %1230 = vst.msk [vmem:[#allocation2 + $0x40] sm:$0xff] %vm550, %v1217
      %1231 = vst.msk [vmem:[#allocation2 + $0x48] sm:$0xff] %vm550, %v1218
      %1232 = vst.msk [vmem:[#allocation2 + $0x50] sm:$0xff] %vm550, %v1219
      %1233 = vst.msk [vmem:[#allocation2 + $0x58] sm:$0xff] %vm550, %v1220
      %1234 = vst.msk [vmem:[#allocation2 + $0x60] sm:$0xf] %vm603, %v1221
      %v1235 = vld [vmem:[%s543 + $0xb] sm:$0xff]
      %v1236 = vld [vmem:[%s543 + $0x13] sm:$0xff]
      %v1237 = vld [vmem:[%s543 + $0x1b] sm:$0xff]
      %v1238 = vld [vmem:[%s543 + $0x23] sm:$0xff]
      %v1239 = vld [vmem:[%s543 + $0x2b] sm:$0xff]
      %v1240 = vld [vmem:[%s543 + $0x33] sm:$0xff]
      %v1241 = vld [vmem:[%s543 + $0x3b] sm:$0xff]
      %v1242 = vld [vmem:[%s543 + $0x43] sm:$0xff]
      %v1243 = vld [vmem:[%s543 + $0x4b] sm:$0xff]
      %v1244 = vld [vmem:[%s543 + $0x53] sm:$0xff]
      %v1245 = vpack.c.bf16 %v1236, %v1235
      %v1246 = vpack.c.bf16 %v1238, %v1237
      %v1247 = vpack.c.bf16 %v1240, %v1239
      %v1248 = vpack.c.bf16 %v1242, %v1241
      %v1249 = vpack.c.bf16 %v1244, %v1243
      %v1250 = vld [vmem:[%s13] sm:$0xf]
      %v1251 = vld [vmem:[%s13 + $0x4] sm:$0xf]
      %v1252 = vld [vmem:[%s13 + $0x8] sm:$0xf]
      %v1253 = vld [vmem:[%s13 + $0xc] sm:$0xf]
      %v1254 = vld [vmem:[%s14] sm:$0x1]
      %v1256 = vlaneseq
      %v1257 = vshrl.u32 %v1256, 7
      %v1258 = vsub.s32 0, %v1257
      %v1259 = vrot.slane %v1254, %v1258
      %v1265 = vunpack.c.l.b16 %v1250
      %v1266 = vunpack.c.l.b16 %v1251
      %v1267 = vunpack.c.l.b16 %v1252
      %v1268 = vunpack.c.l.b16 %v1253
      %v1269 = vpack.c.b16 %v1266, %v1265
      %v1270 = vpack.c.b16 %v1268, %v1267
      %v1274 = vsel %vm550, %v1245, 0
      %v1277 = vsel %vm550, %v1246, 0
      %v1280 = vsel %vm550, %v1247, 0
      %v1283 = vsel %vm550, %v1248, 0
      %v1286 = vsel %vm550, %v1249, 0
      %1288 = vmatprep.subr.bf16.mxu0 0
      %1289 = vmatpush1.bf16.msra.mxu0 %v1269
      %1290 = vmatprep.subr.bf16.mxu0 0
      %1291 = vmatpush1.bf16.msra.mxu0 %v1270
      %1292 = vmatprep.subr.bf16.mxu0 0
      %1293 = vmatpush1.bf16.msra.mxu0 0
      %1294 = vmatprep.subr.bf16.mxu0 0
      %1295 = vmatpush1.bf16.msra.mxu0 0
      %1296 = vmatprep.subr.bf16.mxu0 0
      %1297 = vmatpush1.bf16.msra.mxu0 0
      %1298 = vmatprep.subr.bf16.mxu0 0
      %1299 = vmatpush1.bf16.msra.mxu0 0
      %1300 = vmatprep.subr.bf16.mxu0 0
      %1301 = vmatpush1.bf16.msra.mxu0 0
      %1302 = vmatprep.subr.bf16.mxu0 0
      %1303 = vmatpush1.bf16.msra.mxu0 0
      %1304 = vmatprep.subr.bf16.mxu0 0
      %1305 = vmatpush1.bf16.msra.mxu0 0
      %1306 = vmatprep.subr.bf16.mxu0 0
      %1307 = vmatpush1.bf16.msra.mxu0 0
      %1308 = vmatprep.subr.bf16.mxu0 0
      %1309 = vmatpush1.bf16.msra.mxu0 0
      %1310 = vmatprep.subr.bf16.mxu0 0
      %1311 = vmatpush1.bf16.msra.mxu0 0
      %1312 = vmatprep.subr.bf16.mxu0 0
      %1313 = vmatpush1.bf16.msra.mxu0 0
      %1314 = vmatprep.subr.bf16.mxu0 0
      %1315 = vmatpush1.bf16.msra.mxu0 0
      %1316 = vmatprep.subr.bf16.mxu0 0
      %1317 = vmatpush1.bf16.msra.mxu0 0
      %1318 = vmatprep.subr.bf16.mxu0 0
      %1319 = vmatpush1.bf16.msra.mxu0 0
      %1320 = vmatprep.mubr.bf16.mxu0 0
      %1321 = vmatmul.mubr.bf16.gmra.mrb[0].mxu0 %v1274
      %v1322 = vpop.f32.mrb[0].mxu0
      %v1323 = vadd.f32 %v1259, %v1322
      %v1324 = vpop.f32.mrb[0].mxu0
      %v1325 = vpop.f32.mrb[0].mxu0
      %v1326 = vadd.f32 %v1259, %v1325
      %v1327 = vpop.f32.mrb[0].mxu0
      %1328 = vmatprep.mubr.bf16.mxu0 0
      %1329 = vmatmul.mubr.bf16.gmra.mrb[0].mxu0 %v1277
      %v1330 = vpop.f32.mrb[0].mxu0
      %v1331 = vadd.f32 %v1259, %v1330
      %v1332 = vpop.f32.mrb[0].mxu0
      %v1333 = vpop.f32.mrb[0].mxu0
      %v1334 = vadd.f32 %v1259, %v1333
      %v1335 = vpop.f32.mrb[0].mxu0
      %1336 = vmatprep.mubr.bf16.mxu0 0
      %1337 = vmatmul.mubr.bf16.gmra.mrb[0].mxu0 %v1280
      %v1338 = vpop.f32.mrb[0].mxu0
      %v1339 = vadd.f32 %v1259, %v1338
      %v1340 = vpop.f32.mrb[0].mxu0
      %v1341 = vpop.f32.mrb[0].mxu0
      %v1342 = vadd.f32 %v1259, %v1341
      %v1343 = vpop.f32.mrb[0].mxu0
      %1344 = vmatprep.mubr.bf16.mxu0 0
      %1345 = vmatmul.mubr.bf16.gmra.mrb[0].mxu0 %v1283
      %v1346 = vpop.f32.mrb[0].mxu0
      %v1347 = vadd.f32 %v1259, %v1346
      %v1348 = vpop.f32.mrb[0].mxu0
      %v1349 = vpop.f32.mrb[0].mxu0
      %v1350 = vadd.f32 %v1259, %v1349
      %v1351 = vpop.f32.mrb[0].mxu0
      %1352 = vmatprep.mubr.bf16.mxu0 0
      %1353 = vmatmul.mubr.bf16.gmra.mrb[0].mxu0 %v1286
      %v1354 = vpop.f32.mrb[0].mxu0
      %v1355 = vadd.f32 %v1259, %v1354
      %v1356 = vpop.f32.mrb[0].mxu0
      %v1357 = vpop.f32.mrb[0].mxu0
      %v1358 = vadd.f32 %v1259, %v1357
      %v1359 = vpop.f32.mrb[0].mxu0
      %1360 = vdwg.mxu0
      %v1361 = vld [vmem:[%s12] sm:$0x1]
      %v1363 = vlaneseq
      %v1364 = vshrl.u32 %v1363, 7
      %v1365 = vsub.s32 0, %v1364
      %v1366 = vrot.slane %v1361, %v1365
      %v1368 = vadd.f32 %v1323, %v1366
      %v1369 = vadd.f32 %v1326, %v1366
      %v1370 = vadd.f32 %v1331, %v1366
      %v1371 = vadd.f32 %v1334, %v1366
      %v1372 = vadd.f32 %v1339, %v1366
      %v1373 = vadd.f32 %v1342, %v1366
      %v1374 = vadd.f32 %v1347, %v1366
      %v1375 = vadd.f32 %v1350, %v1366
      %v1376 = vadd.f32 %v1355, %v1366
      %v1377 = vadd.f32 %v1358, %v1366
      %v1378 = vld [vmem:[%s6] sm:$0x1]
      %v1380 = vlaneseq
      %v1381 = vshrl.u32 %v1380, 7
      %v1382 = vsub.s32 0, %v1381
      %v1383 = vrot.slane %v1378, %v1382
      %v1385 = vld [vmem:[#allocation2] sm:$0xff]
      %v1386 = vld [vmem:[#allocation2 + $0x8] sm:$0xff]
      %v1387 = vld [vmem:[#allocation2 + $0x10] sm:$0xff]
      %v1388 = vld [vmem:[#allocation2 + $0x18] sm:$0xff]
      %v1389 = vld [vmem:[#allocation2 + $0x20] sm:$0xff]
      %v1390 = vld [vmem:[#allocation2 + $0x28] sm:$0xff]
      %v1391 = vld [vmem:[#allocation2 + $0x30] sm:$0xff]
      %v1392 = vld [vmem:[#allocation2 + $0x38] sm:$0xff]
      %v1393 = vld [vmem:[#allocation2 + $0x40] sm:$0xff]
      %v1394 = vld [vmem:[#allocation2 + $0x48] sm:$0xff]
      %v1395 = vpack.c.bf16 %v1386, %v1385
      %v1396 = vpack.c.bf16 %v1388, %v1387
      %v1397 = vpack.c.bf16 %v1390, %v1389
      %v1398 = vpack.c.bf16 %v1392, %v1391
      %v1399 = vpack.c.bf16 %v1394, %v1393
      %v1400 = vld [vmem:[%s5] sm:$0xf]
      %v1401 = vld [vmem:[%s5 + $0x4] sm:$0xf]
      %v1402 = vld [vmem:[%s5 + $0x8] sm:$0xf]
      %v1403 = vld [vmem:[%s5 + $0xc] sm:$0xf]
      %v1408 = vunpack.c.l.b16 %v1400
      %v1409 = vunpack.c.l.b16 %v1401
      %v1410 = vunpack.c.l.b16 %v1402
      %v1411 = vunpack.c.l.b16 %v1403
      %v1412 = vpack.c.b16 %v1409, %v1408
      %v1413 = vpack.c.b16 %v1411, %v1410
      %v1417 = vsel %vm550, %v1395, 0
      %v1420 = vsel %vm550, %v1396, 0
      %v1423 = vsel %vm550, %v1397, 0
      %v1426 = vsel %vm550, %v1398, 0
      %v1429 = vsel %vm550, %v1399, 0
      %1431 = vmatprep.subr.bf16.mxu0 0
      %1432 = vmatpush1.bf16.msra.mxu0 %v1412
      %1433 = vmatprep.subr.bf16.mxu0 0
      %1434 = vmatpush1.bf16.msra.mxu0 %v1413
      %1435 = vmatprep.subr.bf16.mxu0 0
      %1436 = vmatpush1.bf16.msra.mxu0 0
      %1437 = vmatprep.subr.bf16.mxu0 0
      %1438 = vmatpush1.bf16.msra.mxu0 0
      %1439 = vmatprep.subr.bf16.mxu0 0
      %1440 = vmatpush1.bf16.msra.mxu0 0
      %1441 = vmatprep.subr.bf16.mxu0 0
      %1442 = vmatpush1.bf16.msra.mxu0 0
      %1443 = vmatprep.subr.bf16.mxu0 0
      %1444 = vmatpush1.bf16.msra.mxu0 0
      %1445 = vmatprep.subr.bf16.mxu0 0
      %1446 = vmatpush1.bf16.msra.mxu0 0
      %1447 = vmatprep.subr.bf16.mxu0 0
      %1448 = vmatpush1.bf16.msra.mxu0 0
      %1449 = vmatprep.subr.bf16.mxu0 0
      %1450 = vmatpush1.bf16.msra.mxu0 0
      %1451 = vmatprep.subr.bf16.mxu0 0
      %1452 = vmatpush1.bf16.msra.mxu0 0
      %1453 = vmatprep.subr.bf16.mxu0 0
      %1454 = vmatpush1.bf16.msra.mxu0 0
      %1455 = vmatprep.subr.bf16.mxu0 0
      %1456 = vmatpush1.bf16.msra.mxu0 0
      %1457 = vmatprep.subr.bf16.mxu0 0
      %1458 = vmatpush1.bf16.msra.mxu0 0
      %1459 = vmatprep.subr.bf16.mxu0 0
      %1460 = vmatpush1.bf16.msra.mxu0 0
      %1461 = vmatprep.subr.bf16.mxu0 0
      %1462 = vmatpush1.bf16.msra.mxu0 0
      %1463 = vmatprep.mubr.bf16.mxu0 0
      %1464 = vmatmul.mubr.bf16.gmra.mrb[0].mxu0 %v1417
      %v1465 = vpop.f32.mrb[0].mxu0
      %v1466 = vadd.f32 0.0, %v1465
      %v1467 = vpop.f32.mrb[0].mxu0
      %v1468 = vpop.f32.mrb[0].mxu0
      %v1469 = vadd.f32 0.0, %v1468
      %v1470 = vpop.f32.mrb[0].mxu0
      %1471 = vmatprep.mubr.bf16.mxu0 0
      %1472 = vmatmul.mubr.bf16.gmra.mrb[0].mxu0 %v1420
      %v1473 = vpop.f32.mrb[0].mxu0
      %v1474 = vadd.f32 0.0, %v1473
      %v1475 = vpop.f32.mrb[0].mxu0
      %v1476 = vpop.f32.mrb[0].mxu0
      %v1477 = vadd.f32 0.0, %v1476
      %v1478 = vpop.f32.mrb[0].mxu0
      %1479 = vmatprep.mubr.bf16.mxu0 0
      %1480 = vmatmul.mubr.bf16.gmra.mrb[0].mxu0 %v1423
      %v1481 = vpop.f32.mrb[0].mxu0
      %v1482 = vadd.f32 0.0, %v1481
      %v1483 = vpop.f32.mrb[0].mxu0
      %v1484 = vpop.f32.mrb[0].mxu0
      %v1485 = vadd.f32 0.0, %v1484
      %v1486 = vpop.f32.mrb[0].mxu0
      %1487 = vmatprep.mubr.bf16.mxu0 0
      %1488 = vmatmul.mubr.bf16.gmra.mrb[0].mxu0 %v1426
      %v1489 = vpop.f32.mrb[0].mxu0
      %v1490 = vadd.f32 0.0, %v1489
      %v1491 = vpop.f32.mrb[0].mxu0
      %v1492 = vpop.f32.mrb[0].mxu0
      %v1493 = vadd.f32 0.0, %v1492
      %v1494 = vpop.f32.mrb[0].mxu0
      %1495 = vmatprep.mubr.bf16.mxu0 0
      %1496 = vmatmul.mubr.bf16.gmra.mrb[0].mxu0 %v1429
      %v1497 = vpop.f32.mrb[0].mxu0
      %v1498 = vadd.f32 0.0, %v1497
      %v1499 = vpop.f32.mrb[0].mxu0
      %v1500 = vpop.f32.mrb[0].mxu0
      %v1501 = vadd.f32 0.0, %v1500
      %v1502 = vpop.f32.mrb[0].mxu0
      %1503 = vdwg.mxu0
      %v1504 = vadd.f32 %v1383, %v1466
      %v1505 = vadd.f32 %v1383, %v1469
      %v1506 = vadd.f32 %v1383, %v1474
      %v1507 = vadd.f32 %v1383, %v1477
      %v1508 = vadd.f32 %v1383, %v1482
      %v1509 = vadd.f32 %v1383, %v1485
      %v1510 = vadd.f32 %v1383, %v1490
      %v1511 = vadd.f32 %v1383, %v1493
      %v1512 = vadd.f32 %v1383, %v1498
      %v1513 = vadd.f32 %v1383, %v1501
      %v1514 = vld [vmem:[#allocation2 + $0x1] sm:$0xff]
      %v1515 = vld [vmem:[#allocation2 + $0x9] sm:$0xff]
      %v1516 = vld [vmem:[#allocation2 + $0x11] sm:$0xff]
      %v1517 = vld [vmem:[#allocation2 + $0x19] sm:$0xff]
      %v1518 = vld [vmem:[#allocation2 + $0x21] sm:$0xff]
      %v1519 = vld [vmem:[#allocation2 + $0x29] sm:$0xff]
      %v1520 = vld [vmem:[#allocation2 + $0x31] sm:$0xff]
      %v1521 = vld [vmem:[#allocation2 + $0x39] sm:$0xff]
      %v1522 = vld [vmem:[#allocation2 + $0x41] sm:$0xff]
      %v1523 = vld [vmem:[#allocation2 + $0x49] sm:$0xff]
      %v1524 = vpack.c.bf16 %v1515, %v1514
      %v1525 = vpack.c.bf16 %v1517, %v1516
      %v1526 = vpack.c.bf16 %v1519, %v1518
      %v1527 = vpack.c.bf16 %v1521, %v1520
      %v1528 = vpack.c.bf16 %v1523, %v1522
      %s1529 = scalar_lea.vmem %s5, 16
      %v1530 = vld [vmem:[%s1529] sm:$0xf]
      %v1531 = vld [vmem:[%s1529 + $0x4] sm:$0xf]
      %v1532 = vld [vmem:[%s1529 + $0x8] sm:$0xf]
      %v1533 = vld [vmem:[%s1529 + $0xc] sm:$0xf]
      %v1538 = vunpack.c.l.b16 %v1530
      %v1539 = vunpack.c.l.b16 %v1531
      %v1540 = vunpack.c.l.b16 %v1532
      %v1541 = vunpack.c.l.b16 %v1533
      %v1542 = vpack.c.b16 %v1539, %v1538
      %v1543 = vpack.c.b16 %v1541, %v1540
      %v1547 = vsel %vm550, %v1524, 0
      %v1550 = vsel %vm550, %v1525, 0
      %v1553 = vsel %vm550, %v1526, 0
      %v1556 = vsel %vm550, %v1527, 0
      %v1559 = vsel %vm550, %v1528, 0
      %1561 = vmatprep.subr.bf16.mxu0 0
      %1562 = vmatpush1.bf16.msra.mxu0 %v1542
      %1563 = vmatprep.subr.bf16.mxu0 0
      %1564 = vmatpush1.bf16.msra.mxu0 %v1543
      %1565 = vmatprep.subr.bf16.mxu0 0
      %1566 = vmatpush1.bf16.msra.mxu0 0
      %1567 = vmatprep.subr.bf16.mxu0 0
      %1568 = vmatpush1.bf16.msra.mxu0 0
      %1569 = vmatprep.subr.bf16.mxu0 0
      %1570 = vmatpush1.bf16.msra.mxu0 0
      %1571 = vmatprep.subr.bf16.mxu0 0
      %1572 = vmatpush1.bf16.msra.mxu0 0
      %1573 = vmatprep.subr.bf16.mxu0 0
      %1574 = vmatpush1.bf16.msra.mxu0 0
      %1575 = vmatprep.subr.bf16.mxu0 0
      %1576 = vmatpush1.bf16.msra.mxu0 0
      %1577 = vmatprep.subr.bf16.mxu0 0
      %1578 = vmatpush1.bf16.msra.mxu0 0
      %1579 = vmatprep.subr.bf16.mxu0 0
      %1580 = vmatpush1.bf16.msra.mxu0 0
      %1581 = vmatprep.subr.bf16.mxu0 0
      %1582 = vmatpush1.bf16.msra.mxu0 0
      %1583 = vmatprep.subr.bf16.mxu0 0
      %1584 = vmatpush1.bf16.msra.mxu0 0
      %1585 = vmatprep.subr.bf16.mxu0 0
      %1586 = vmatpush1.bf16.msra.mxu0 0
      %1587 = vmatprep.subr.bf16.mxu0 0
      %1588 = vmatpush1.bf16.msra.mxu0 0
      %1589 = vmatprep.subr.bf16.mxu0 0
      %1590 = vmatpush1.bf16.msra.mxu0 0
      %1591 = vmatprep.subr.bf16.mxu0 0
      %1592 = vmatpush1.bf16.msra.mxu0 0
      %1593 = vmatprep.mubr.bf16.mxu0 0
      %1594 = vmatmul.mubr.bf16.gmra.mrb[0].mxu0 %v1547
      %v1595 = vpop.f32.mrb[0].mxu0
      %v1596 = vadd.f32 0.0, %v1595
      %v1597 = vpop.f32.mrb[0].mxu0
      %v1598 = vpop.f32.mrb[0].mxu0
      %v1599 = vadd.f32 0.0, %v1598
      %v1600 = vpop.f32.mrb[0].mxu0
      %1601 = vmatprep.mubr.bf16.mxu0 0
      %1602 = vmatmul.mubr.bf16.gmra.mrb[0].mxu0 %v1550
      %v1603 = vpop.f32.mrb[0].mxu0
      %v1604 = vadd.f32 0.0, %v1603
      %v1605 = vpop.f32.mrb[0].mxu0
      %v1606 = vpop.f32.mrb[0].mxu0
      %v1607 = vadd.f32 0.0, %v1606
      %v1608 = vpop.f32.mrb[0].mxu0
      %1609 = vmatprep.mubr.bf16.mxu0 0
      %1610 = vmatmul.mubr.bf16.gmra.mrb[0].mxu0 %v1553
      %v1611 = vpop.f32.mrb[0].mxu0
      %v1612 = vadd.f32 0.0, %v1611
      %v1613 = vpop.f32.mrb[0].mxu0
      %v1614 = vpop.f32.mrb[0].mxu0
      %v1615 = vadd.f32 0.0, %v1614
      %v1616 = vpop.f32.mrb[0].mxu0
      %1617 = vmatprep.mubr.bf16.mxu0 0
      %1618 = vmatmul.mubr.bf16.gmra.mrb[0].mxu0 %v1556
      %v1619 = vpop.f32.mrb[0].mxu0
      %v1620 = vadd.f32 0.0, %v1619
      %v1621 = vpop.f32.mrb[0].mxu0
      %v1622 = vpop.f32.mrb[0].mxu0
      %v1623 = vadd.f32 0.0, %v1622
      %v1624 = vpop.f32.mrb[0].mxu0
      %1625 = vmatprep.mubr.bf16.mxu0 0
      %1626 = vmatmul.mubr.bf16.gmra.mrb[0].mxu0 %v1559
      %v1627 = vpop.f32.mrb[0].mxu0
      %v1628 = vadd.f32 0.0, %v1627
      %v1629 = vpop.f32.mrb[0].mxu0
      %v1630 = vpop.f32.mrb[0].mxu0
      %v1631 = vadd.f32 0.0, %v1630
      %v1632 = vpop.f32.mrb[0].mxu0
      %1633 = vdwg.mxu0
      %v1634 = vadd.f32 %v1504, %v1596
      %v1635 = vadd.f32 %v1505, %v1599
      %v1636 = vadd.f32 %v1506, %v1604
      %v1637 = vadd.f32 %v1507, %v1607
      %v1638 = vadd.f32 %v1508, %v1612
      %v1639 = vadd.f32 %v1509, %v1615
      %v1640 = vadd.f32 %v1510, %v1620
      %v1641 = vadd.f32 %v1511, %v1623
      %v1642 = vadd.f32 %v1512, %v1628
      %v1643 = vadd.f32 %v1513, %v1631
      %v1644 = vld [vmem:[#allocation2 + $0x2] sm:$0xff]
      %v1645 = vld [vmem:[#allocation2 + $0xa] sm:$0xff]
      %v1646 = vld [vmem:[#allocation2 + $0x12] sm:$0xff]
      %v1647 = vld [vmem:[#allocation2 + $0x1a] sm:$0xff]
      %v1648 = vld [vmem:[#allocation2 + $0x22] sm:$0xff]
      %v1649 = vld [vmem:[#allocation2 + $0x2a] sm:$0xff]
      %v1650 = vld [vmem:[#allocation2 + $0x32] sm:$0xff]
      %v1651 = vld [vmem:[#allocation2 + $0x3a] sm:$0xff]
      %v1652 = vld [vmem:[#allocation2 + $0x42] sm:$0xff]
      %v1653 = vld [vmem:[#allocation2 + $0x4a] sm:$0xff]
      %v1654 = vpack.c.bf16 %v1645, %v1644
      %v1655 = vpack.c.bf16 %v1647, %v1646
      %v1656 = vpack.c.bf16 %v1649, %v1648
      %v1657 = vpack.c.bf16 %v1651, %v1650
      %v1658 = vpack.c.bf16 %v1653, %v1652
      %s1659 = scalar_lea.vmem %s5, 32
      %v1660 = vld [vmem:[%s1659] sm:$0xf]
      %v1661 = vld [vmem:[%s1659 + $0x4] sm:$0xf]
      %v1662 = vld [vmem:[%s1659 + $0x8] sm:$0xf]
      %v1663 = vld [vmem:[%s1659 + $0xc] sm:$0xf]
      %v1668 = vunpack.c.l.b16 %v1660
      %v1669 = vunpack.c.l.b16 %v1661
      %v1670 = vunpack.c.l.b16 %v1662
      %v1671 = vunpack.c.l.b16 %v1663
      %v1672 = vpack.c.b16 %v1669, %v1668
      %v1673 = vpack.c.b16 %v1671, %v1670
      %v1677 = vsel %vm550, %v1654, 0
      %v1680 = vsel %vm550, %v1655, 0
      %v1683 = vsel %vm550, %v1656, 0
      %v1686 = vsel %vm550, %v1657, 0
      %v1689 = vsel %vm550, %v1658, 0
      %1691 = vmatprep.subr.bf16.mxu0 0
      %1692 = vmatpush1.bf16.msra.mxu0 %v1672
      %1693 = vmatprep.subr.bf16.mxu0 0
      %1694 = vmatpush1.bf16.msra.mxu0 %v1673
      %1695 = vmatprep.subr.bf16.mxu0 0
      %1696 = vmatpush1.bf16.msra.mxu0 0
      %1697 = vmatprep.subr.bf16.mxu0 0
      %1698 = vmatpush1.bf16.msra.mxu0 0
      %1699 = vmatprep.subr.bf16.mxu0 0
      %1700 = vmatpush1.bf16.msra.mxu0 0
      %1701 = vmatprep.subr.bf16.mxu0 0
      %1702 = vmatpush1.bf16.msra.mxu0 0
      %1703 = vmatprep.subr.bf16.mxu0 0
      %1704 = vmatpush1.bf16.msra.mxu0 0
      %1705 = vmatprep.subr.bf16.mxu0 0
      %1706 = vmatpush1.bf16.msra.mxu0 0
      %1707 = vmatprep.subr.bf16.mxu0 0
      %1708 = vmatpush1.bf16.msra.mxu0 0
      %1709 = vmatprep.subr.bf16.mxu0 0
      %1710 = vmatpush1.bf16.msra.mxu0 0
      %1711 = vmatprep.subr.bf16.mxu0 0
      %1712 = vmatpush1.bf16.msra.mxu0 0
      %1713 = vmatprep.subr.bf16.mxu0 0
      %1714 = vmatpush1.bf16.msra.mxu0 0
      %1715 = vmatprep.subr.bf16.mxu0 0
      %1716 = vmatpush1.bf16.msra.mxu0 0
      %1717 = vmatprep.subr.bf16.mxu0 0
      %1718 = vmatpush1.bf16.msra.mxu0 0
      %1719 = vmatprep.subr.bf16.mxu0 0
      %1720 = vmatpush1.bf16.msra.mxu0 0
      %1721 = vmatprep.subr.bf16.mxu0 0
      %1722 = vmatpush1.bf16.msra.mxu0 0
      %1723 = vmatprep.mubr.bf16.mxu0 0
      %1724 = vmatmul.mubr.bf16.gmra.mrb[0].mxu0 %v1677
      %v1725 = vpop.f32.mrb[0].mxu0
      %v1726 = vadd.f32 0.0, %v1725
      %v1727 = vpop.f32.mrb[0].mxu0
      %v1728 = vpop.f32.mrb[0].mxu0
      %v1729 = vadd.f32 0.0, %v1728
      %v1730 = vpop.f32.mrb[0].mxu0
      %1731 = vmatprep.mubr.bf16.mxu0 0
      %1732 = vmatmul.mubr.bf16.gmra.mrb[0].mxu0 %v1680
      %v1733 = vpop.f32.mrb[0].mxu0
      %v1734 = vadd.f32 0.0, %v1733
      %v1735 = vpop.f32.mrb[0].mxu0
      %v1736 = vpop.f32.mrb[0].mxu0
      %v1737 = vadd.f32 0.0, %v1736
      %v1738 = vpop.f32.mrb[0].mxu0
      %1739 = vmatprep.mubr.bf16.mxu0 0
      %1740 = vmatmul.mubr.bf16.gmra.mrb[0].mxu0 %v1683
      %v1741 = vpop.f32.mrb[0].mxu0
      %v1742 = vadd.f32 0.0, %v1741
      %v1743 = vpop.f32.mrb[0].mxu0
      %v1744 = vpop.f32.mrb[0].mxu0
      %v1745 = vadd.f32 0.0, %v1744
      %v1746 = vpop.f32.mrb[0].mxu0
      %1747 = vmatprep.mubr.bf16.mxu0 0
      %1748 = vmatmul.mubr.bf16.gmra.mrb[0].mxu0 %v1686
      %v1749 = vpop.f32.mrb[0].mxu0
      %v1750 = vadd.f32 0.0, %v1749
      %v1751 = vpop.f32.mrb[0].mxu0
      %v1752 = vpop.f32.mrb[0].mxu0
      %v1753 = vadd.f32 0.0, %v1752
      %v1754 = vpop.f32.mrb[0].mxu0
      %1755 = vmatprep.mubr.bf16.mxu0 0
      %1756 = vmatmul.mubr.bf16.gmra.mrb[0].mxu0 %v1689
      %v1757 = vpop.f32.mrb[0].mxu0
      %v1758 = vadd.f32 0.0, %v1757
      %v1759 = vpop.f32.mrb[0].mxu0
      %v1760 = vpop.f32.mrb[0].mxu0
      %v1761 = vadd.f32 0.0, %v1760
      %v1762 = vpop.f32.mrb[0].mxu0
      %1763 = vdwg.mxu0
      %v1764 = vadd.f32 %v1634, %v1726
      %v1765 = vadd.f32 %v1635, %v1729
      %v1766 = vadd.f32 %v1636, %v1734
      %v1767 = vadd.f32 %v1637, %v1737
      %v1768 = vadd.f32 %v1638, %v1742
      %v1769 = vadd.f32 %v1639, %v1745
      %v1770 = vadd.f32 %v1640, %v1750
      %v1771 = vadd.f32 %v1641, %v1753
      %v1772 = vadd.f32 %v1642, %v1758
      %v1773 = vadd.f32 %v1643, %v1761
      %v1774 = vld [vmem:[#allocation2 + $0xa] sm:$0xff]
      %v1775 = vld [vmem:[#allocation2 + $0x12] sm:$0xff]
      %v1776 = vld [vmem:[#allocation2 + $0x1a] sm:$0xff]
      %v1777 = vld [vmem:[#allocation2 + $0x22] sm:$0xff]
      %v1778 = vld [vmem:[#allocation2 + $0x2a] sm:$0xff]
      %v1779 = vld [vmem:[#allocation2 + $0x32] sm:$0xff]
      %v1780 = vld [vmem:[#allocation2 + $0x3a] sm:$0xff]
      %v1781 = vld [vmem:[#allocation2 + $0x42] sm:$0xff]
      %v1782 = vld [vmem:[#allocation2 + $0x4a] sm:$0xff]
      %v1783 = vld [vmem:[#allocation2 + $0x52] sm:$0xff]
      %v1784 = vpack.c.bf16 %v1775, %v1774
      %v1785 = vpack.c.bf16 %v1777, %v1776
      %v1786 = vpack.c.bf16 %v1779, %v1778
      %v1787 = vpack.c.bf16 %v1781, %v1780
      %v1788 = vpack.c.bf16 %v1783, %v1782
      %s1789 = scalar_lea.vmem %s5, 48
      %v1790 = vld [vmem:[%s1789] sm:$0xf]
      %v1791 = vld [vmem:[%s1789 + $0x4] sm:$0xf]
      %v1792 = vld [vmem:[%s1789 + $0x8] sm:$0xf]
      %v1793 = vld [vmem:[%s1789 + $0xc] sm:$0xf]
      %v1798 = vunpack.c.l.b16 %v1790
      %v1799 = vunpack.c.l.b16 %v1791
      %v1800 = vunpack.c.l.b16 %v1792
      %v1801 = vunpack.c.l.b16 %v1793
      %v1802 = vpack.c.b16 %v1799, %v1798
      %v1803 = vpack.c.b16 %v1801, %v1800
      %v1807 = vsel %vm550, %v1784, 0
      %v1810 = vsel %vm550, %v1785, 0
      %v1813 = vsel %vm550, %v1786, 0
      %v1816 = vsel %vm550, %v1787, 0
      %v1819 = vsel %vm550, %v1788, 0
      %1821 = vmatprep.subr.bf16.mxu0 0
      %1822 = vmatpush1.bf16.msra.mxu0 %v1802
      %1823 = vmatprep.subr.bf16.mxu0 0
      %1824 = vmatpush1.bf16.msra.mxu0 %v1803
      %1825 = vmatprep.subr.bf16.mxu0 0
      %1826 = vmatpush1.bf16.msra.mxu0 0
      %1827 = vmatprep.subr.bf16.mxu0 0
      %1828 = vmatpush1.bf16.msra.mxu0 0
      %1829 = vmatprep.subr.bf16.mxu0 0
      %1830 = vmatpush1.bf16.msra.mxu0 0
      %1831 = vmatprep.subr.bf16.mxu0 0
      %1832 = vmatpush1.bf16.msra.mxu0 0
      %1833 = vmatprep.subr.bf16.mxu0 0
      %1834 = vmatpush1.bf16.msra.mxu0 0
      %1835 = vmatprep.subr.bf16.mxu0 0
      %1836 = vmatpush1.bf16.msra.mxu0 0
      %1837 = vmatprep.subr.bf16.mxu0 0
      %1838 = vmatpush1.bf16.msra.mxu0 0
      %1839 = vmatprep.subr.bf16.mxu0 0
      %1840 = vmatpush1.bf16.msra.mxu0 0
      %1841 = vmatprep.subr.bf16.mxu0 0
      %1842 = vmatpush1.bf16.msra.mxu0 0
      %1843 = vmatprep.subr.bf16.mxu0 0
      %1844 = vmatpush1.bf16.msra.mxu0 0
      %1845 = vmatprep.subr.bf16.mxu0 0
      %1846 = vmatpush1.bf16.msra.mxu0 0
      %1847 = vmatprep.subr.bf16.mxu0 0
      %1848 = vmatpush1.bf16.msra.mxu0 0
      %1849 = vmatprep.subr.bf16.mxu0 0
      %1850 = vmatpush1.bf16.msra.mxu0 0
      %1851 = vmatprep.subr.bf16.mxu0 0
      %1852 = vmatpush1.bf16.msra.mxu0 0
      %1853 = vmatprep.mubr.bf16.mxu0 0
      %1854 = vmatmul.mubr.bf16.gmra.mrb[0].mxu0 %v1807
      %v1855 = vpop.f32.mrb[0].mxu0
      %v1856 = vadd.f32 0.0, %v1855
      %v1857 = vpop.f32.mrb[0].mxu0
      %v1858 = vpop.f32.mrb[0].mxu0
      %v1859 = vadd.f32 0.0, %v1858
      %v1860 = vpop.f32.mrb[0].mxu0
      %1861 = vmatprep.mubr.bf16.mxu0 0
      %1862 = vmatmul.mubr.bf16.gmra.mrb[0].mxu0 %v1810
      %v1863 = vpop.f32.mrb[0].mxu0
      %v1864 = vadd.f32 0.0, %v1863
      %v1865 = vpop.f32.mrb[0].mxu0
      %v1866 = vpop.f32.mrb[0].mxu0
      %v1867 = vadd.f32 0.0, %v1866
      %v1868 = vpop.f32.mrb[0].mxu0
      %1869 = vmatprep.mubr.bf16.mxu0 0
      %1870 = vmatmul.mubr.bf16.gmra.mrb[0].mxu0 %v1813
      %v1871 = vpop.f32.mrb[0].mxu0
      %v1872 = vadd.f32 0.0, %v1871
      %v1873 = vpop.f32.mrb[0].mxu0
      %v1874 = vpop.f32.mrb[0].mxu0
      %v1875 = vadd.f32 0.0, %v1874
      %v1876 = vpop.f32.mrb[0].mxu0
      %1877 = vmatprep.mubr.bf16.mxu0 0
      %1878 = vmatmul.mubr.bf16.gmra.mrb[0].mxu0 %v1816
      %v1879 = vpop.f32.mrb[0].mxu0
      %v1880 = vadd.f32 0.0, %v1879
      %v1881 = vpop.f32.mrb[0].mxu0
      %v1882 = vpop.f32.mrb[0].mxu0
      %v1883 = vadd.f32 0.0, %v1882
      %v1884 = vpop.f32.mrb[0].mxu0
      %1885 = vmatprep.mubr.bf16.mxu0 0
      %1886 = vmatmul.mubr.bf16.gmra.mrb[0].mxu0 %v1819
      %v1887 = vpop.f32.mrb[0].mxu0
      %v1888 = vadd.f32 0.0, %v1887
      %v1889 = vpop.f32.mrb[0].mxu0
      %v1890 = vpop.f32.mrb[0].mxu0
      %v1891 = vadd.f32 0.0, %v1890
      %v1892 = vpop.f32.mrb[0].mxu0
      %1893 = vdwg.mxu0
      %v1894 = vadd.f32 %v1764, %v1856
      %v1895 = vadd.f32 %v1765, %v1859
      %v1896 = vadd.f32 %v1766, %v1864
      %v1897 = vadd.f32 %v1767, %v1867
      %v1898 = vadd.f32 %v1768, %v1872
      %v1899 = vadd.f32 %v1769, %v1875
      %v1900 = vadd.f32 %v1770, %v1880
      %v1901 = vadd.f32 %v1771, %v1883
      %v1902 = vadd.f32 %v1772, %v1888
      %v1903 = vadd.f32 %v1773, %v1891
      %v1904 = vld [vmem:[#allocation2 + $0xb] sm:$0xff]
      %v1905 = vld [vmem:[#allocation2 + $0x13] sm:$0xff]
      %v1906 = vld [vmem:[#allocation2 + $0x1b] sm:$0xff]
      %v1907 = vld [vmem:[#allocation2 + $0x23] sm:$0xff]
      %v1908 = vld [vmem:[#allocation2 + $0x2b] sm:$0xff]
      %v1909 = vld [vmem:[#allocation2 + $0x33] sm:$0xff]
      %v1910 = vld [vmem:[#allocation2 + $0x3b] sm:$0xff]
      %v1911 = vld [vmem:[#allocation2 + $0x43] sm:$0xff]
      %v1912 = vld [vmem:[#allocation2 + $0x4b] sm:$0xff]
      %v1913 = vld [vmem:[#allocation2 + $0x53] sm:$0xff]
      %v1914 = vpack.c.bf16 %v1905, %v1904
      %v1915 = vpack.c.bf16 %v1907, %v1906
      %v1916 = vpack.c.bf16 %v1909, %v1908
      %v1917 = vpack.c.bf16 %v1911, %v1910
      %v1918 = vpack.c.bf16 %v1913, %v1912
      %s1919 = scalar_lea.vmem %s5, 64
      %v1920 = vld [vmem:[%s1919] sm:$0xf]
      %v1921 = vld [vmem:[%s1919 + $0x4] sm:$0xf]
      %v1922 = vld [vmem:[%s1919 + $0x8] sm:$0xf]
      %v1923 = vld [vmem:[%s1919 + $0xc] sm:$0xf]
      %v1928 = vunpack.c.l.b16 %v1920
      %v1929 = vunpack.c.l.b16 %v1921
      %v1930 = vunpack.c.l.b16 %v1922
      %v1931 = vunpack.c.l.b16 %v1923
      %v1932 = vpack.c.b16 %v1929, %v1928
      %v1933 = vpack.c.b16 %v1931, %v1930
      %v1937 = vsel %vm550, %v1914, 0
      %v1940 = vsel %vm550, %v1915, 0
      %v1943 = vsel %vm550, %v1916, 0
      %v1946 = vsel %vm550, %v1917, 0
      %v1949 = vsel %vm550, %v1918, 0
      %1951 = vmatprep.subr.bf16.mxu0 0
      %1952 = vmatpush1.bf16.msra.mxu0 %v1932
      %1953 = vmatprep.subr.bf16.mxu0 0
      %1954 = vmatpush1.bf16.msra.mxu0 %v1933
      %1955 = vmatprep.subr.bf16.mxu0 0
      %1956 = vmatpush1.bf16.msra.mxu0 0
      %1957 = vmatprep.subr.bf16.mxu0 0
      %1958 = vmatpush1.bf16.msra.mxu0 0
      %1959 = vmatprep.subr.bf16.mxu0 0
      %1960 = vmatpush1.bf16.msra.mxu0 0
      %1961 = vmatprep.subr.bf16.mxu0 0
      %1962 = vmatpush1.bf16.msra.mxu0 0
      %1963 = vmatprep.subr.bf16.mxu0 0
      %1964 = vmatpush1.bf16.msra.mxu0 0
      %1965 = vmatprep.subr.bf16.mxu0 0
      %1966 = vmatpush1.bf16.msra.mxu0 0
      %1967 = vmatprep.subr.bf16.mxu0 0
      %1968 = vmatpush1.bf16.msra.mxu0 0
      %1969 = vmatprep.subr.bf16.mxu0 0
      %1970 = vmatpush1.bf16.msra.mxu0 0
      %1971 = vmatprep.subr.bf16.mxu0 0
      %1972 = vmatpush1.bf16.msra.mxu0 0
      %1973 = vmatprep.subr.bf16.mxu0 0
      %1974 = vmatpush1.bf16.msra.mxu0 0
      %1975 = vmatprep.subr.bf16.mxu0 0
      %1976 = vmatpush1.bf16.msra.mxu0 0
      %1977 = vmatprep.subr.bf16.mxu0 0
      %1978 = vmatpush1.bf16.msra.mxu0 0
      %1979 = vmatprep.subr.bf16.mxu0 0
      %1980 = vmatpush1.bf16.msra.mxu0 0
      %1981 = vmatprep.subr.bf16.mxu0 0
      %1982 = vmatpush1.bf16.msra.mxu0 0
      %1983 = vmatprep.mubr.bf16.mxu0 0
      %1984 = vmatmul.mubr.bf16.gmra.mrb[0].mxu0 %v1937
      %v1985 = vpop.f32.mrb[0].mxu0
      %v1986 = vadd.f32 0.0, %v1985
      %v1987 = vpop.f32.mrb[0].mxu0
      %v1988 = vpop.f32.mrb[0].mxu0
      %v1989 = vadd.f32 0.0, %v1988
      %v1990 = vpop.f32.mrb[0].mxu0
      %1991 = vmatprep.mubr.bf16.mxu0 0
      %1992 = vmatmul.mubr.bf16.gmra.mrb[0].mxu0 %v1940
      %v1993 = vpop.f32.mrb[0].mxu0
      %v1994 = vadd.f32 0.0, %v1993
      %v1995 = vpop.f32.mrb[0].mxu0
      %v1996 = vpop.f32.mrb[0].mxu0
      %v1997 = vadd.f32 0.0, %v1996
      %v1998 = vpop.f32.mrb[0].mxu0
      %1999 = vmatprep.mubr.bf16.mxu0 0
      %2000 = vmatmul.mubr.bf16.gmra.mrb[0].mxu0 %v1943
      %v2001 = vpop.f32.mrb[0].mxu0
      %v2002 = vadd.f32 0.0, %v2001
      %v2003 = vpop.f32.mrb[0].mxu0
      %v2004 = vpop.f32.mrb[0].mxu0
      %v2005 = vadd.f32 0.0, %v2004
      %v2006 = vpop.f32.mrb[0].mxu0
      %2007 = vmatprep.mubr.bf16.mxu0 0
      %2008 = vmatmul.mubr.bf16.gmra.mrb[0].mxu0 %v1946
      %v2009 = vpop.f32.mrb[0].mxu0
      %v2010 = vadd.f32 0.0, %v2009
      %v2011 = vpop.f32.mrb[0].mxu0
      %v2012 = vpop.f32.mrb[0].mxu0
      %v2013 = vadd.f32 0.0, %v2012
      %v2014 = vpop.f32.mrb[0].mxu0
      %2015 = vmatprep.mubr.bf16.mxu0 0
      %2016 = vmatmul.mubr.bf16.gmra.mrb[0].mxu0 %v1949
      %v2017 = vpop.f32.mrb[0].mxu0
      %v2018 = vadd.f32 0.0, %v2017
      %v2019 = vpop.f32.mrb[0].mxu0
      %v2020 = vpop.f32.mrb[0].mxu0
      %v2021 = vadd.f32 0.0, %v2020
      %v2022 = vpop.f32.mrb[0].mxu0
      %2023 = vdwg.mxu0
      %v2024 = vadd.f32 %v1894, %v1986
      %v2025 = vadd.f32 %v1895, %v1989
      %v2026 = vadd.f32 %v1896, %v1994
      %v2027 = vadd.f32 %v1897, %v1997
      %v2028 = vadd.f32 %v1898, %v2002
      %v2029 = vadd.f32 %v1899, %v2005
      %v2030 = vadd.f32 %v1900, %v2010
      %v2031 = vadd.f32 %v1901, %v2013
      %v2032 = vadd.f32 %v1902, %v2018
      %v2033 = vadd.f32 %v1903, %v2021
      %v2034 = vld [vmem:[#allocation2 + $0xc] sm:$0xff]
      %v2035 = vld [vmem:[#allocation2 + $0x14] sm:$0xff]
      %v2036 = vld [vmem:[#allocation2 + $0x1c] sm:$0xff]
      %v2037 = vld [vmem:[#allocation2 + $0x24] sm:$0xff]
      %v2038 = vld [vmem:[#allocation2 + $0x2c] sm:$0xff]
      %v2039 = vld [vmem:[#allocation2 + $0x34] sm:$0xff]
      %v2040 = vld [vmem:[#allocation2 + $0x3c] sm:$0xff]
      %v2041 = vld [vmem:[#allocation2 + $0x44] sm:$0xff]
      %v2042 = vld [vmem:[#allocation2 + $0x4c] sm:$0xff]
      %v2043 = vld [vmem:[#allocation2 + $0x54] sm:$0xff]
      %v2044 = vpack.c.bf16 %v2035, %v2034
      %v2045 = vpack.c.bf16 %v2037, %v2036
      %v2046 = vpack.c.bf16 %v2039, %v2038
      %v2047 = vpack.c.bf16 %v2041, %v2040
      %v2048 = vpack.c.bf16 %v2043, %v2042
      %s2049 = scalar_lea.vmem %s5, 80
      %v2050 = vld [vmem:[%s2049] sm:$0xf]
      %v2051 = vld [vmem:[%s2049 + $0x4] sm:$0xf]
      %v2052 = vld [vmem:[%s2049 + $0x8] sm:$0xf]
      %v2053 = vld [vmem:[%s2049 + $0xc] sm:$0xf]
      %v2058 = vunpack.c.l.b16 %v2050
      %v2059 = vunpack.c.l.b16 %v2051
      %v2060 = vunpack.c.l.b16 %v2052
      %v2061 = vunpack.c.l.b16 %v2053
      %v2062 = vpack.c.b16 %v2059, %v2058
      %v2063 = vpack.c.b16 %v2061, %v2060
      %v2067 = vsel %vm550, %v2044, 0
      %v2070 = vsel %vm550, %v2045, 0
      %v2073 = vsel %vm550, %v2046, 0
      %v2076 = vsel %vm550, %v2047, 0
      %v2079 = vsel %vm550, %v2048, 0
      %2081 = vmatprep.subr.bf16.mxu0 0
      %2082 = vmatpush1.bf16.msra.mxu0 %v2062
      %2083 = vmatprep.subr.bf16.mxu0 0
      %2084 = vmatpush1.bf16.msra.mxu0 %v2063
      %2085 = vmatprep.subr.bf16.mxu0 0
      %2086 = vmatpush1.bf16.msra.mxu0 0
      %2087 = vmatprep.subr.bf16.mxu0 0
      %2088 = vmatpush1.bf16.msra.mxu0 0
      %2089 = vmatprep.subr.bf16.mxu0 0
      %2090 = vmatpush1.bf16.msra.mxu0 0
      %2091 = vmatprep.subr.bf16.mxu0 0
      %2092 = vmatpush1.bf16.msra.mxu0 0
      %2093 = vmatprep.subr.bf16.mxu0 0
      %2094 = vmatpush1.bf16.msra.mxu0 0
      %2095 = vmatprep.subr.bf16.mxu0 0
      %2096 = vmatpush1.bf16.msra.mxu0 0
      %2097 = vmatprep.subr.bf16.mxu0 0
      %2098 = vmatpush1.bf16.msra.mxu0 0
      %2099 = vmatprep.subr.bf16.mxu0 0
      %2100 = vmatpush1.bf16.msra.mxu0 0
      %2101 = vmatprep.subr.bf16.mxu0 0
      %2102 = vmatpush1.bf16.msra.mxu0 0
      %2103 = vmatprep.subr.bf16.mxu0 0
      %2104 = vmatpush1.bf16.msra.mxu0 0
      %2105 = vmatprep.subr.bf16.mxu0 0
      %2106 = vmatpush1.bf16.msra.mxu0 0
      %2107 = vmatprep.subr.bf16.mxu0 0
      %2108 = vmatpush1.bf16.msra.mxu0 0
      %2109 = vmatprep.subr.bf16.mxu0 0
      %2110 = vmatpush1.bf16.msra.mxu0 0
      %2111 = vmatprep.subr.bf16.mxu0 0
      %2112 = vmatpush1.bf16.msra.mxu0 0
      %2113 = vmatprep.mubr.bf16.mxu0 0
      %2114 = vmatmul.mubr.bf16.gmra.mrb[0].mxu0 %v2067
      %v2115 = vpop.f32.mrb[0].mxu0
      %v2116 = vadd.f32 0.0, %v2115
      %v2117 = vpop.f32.mrb[0].mxu0
      %v2118 = vpop.f32.mrb[0].mxu0
      %v2119 = vadd.f32 0.0, %v2118
      %v2120 = vpop.f32.mrb[0].mxu0
      %2121 = vmatprep.mubr.bf16.mxu0 0
      %2122 = vmatmul.mubr.bf16.gmra.mrb[0].mxu0 %v2070
      %v2123 = vpop.f32.mrb[0].mxu0
      %v2124 = vadd.f32 0.0, %v2123
      %v2125 = vpop.f32.mrb[0].mxu0
      %v2126 = vpop.f32.mrb[0].mxu0
      %v2127 = vadd.f32 0.0, %v2126
      %v2128 = vpop.f32.mrb[0].mxu0
      %2129 = vmatprep.mubr.bf16.mxu0 0
      %2130 = vmatmul.mubr.bf16.gmra.mrb[0].mxu0 %v2073
      %v2131 = vpop.f32.mrb[0].mxu0
      %v2132 = vadd.f32 0.0, %v2131
      %v2133 = vpop.f32.mrb[0].mxu0
      %v2134 = vpop.f32.mrb[0].mxu0
      %v2135 = vadd.f32 0.0, %v2134
      %v2136 = vpop.f32.mrb[0].mxu0
      %2137 = vmatprep.mubr.bf16.mxu0 0
      %2138 = vmatmul.mubr.bf16.gmra.mrb[0].mxu0 %v2076
      %v2139 = vpop.f32.mrb[0].mxu0
      %v2140 = vadd.f32 0.0, %v2139
      %v2141 = vpop.f32.mrb[0].mxu0
      %v2142 = vpop.f32.mrb[0].mxu0
      %v2143 = vadd.f32 0.0, %v2142
      %v2144 = vpop.f32.mrb[0].mxu0
      %2145 = vmatprep.mubr.bf16.mxu0 0
      %2146 = vmatmul.mubr.bf16.gmra.mrb[0].mxu0 %v2079
      %v2147 = vpop.f32.mrb[0].mxu0
      %v2148 = vadd.f32 0.0, %v2147
      %v2149 = vpop.f32.mrb[0].mxu0
      %v2150 = vpop.f32.mrb[0].mxu0
      %v2151 = vadd.f32 0.0, %v2150
      %v2152 = vpop.f32.mrb[0].mxu0
      %2153 = vdwg.mxu0
      %v2154 = vadd.f32 %v2024, %v2116
      %v2155 = vadd.f32 %v2025, %v2119
      %v2156 = vadd.f32 %v2026, %v2124
      %v2157 = vadd.f32 %v2027, %v2127
      %v2158 = vadd.f32 %v2028, %v2132
      %v2159 = vadd.f32 %v2029, %v2135
      %v2160 = vadd.f32 %v2030, %v2140
      %v2161 = vadd.f32 %v2031, %v2143
      %v2162 = vadd.f32 %v2032, %v2148
      %v2163 = vadd.f32 %v2033, %v2151
      %v2164 = vld [vmem:[#allocation2 + $0x14] sm:$0xff]
      %v2165 = vld [vmem:[#allocation2 + $0x1c] sm:$0xff]
      %v2166 = vld [vmem:[#allocation2 + $0x24] sm:$0xff]
      %v2167 = vld [vmem:[#allocation2 + $0x2c] sm:$0xff]
      %v2168 = vld [vmem:[#allocation2 + $0x34] sm:$0xff]
      %v2169 = vld [vmem:[#allocation2 + $0x3c] sm:$0xff]
      %v2170 = vld [vmem:[#allocation2 + $0x44] sm:$0xff]
      %v2171 = vld [vmem:[#allocation2 + $0x4c] sm:$0xff]
      %v2172 = vld [vmem:[#allocation2 + $0x54] sm:$0xff]
      %v2173 = vld [vmem:[#allocation2 + $0x5c] sm:$0xff]
      %v2174 = vpack.c.bf16 %v2165, %v2164
      %v2175 = vpack.c.bf16 %v2167, %v2166
      %v2176 = vpack.c.bf16 %v2169, %v2168
      %v2177 = vpack.c.bf16 %v2171, %v2170
      %v2178 = vpack.c.bf16 %v2173, %v2172
      %s2179 = scalar_lea.vmem %s5, 96
      %v2180 = vld [vmem:[%s2179] sm:$0xf]
      %v2181 = vld [vmem:[%s2179 + $0x4] sm:$0xf]
      %v2182 = vld [vmem:[%s2179 + $0x8] sm:$0xf]
      %v2183 = vld [vmem:[%s2179 + $0xc] sm:$0xf]
      %v2188 = vunpack.c.l.b16 %v2180
      %v2189 = vunpack.c.l.b16 %v2181
      %v2190 = vunpack.c.l.b16 %v2182
      %v2191 = vunpack.c.l.b16 %v2183
      %v2192 = vpack.c.b16 %v2189, %v2188
      %v2193 = vpack.c.b16 %v2191, %v2190
      %v2197 = vsel %vm550, %v2174, 0
      %v2200 = vsel %vm550, %v2175, 0
      %v2203 = vsel %vm550, %v2176, 0
      %v2206 = vsel %vm550, %v2177, 0
      %v2209 = vsel %vm550, %v2178, 0
      %2211 = vmatprep.subr.bf16.mxu0 0
      %2212 = vmatpush1.bf16.msra.mxu0 %v2192
      %2213 = vmatprep.subr.bf16.mxu0 0
      %2214 = vmatpush1.bf16.msra.mxu0 %v2193
      %2215 = vmatprep.subr.bf16.mxu0 0
      %2216 = vmatpush1.bf16.msra.mxu0 0
      %2217 = vmatprep.subr.bf16.mxu0 0
      %2218 = vmatpush1.bf16.msra.mxu0 0
      %2219 = vmatprep.subr.bf16.mxu0 0
      %2220 = vmatpush1.bf16.msra.mxu0 0
      %2221 = vmatprep.subr.bf16.mxu0 0
      %2222 = vmatpush1.bf16.msra.mxu0 0
      %2223 = vmatprep.subr.bf16.mxu0 0
      %2224 = vmatpush1.bf16.msra.mxu0 0
      %2225 = vmatprep.subr.bf16.mxu0 0
      %2226 = vmatpush1.bf16.msra.mxu0 0
      %2227 = vmatprep.subr.bf16.mxu0 0
      %2228 = vmatpush1.bf16.msra.mxu0 0
      %2229 = vmatprep.subr.bf16.mxu0 0
      %2230 = vmatpush1.bf16.msra.mxu0 0
      %2231 = vmatprep.subr.bf16.mxu0 0
      %2232 = vmatpush1.bf16.msra.mxu0 0
      %2233 = vmatprep.subr.bf16.mxu0 0
      %2234 = vmatpush1.bf16.msra.mxu0 0
      %2235 = vmatprep.subr.bf16.mxu0 0
      %2236 = vmatpush1.bf16.msra.mxu0 0
      %2237 = vmatprep.subr.bf16.mxu0 0
      %2238 = vmatpush1.bf16.msra.mxu0 0
      %2239 = vmatprep.subr.bf16.mxu0 0
      %2240 = vmatpush1.bf16.msra.mxu0 0
      %2241 = vmatprep.subr.bf16.mxu0 0
      %2242 = vmatpush1.bf16.msra.mxu0 0
      %2243 = vmatprep.mubr.bf16.mxu0 0
      %2244 = vmatmul.mubr.bf16.gmra.mrb[0].mxu0 %v2197
      %v2245 = vpop.f32.mrb[0].mxu0
      %v2246 = vadd.f32 0.0, %v2245
      %v2247 = vpop.f32.mrb[0].mxu0
      %v2248 = vpop.f32.mrb[0].mxu0
      %v2249 = vadd.f32 0.0, %v2248
      %v2250 = vpop.f32.mrb[0].mxu0
      %2251 = vmatprep.mubr.bf16.mxu0 0
      %2252 = vmatmul.mubr.bf16.gmra.mrb[0].mxu0 %v2200
      %v2253 = vpop.f32.mrb[0].mxu0
      %v2254 = vadd.f32 0.0, %v2253
      %v2255 = vpop.f32.mrb[0].mxu0
      %v2256 = vpop.f32.mrb[0].mxu0
      %v2257 = vadd.f32 0.0, %v2256
      %v2258 = vpop.f32.mrb[0].mxu0
      %2259 = vmatprep.mubr.bf16.mxu0 0
      %2260 = vmatmul.mubr.bf16.gmra.mrb[0].mxu0 %v2203
      %v2261 = vpop.f32.mrb[0].mxu0
      %v2262 = vadd.f32 0.0, %v2261
      %v2263 = vpop.f32.mrb[0].mxu0
      %v2264 = vpop.f32.mrb[0].mxu0
      %v2265 = vadd.f32 0.0, %v2264
      %v2266 = vpop.f32.mrb[0].mxu0
      %2267 = vmatprep.mubr.bf16.mxu0 0
      %2268 = vmatmul.mubr.bf16.gmra.mrb[0].mxu0 %v2206
      %v2269 = vpop.f32.mrb[0].mxu0
      %v2270 = vadd.f32 0.0, %v2269
      %v2271 = vpop.f32.mrb[0].mxu0
      %v2272 = vpop.f32.mrb[0].mxu0
      %v2273 = vadd.f32 0.0, %v2272
      %v2274 = vpop.f32.mrb[0].mxu0
      %2275 = vmatprep.mubr.bf16.mxu0 0
      %2276 = vmatmul.mubr.bf16.gmra.mrb[0].mxu0 %v2209
      %v2277 = vpop.f32.mrb[0].mxu0
      %v2278 = vadd.f32 0.0, %v2277
      %v2279 = vpop.f32.mrb[0].mxu0
      %v2280 = vpop.f32.mrb[0].mxu0
      %v2281 = vadd.f32 0.0, %v2280
      %v2282 = vpop.f32.mrb[0].mxu0
      %2283 = vdwg.mxu0
      %v2284 = vadd.f32 %v2154, %v2246
      %v2285 = vadd.f32 %v2155, %v2249
      %v2286 = vadd.f32 %v2156, %v2254
      %v2287 = vadd.f32 %v2157, %v2257
      %v2288 = vadd.f32 %v2158, %v2262
      %v2289 = vadd.f32 %v2159, %v2265
      %v2290 = vadd.f32 %v2160, %v2270
      %v2291 = vadd.f32 %v2161, %v2273
      %v2292 = vadd.f32 %v2162, %v2278
      %v2293 = vadd.f32 %v2163, %v2281
      %v2294 = vld [vmem:[#allocation2 + $0x15] sm:$0xff]
      %v2295 = vld [vmem:[#allocation2 + $0x1d] sm:$0xff]
      %v2296 = vld [vmem:[#allocation2 + $0x25] sm:$0xff]
      %v2297 = vld [vmem:[#allocation2 + $0x2d] sm:$0xff]
      %v2298 = vld [vmem:[#allocation2 + $0x35] sm:$0xff]
      %v2299 = vld [vmem:[#allocation2 + $0x3d] sm:$0xff]
      %v2300 = vld [vmem:[#allocation2 + $0x45] sm:$0xff]
      %v2301 = vld [vmem:[#allocation2 + $0x4d] sm:$0xff]
      %v2302 = vld [vmem:[#allocation2 + $0x55] sm:$0xff]
      %v2303 = vld [vmem:[#allocation2 + $0x5d] sm:$0xff]
      %v2304 = vpack.c.bf16 %v2295, %v2294
      %v2305 = vpack.c.bf16 %v2297, %v2296
      %v2306 = vpack.c.bf16 %v2299, %v2298
      %v2307 = vpack.c.bf16 %v2301, %v2300
      %v2308 = vpack.c.bf16 %v2303, %v2302
      %s2309 = scalar_lea.vmem %s5, 112
      %v2310 = vld [vmem:[%s2309] sm:$0xf]
      %v2311 = vld [vmem:[%s2309 + $0x4] sm:$0xf]
      %v2312 = vld [vmem:[%s2309 + $0x8] sm:$0xf]
      %v2313 = vld [vmem:[%s2309 + $0xc] sm:$0xf]
      %v2318 = vunpack.c.l.b16 %v2310
      %v2319 = vunpack.c.l.b16 %v2311
      %v2320 = vunpack.c.l.b16 %v2312
      %v2321 = vunpack.c.l.b16 %v2313
      %v2322 = vpack.c.b16 %v2319, %v2318
      %v2323 = vpack.c.b16 %v2321, %v2320
      %v2327 = vsel %vm550, %v2304, 0
      %v2330 = vsel %vm550, %v2305, 0
      %v2333 = vsel %vm550, %v2306, 0
      %v2336 = vsel %vm550, %v2307, 0
      %v2339 = vsel %vm550, %v2308, 0
      %2341 = vmatprep.subr.bf16.mxu0 0
      %2342 = vmatpush1.bf16.msra.mxu0 %v2322
      %2343 = vmatprep.subr.bf16.mxu0 0
      %2344 = vmatpush1.bf16.msra.mxu0 %v2323
      %2345 = vmatprep.subr.bf16.mxu0 0
      %2346 = vmatpush1.bf16.msra.mxu0 0
      %2347 = vmatprep.subr.bf16.mxu0 0
      %2348 = vmatpush1.bf16.msra.mxu0 0
      %2349 = vmatprep.subr.bf16.mxu0 0
      %2350 = vmatpush1.bf16.msra.mxu0 0
      %2351 = vmatprep.subr.bf16.mxu0 0
      %2352 = vmatpush1.bf16.msra.mxu0 0
      %2353 = vmatprep.subr.bf16.mxu0 0
      %2354 = vmatpush1.bf16.msra.mxu0 0
      %2355 = vmatprep.subr.bf16.mxu0 0
      %2356 = vmatpush1.bf16.msra.mxu0 0
      %2357 = vmatprep.subr.bf16.mxu0 0
      %2358 = vmatpush1.bf16.msra.mxu0 0
      %2359 = vmatprep.subr.bf16.mxu0 0
      %2360 = vmatpush1.bf16.msra.mxu0 0
      %2361 = vmatprep.subr.bf16.mxu0 0
      %2362 = vmatpush1.bf16.msra.mxu0 0
      %2363 = vmatprep.subr.bf16.mxu0 0
      %2364 = vmatpush1.bf16.msra.mxu0 0
      %2365 = vmatprep.subr.bf16.mxu0 0
      %2366 = vmatpush1.bf16.msra.mxu0 0
      %2367 = vmatprep.subr.bf16.mxu0 0
      %2368 = vmatpush1.bf16.msra.mxu0 0
      %2369 = vmatprep.subr.bf16.mxu0 0
      %2370 = vmatpush1.bf16.msra.mxu0 0
      %2371 = vmatprep.subr.bf16.mxu0 0
      %2372 = vmatpush1.bf16.msra.mxu0 0
      %2373 = vmatprep.mubr.bf16.mxu0 0
      %2374 = vmatmul.mubr.bf16.gmra.mrb[0].mxu0 %v2327
      %v2375 = vpop.f32.mrb[0].mxu0
      %v2376 = vadd.f32 0.0, %v2375
      %v2377 = vpop.f32.mrb[0].mxu0
      %v2378 = vpop.f32.mrb[0].mxu0
      %v2379 = vadd.f32 0.0, %v2378
      %v2380 = vpop.f32.mrb[0].mxu0
      %2381 = vmatprep.mubr.bf16.mxu0 0
      %2382 = vmatmul.mubr.bf16.gmra.mrb[0].mxu0 %v2330
      %v2383 = vpop.f32.mrb[0].mxu0
      %v2384 = vadd.f32 0.0, %v2383
      %v2385 = vpop.f32.mrb[0].mxu0
      %v2386 = vpop.f32.mrb[0].mxu0
      %v2387 = vadd.f32 0.0, %v2386
      %v2388 = vpop.f32.mrb[0].mxu0
      %2389 = vmatprep.mubr.bf16.mxu0 0
      %2390 = vmatmul.mubr.bf16.gmra.mrb[0].mxu0 %v2333
      %v2391 = vpop.f32.mrb[0].mxu0
      %v2392 = vadd.f32 0.0, %v2391
      %v2393 = vpop.f32.mrb[0].mxu0
      %v2394 = vpop.f32.mrb[0].mxu0
      %v2395 = vadd.f32 0.0, %v2394
      %v2396 = vpop.f32.mrb[0].mxu0
      %2397 = vmatprep.mubr.bf16.mxu0 0
      %2398 = vmatmul.mubr.bf16.gmra.mrb[0].mxu0 %v2336
      %v2399 = vpop.f32.mrb[0].mxu0
      %v2400 = vadd.f32 0.0, %v2399
      %v2401 = vpop.f32.mrb[0].mxu0
      %v2402 = vpop.f32.mrb[0].mxu0
      %v2403 = vadd.f32 0.0, %v2402
      %v2404 = vpop.f32.mrb[0].mxu0
      %2405 = vmatprep.mubr.bf16.mxu0 0
      %2406 = vmatmul.mubr.bf16.gmra.mrb[0].mxu0 %v2339
      %v2407 = vpop.f32.mrb[0].mxu0
      %v2408 = vadd.f32 0.0, %v2407
      %v2409 = vpop.f32.mrb[0].mxu0
      %v2410 = vpop.f32.mrb[0].mxu0
      %v2411 = vadd.f32 0.0, %v2410
      %v2412 = vpop.f32.mrb[0].mxu0
      %2413 = vdwg.mxu0
      %v2414 = vadd.f32 %v2284, %v2376
      %v2415 = vadd.f32 %v2285, %v2379
      %v2416 = vadd.f32 %v2286, %v2384
      %v2417 = vadd.f32 %v2287, %v2387
      %v2418 = vadd.f32 %v2288, %v2392
      %v2419 = vadd.f32 %v2289, %v2395
      %v2420 = vadd.f32 %v2290, %v2400
      %v2421 = vadd.f32 %v2291, %v2403
      %v2422 = vadd.f32 %v2292, %v2408
      %v2423 = vadd.f32 %v2293, %v2411
      %v2424 = vld [vmem:[#allocation2 + $0x16] sm:$0xff]
      %v2425 = vld [vmem:[#allocation2 + $0x1e] sm:$0xff]
      %v2426 = vld [vmem:[#allocation2 + $0x26] sm:$0xff]
      %v2427 = vld [vmem:[#allocation2 + $0x2e] sm:$0xff]
      %v2428 = vld [vmem:[#allocation2 + $0x36] sm:$0xff]
      %v2429 = vld [vmem:[#allocation2 + $0x3e] sm:$0xff]
      %v2430 = vld [vmem:[#allocation2 + $0x46] sm:$0xff]
      %v2431 = vld [vmem:[#allocation2 + $0x4e] sm:$0xff]
      %v2432 = vld [vmem:[#allocation2 + $0x56] sm:$0xff]
      %v2433 = vld [vmem:[#allocation2 + $0x5e] sm:$0xff]
      %v2434 = vpack.c.bf16 %v2425, %v2424
      %v2435 = vpack.c.bf16 %v2427, %v2426
      %v2436 = vpack.c.bf16 %v2429, %v2428
      %v2437 = vpack.c.bf16 %v2431, %v2430
      %v2438 = vpack.c.bf16 %v2433, %v2432
      %s2439 = scalar_lea.vmem %s5, 128
      %v2440 = vld [vmem:[%s2439] sm:$0xf]
      %v2441 = vld [vmem:[%s2439 + $0x4] sm:$0xf]
      %v2442 = vld [vmem:[%s2439 + $0x8] sm:$0xf]
      %v2443 = vld [vmem:[%s2439 + $0xc] sm:$0xf]
      %v2448 = vunpack.c.l.b16 %v2440
      %v2449 = vunpack.c.l.b16 %v2441
      %v2450 = vunpack.c.l.b16 %v2442
      %v2451 = vunpack.c.l.b16 %v2443
      %v2452 = vpack.c.b16 %v2449, %v2448
      %v2453 = vpack.c.b16 %v2451, %v2450
      %v2457 = vsel %vm550, %v2434, 0
      %v2460 = vsel %vm550, %v2435, 0
      %v2463 = vsel %vm550, %v2436, 0
      %v2466 = vsel %vm550, %v2437, 0
      %v2469 = vsel %vm550, %v2438, 0
      %2471 = vmatprep.subr.bf16.mxu0 0
      %2472 = vmatpush1.bf16.msra.mxu0 %v2452
      %2473 = vmatprep.subr.bf16.mxu0 0
      %2474 = vmatpush1.bf16.msra.mxu0 %v2453
      %2475 = vmatprep.subr.bf16.mxu0 0
      %2476 = vmatpush1.bf16.msra.mxu0 0
      %2477 = vmatprep.subr.bf16.mxu0 0
      %2478 = vmatpush1.bf16.msra.mxu0 0
      %2479 = vmatprep.subr.bf16.mxu0 0
      %2480 = vmatpush1.bf16.msra.mxu0 0
      %2481 = vmatprep.subr.bf16.mxu0 0
      %2482 = vmatpush1.bf16.msra.mxu0 0
      %2483 = vmatprep.subr.bf16.mxu0 0
      %2484 = vmatpush1.bf16.msra.mxu0 0
      %2485 = vmatprep.subr.bf16.mxu0 0
      %2486 = vmatpush1.bf16.msra.mxu0 0
      %2487 = vmatprep.subr.bf16.mxu0 0
      %2488 = vmatpush1.bf16.msra.mxu0 0
      %2489 = vmatprep.subr.bf16.mxu0 0
      %2490 = vmatpush1.bf16.msra.mxu0 0
      %2491 = vmatprep.subr.bf16.mxu0 0
      %2492 = vmatpush1.bf16.msra.mxu0 0
      %2493 = vmatprep.subr.bf16.mxu0 0
      %2494 = vmatpush1.bf16.msra.mxu0 0
      %2495 = vmatprep.subr.bf16.mxu0 0
      %2496 = vmatpush1.bf16.msra.mxu0 0
      %2497 = vmatprep.subr.bf16.mxu0 0
      %2498 = vmatpush1.bf16.msra.mxu0 0
      %2499 = vmatprep.subr.bf16.mxu0 0
      %2500 = vmatpush1.bf16.msra.mxu0 0
      %2501 = vmatprep.subr.bf16.mxu0 0
      %2502 = vmatpush1.bf16.msra.mxu0 0
      %2503 = vmatprep.mubr.bf16.mxu0 0
      %2504 = vmatmul.mubr.bf16.gmra.mrb[0].mxu0 %v2457
      %v2505 = vpop.f32.mrb[0].mxu0
      %v2506 = vadd.f32 0.0, %v2505
      %v2507 = vpop.f32.mrb[0].mxu0
      %v2508 = vpop.f32.mrb[0].mxu0
      %v2509 = vadd.f32 0.0, %v2508
      %v2510 = vpop.f32.mrb[0].mxu0
      %2511 = vmatprep.mubr.bf16.mxu0 0
      %2512 = vmatmul.mubr.bf16.gmra.mrb[0].mxu0 %v2460
      %v2513 = vpop.f32.mrb[0].mxu0
      %v2514 = vadd.f32 0.0, %v2513
      %v2515 = vpop.f32.mrb[0].mxu0
      %v2516 = vpop.f32.mrb[0].mxu0
      %v2517 = vadd.f32 0.0, %v2516
      %v2518 = vpop.f32.mrb[0].mxu0
      %2519 = vmatprep.mubr.bf16.mxu0 0
      %2520 = vmatmul.mubr.bf16.gmra.mrb[0].mxu0 %v2463
      %v2521 = vpop.f32.mrb[0].mxu0
      %v2522 = vadd.f32 0.0, %v2521
      %v2523 = vpop.f32.mrb[0].mxu0
      %v2524 = vpop.f32.mrb[0].mxu0
      %v2525 = vadd.f32 0.0, %v2524
      %v2526 = vpop.f32.mrb[0].mxu0
      %2527 = vmatprep.mubr.bf16.mxu0 0
      %2528 = vmatmul.mubr.bf16.gmra.mrb[0].mxu0 %v2466
      %v2529 = vpop.f32.mrb[0].mxu0
      %v2530 = vadd.f32 0.0, %v2529
      %v2531 = vpop.f32.mrb[0].mxu0
      %v2532 = vpop.f32.mrb[0].mxu0
      %v2533 = vadd.f32 0.0, %v2532
      %v2534 = vpop.f32.mrb[0].mxu0
      %2535 = vmatprep.mubr.bf16.mxu0 0
      %2536 = vmatmul.mubr.bf16.gmra.mrb[0].mxu0 %v2469
      %v2537 = vpop.f32.mrb[0].mxu0
      %v2538 = vadd.f32 0.0, %v2537
      %v2539 = vpop.f32.mrb[0].mxu0
      %v2540 = vpop.f32.mrb[0].mxu0
      %v2541 = vadd.f32 0.0, %v2540
      %v2542 = vpop.f32.mrb[0].mxu0
      %2543 = vdwg.mxu0
      %v2544 = vadd.f32 %v2414, %v2506
      %v2545 = vadd.f32 %v2415, %v2509
      %v2546 = vadd.f32 %v2416, %v2514
      %v2547 = vadd.f32 %v2417, %v2517
      %v2548 = vadd.f32 %v2418, %v2522
      %v2549 = vadd.f32 %v2419, %v2525
      %v2550 = vadd.f32 %v2420, %v2530
      %v2551 = vadd.f32 %v2421, %v2533
      %v2552 = vadd.f32 %v2422, %v2538
      %v2553 = vadd.f32 %v2423, %v2541
      %v2554 = vld [vmem:[%s9] sm:$0xff]
      %v2555 = vld [vmem:[%s9 + $0x8] sm:$0xff]
      %v2556 = vld [vmem:[%s9 + $0x10] sm:$0xff]
      %v2557 = vld [vmem:[%s9 + $0x18] sm:$0xff]
      %v2558 = vld [vmem:[%s9 + $0x20] sm:$0xff]
      %v2559 = vld [vmem:[%s9 + $0x28] sm:$0xff]
      %v2560 = vld [vmem:[%s9 + $0x30] sm:$0xff]
      %v2561 = vld [vmem:[%s9 + $0x38] sm:$0xff]
      %v2562 = vld [vmem:[%s10] sm:$0xff]
      %v2563 = vld [vmem:[%s10 + $0x8] sm:$0xff]
      %v2564 = vld [vmem:[%s10 + $0x10] sm:$0xff]
      %v2565 = vld [vmem:[%s10 + $0x18] sm:$0xff]
      %v2566 = vld [vmem:[%s7] sm:$0x1]
      %v2567 = vld [vmem:[%s8] sm:$0x1]
      %v2568 = vld [vmem:[%s16] sm:$0xff]
      %v2569 = vld [vmem:[%s16 + $0x8] sm:$0xff]
      %v2570 = vld [vmem:[%s16 + $0x10] sm:$0xff]
      %v2571 = vld [vmem:[%s16 + $0x18] sm:$0xff]
      %v2572 = vld [vmem:[%s16 + $0x20] sm:$0xff]
      %v2573 = vld [vmem:[%s16 + $0x28] sm:$0xff]
      %v2574 = vld [vmem:[%s16 + $0x30] sm:$0xff]
      %v2575 = vld [vmem:[%s16 + $0x38] sm:$0xff]
      %v2576 = vld [vmem:[%s16 + $0x40] sm:$0xff]
      %v2577 = vld [vmem:[%s16 + $0x48] sm:$0xff]
      %vm2578 = vcmp.gt.f32.partialorder %v2568, 0.0
      %vm2579 = vcmp.gt.f32.partialorder %v2569, 0.0
      %vm2580 = vcmp.gt.f32.partialorder %v2570, 0.0
      %vm2581 = vcmp.gt.f32.partialorder %v2571, 0.0
      %vm2582 = vcmp.gt.f32.partialorder %v2572, 0.0
      %vm2583 = vcmp.gt.f32.partialorder %v2573, 0.0
      %vm2584 = vcmp.gt.f32.partialorder %v2574, 0.0
      %vm2585 = vcmp.gt.f32.partialorder %v2575, 0.0
      %vm2586 = vcmp.gt.f32.partialorder %v2576, 0.0
      %vm2587 = vcmp.gt.f32.partialorder %v2577, 0.0
      %v2588 = vsel %vm2578, 1, 0
      %v2589 = vsel %vm2579, 1, 0
      %v2590 = vsel %vm2580, 1, 0
      %v2591 = vsel %vm2581, 1, 0
      %v2592 = vsel %vm2582, 1, 0
      %v2593 = vsel %vm2583, 1, 0
      %v2594 = vsel %vm2584, 1, 0
      %v2595 = vsel %vm2585, 1, 0
      %v2596 = vsel %vm2586, 1, 0
      %v2597 = vsel %vm2587, 1, 0
      %2598 = vset.pattern.permute.xlu0 0
      %2599 = vperm.xlu0 %2598, %v2588
      %v2600 = vpop.permute.xlu0 %2599
      %2601 = vset.pattern.permute.xlu0 0
      %2602 = vperm.xlu0 %2601, %v2589
      %v2603 = vpop.permute.xlu0 %2602
      %2604 = vset.pattern.permute.xlu0 0
      %2605 = vperm.xlu0 %2604, %v2590
      %v2606 = vpop.permute.xlu0 %2605
      %2607 = vset.pattern.permute.xlu0 0
      %2608 = vperm.xlu0 %2607, %v2591
      %v2609 = vpop.permute.xlu0 %2608
      %2610 = vset.pattern.permute.xlu0 0
      %2611 = vperm.xlu0 %2610, %v2592
      %v2612 = vpop.permute.xlu0 %2611
      %2613 = vset.pattern.permute.xlu0 0
      %2614 = vperm.xlu0 %2613, %v2593
      %v2615 = vpop.permute.xlu0 %2614
      %2616 = vset.pattern.permute.xlu0 0
      %2617 = vperm.xlu0 %2616, %v2594
      %v2618 = vpop.permute.xlu0 %2617
      %2619 = vset.pattern.permute.xlu0 0
      %2620 = vperm.xlu0 %2619, %v2595
      %v2621 = vpop.permute.xlu0 %2620
      %2622 = vset.pattern.permute.xlu0 0
      %2623 = vperm.xlu0 %2622, %v2596
      %v2624 = vpop.permute.xlu0 %2623
      %2625 = vset.pattern.permute.xlu0 0
      %2626 = vperm.xlu0 %2625, %v2597
      %v2627 = vpop.permute.xlu0 %2626
      %vm2628 = vcmp.eq.s32.totalorder %v2600, 1
      %vm2629 = vcmp.eq.s32.totalorder %v2603, 1
      %vm2630 = vcmp.eq.s32.totalorder %v2606, 1
      %vm2631 = vcmp.eq.s32.totalorder %v2609, 1
      %vm2632 = vcmp.eq.s32.totalorder %v2612, 1
      %vm2633 = vcmp.eq.s32.totalorder %v2615, 1
      %vm2634 = vcmp.eq.s32.totalorder %v2618, 1
      %vm2635 = vcmp.eq.s32.totalorder %v2621, 1
      %vm2636 = vcmp.eq.s32.totalorder %v2624, 1
      %vm2637 = vcmp.eq.s32.totalorder %v2627, 1
      %v2638 = vsel %vm2628, %v2544, 0.0
      %v2639 = vsel %vm2629, %v2545, 0.0
      %v2640 = vsel %vm2630, %v2546, 0.0
      %v2641 = vsel %vm2631, %v2547, 0.0
      %v2642 = vsel %vm2632, %v2548, 0.0
      %v2643 = vsel %vm2633, %v2549, 0.0
      %v2644 = vsel %vm2634, %v2550, 0.0
      %v2645 = vsel %vm2635, %v2551, 0.0
      %v2646 = vsel %vm2636, %v2552, 0.0
      %v2647 = vsel %vm2637, %v2553, 0.0
      %v2648 = vsel %vm552, %v2638, 0.0
      %v2649 = vsel %vm552, %v2639, 0.0
      %v2650 = vadd.f32 %v2648, %v2649
      %v2651 = vsel %vm552, %v2640, 0.0
      %v2652 = vadd.f32 %v2650, %v2651
      %v2653 = vsel %vm552, %v2641, 0.0
      %v2654 = vadd.f32 %v2652, %v2653
      %v2655 = vsel %vm552, %v2642, 0.0
      %v2656 = vadd.f32 %v2654, %v2655
      %v2657 = vsel %vm552, %v2643, 0.0
      %v2658 = vadd.f32 %v2656, %v2657
      %v2659 = vsel %vm552, %v2644, 0.0
      %v2660 = vadd.f32 %v2658, %v2659
      %v2661 = vsel %vm552, %v2645, 0.0
      %v2662 = vadd.f32 %v2660, %v2661
      %v2663 = vsel %vm552, %v2646, 0.0
      %v2664 = vadd.f32 %v2662, %v2663
      %v2665 = vsel %vm552, %v2647, 0.0
      %v2666 = vadd.f32 %v2664, %v2665
      %v2667 = vrot.slane %v2666, 4
      %v2668 = vadd.f32 %v2666, %v2667
      %v2669 = vrot.slane %v2668, 2
      %v2670 = vadd.f32 %v2668, %v2669
      %v2671 = vrot.slane %v2670, 1
      %v2672 = vadd.f32 %v2670, %v2671
      %v2673 = vmul.f32 %v2638, %v2638
      %v2674 = vmul.f32 %v2639, %v2639
      %v2675 = vmul.f32 %v2640, %v2640
      %v2676 = vmul.f32 %v2641, %v2641
      %v2677 = vmul.f32 %v2642, %v2642
      %v2678 = vmul.f32 %v2643, %v2643
      %v2679 = vmul.f32 %v2644, %v2644
      %v2680 = vmul.f32 %v2645, %v2645
      %v2681 = vmul.f32 %v2646, %v2646
      %v2682 = vmul.f32 %v2647, %v2647
      %v2683 = vsel %vm552, %v2673, 0.0
      %v2684 = vsel %vm552, %v2674, 0.0
      %v2685 = vadd.f32 %v2683, %v2684
      %v2686 = vsel %vm552, %v2675, 0.0
      %v2687 = vadd.f32 %v2685, %v2686
      %v2688 = vsel %vm552, %v2676, 0.0
      %v2689 = vadd.f32 %v2687, %v2688
      %v2690 = vsel %vm552, %v2677, 0.0
      %v2691 = vadd.f32 %v2689, %v2690
      %v2692 = vsel %vm552, %v2678, 0.0
      %v2693 = vadd.f32 %v2691, %v2692
      %v2694 = vsel %vm552, %v2679, 0.0
      %v2695 = vadd.f32 %v2693, %v2694
      %v2696 = vsel %vm552, %v2680, 0.0
      %v2697 = vadd.f32 %v2695, %v2696
      %v2698 = vsel %vm552, %v2681, 0.0
      %v2699 = vadd.f32 %v2697, %v2698
      %v2700 = vsel %vm552, %v2682, 0.0
      %v2701 = vadd.f32 %v2699, %v2700
      %v2702 = vrot.slane %v2701, 4
      %v2703 = vadd.f32 %v2701, %v2702
      %v2704 = vrot.slane %v2703, 2
      %v2705 = vadd.f32 %v2703, %v2704
      %v2706 = vrot.slane %v2705, 1
      %v2707 = vadd.f32 %v2705, %v2706
      %v2709 = vsel %vm552, %v2672, 0
      %2711 = vmatprep.subr.mxu0 0.0
      %2712 = vmatpush1.msra.mxu0 %v2554
      %2713 = vmatprep.subr.mxu0 0.0
      %2714 = vmatpush1.msra.mxu0 %v2555
      %2715 = vmatprep.subr.mxu0 0.0
      %2716 = vmatpush1.msra.mxu0 %v2556
      %2717 = vmatprep.subr.mxu0 0.0
      %2718 = vmatpush1.msra.mxu0 %v2557
      %2719 = vmatprep.subr.mxu0 0.0
      %2720 = vmatpush1.msra.mxu0 %v2558
      %2721 = vmatprep.subr.mxu0 0.0
      %2722 = vmatpush1.msra.mxu0 %v2559
      %2723 = vmatprep.subr.mxu0 0.0
      %2724 = vmatpush1.msra.mxu0 %v2560
      %2725 = vmatprep.subr.mxu0 0.0
      %2726 = vmatpush1.msra.mxu0 %v2561
      %2727 = vmatprep.subr.mxu0 0.0
      %2728 = vmatpush1.msra.mxu0 0.0
      %2729 = vmatprep.subr.mxu0 0.0
      %2730 = vmatpush1.msra.mxu0 0.0
      %2731 = vmatprep.subr.mxu0 0.0
      %2732 = vmatpush1.msra.mxu0 0.0
      %2733 = vmatprep.subr.mxu0 0.0
      %2734 = vmatpush1.msra.mxu0 0.0
      %2735 = vmatprep.subr.mxu0 0.0
      %2736 = vmatpush1.msra.mxu0 0.0
      %2737 = vmatprep.subr.mxu0 0.0
      %2738 = vmatpush1.msra.mxu0 0.0
      %2739 = vmatprep.subr.mxu0 0.0
      %2740 = vmatpush1.msra.mxu0 0.0
      %2741 = vmatprep.subr.mxu0 0.0
      %2742 = vmatpush1.msra.mxu0 0.0
      %2743 = vmatprep.subr.mxu0 0.0
      %2744 = vmatpush1.msra.mxu0 0.0
      %2745 = vmatprep.subr.mxu0 0.0
      %2746 = vmatpush1.msra.mxu0 0.0
      %2747 = vmatprep.subr.mxu0 0.0
      %2748 = vmatpush1.msra.mxu0 0.0
      %2749 = vmatprep.subr.mxu0 0.0
      %2750 = vmatpush1.msra.mxu0 0.0
      %2751 = vmatprep.subr.mxu0 0.0
      %2752 = vmatpush1.msra.mxu0 0.0
      %2753 = vmatprep.subr.mxu0 0.0
      %2754 = vmatpush1.msra.mxu0 0.0
      %2755 = vmatprep.subr.mxu0 0.0
      %2756 = vmatpush1.msra.mxu0 0.0
      %2757 = vmatprep.subr.mxu0 0.0
      %2758 = vmatpush1.msra.mxu0 0.0
      %2759 = vmatprep.subr.mxu0 0.0
      %2760 = vmatpush1.msra.mxu0 0.0
      %2761 = vmatprep.subr.mxu0 0.0
      %2762 = vmatpush1.msra.mxu0 0.0
      %2763 = vmatprep.subr.mxu0 0.0
      %2764 = vmatpush1.msra.mxu0 0.0
      %2765 = vmatprep.subr.mxu0 0.0
      %2766 = vmatpush1.msra.mxu0 0.0
      %2767 = vmatprep.subr.mxu0 0.0
      %2768 = vmatpush1.msra.mxu0 0.0
      %2769 = vmatprep.subr.mxu0 0.0
      %2770 = vmatpush1.msra.mxu0 0.0
      %2771 = vmatprep.subr.mxu0 0.0
      %2772 = vmatpush1.msra.mxu0 0.0
      %2773 = vmatprep.subr.mxu0 0.0
      %2774 = vmatpush1.msra.mxu0 0.0
      %2775 = vmatprep.mubr.f32.mxu0 0.0
      %2776 = vmatmul.mubr.f32.gmra.mrb[0].mxu0 %v2709
      %v2777 = vpop.f32.mrb[0].mxu0
      %v2778 = vadd.f32 0.0, %v2777
      %v2779 = vpop.f32.mrb[0].mxu0
      %2780 = vdwg.mxu0
      %v2782 = vsel %vm552, %v2707, 0
      %2784 = vmatprep.subr.mxu0 0.0
      %2785 = vmatpush1.msra.mxu0 %v2554
      %2786 = vmatprep.subr.mxu0 0.0
      %2787 = vmatpush1.msra.mxu0 %v2555
      %2788 = vmatprep.subr.mxu0 0.0
      %2789 = vmatpush1.msra.mxu0 %v2556
      %2790 = vmatprep.subr.mxu0 0.0
      %2791 = vmatpush1.msra.mxu0 %v2557
      %2792 = vmatprep.subr.mxu0 0.0
      %2793 = vmatpush1.msra.mxu0 %v2558
      %2794 = vmatprep.subr.mxu0 0.0
      %2795 = vmatpush1.msra.mxu0 %v2559
      %2796 = vmatprep.subr.mxu0 0.0
      %2797 = vmatpush1.msra.mxu0 %v2560
      %2798 = vmatprep.subr.mxu0 0.0
      %2799 = vmatpush1.msra.mxu0 %v2561
      %2800 = vmatprep.subr.mxu0 0.0
      %2801 = vmatpush1.msra.mxu0 0.0
      %2802 = vmatprep.subr.mxu0 0.0
      %2803 = vmatpush1.msra.mxu0 0.0
      %2804 = vmatprep.subr.mxu0 0.0
      %2805 = vmatpush1.msra.mxu0 0.0
      %2806 = vmatprep.subr.mxu0 0.0
      %2807 = vmatpush1.msra.mxu0 0.0
      %2808 = vmatprep.subr.mxu0 0.0
      %2809 = vmatpush1.msra.mxu0 0.0
      %2810 = vmatprep.subr.mxu0 0.0
      %2811 = vmatpush1.msra.mxu0 0.0
      %2812 = vmatprep.subr.mxu0 0.0
      %2813 = vmatpush1.msra.mxu0 0.0
      %2814 = vmatprep.subr.mxu0 0.0
      %2815 = vmatpush1.msra.mxu0 0.0
      %2816 = vmatprep.subr.mxu0 0.0
      %2817 = vmatpush1.msra.mxu0 0.0
      %2818 = vmatprep.subr.mxu0 0.0
      %2819 = vmatpush1.msra.mxu0 0.0
      %2820 = vmatprep.subr.mxu0 0.0
      %2821 = vmatpush1.msra.mxu0 0.0
      %2822 = vmatprep.subr.mxu0 0.0
      %2823 = vmatpush1.msra.mxu0 0.0
      %2824 = vmatprep.subr.mxu0 0.0
      %2825 = vmatpush1.msra.mxu0 0.0
      %2826 = vmatprep.subr.mxu0 0.0
      %2827 = vmatpush1.msra.mxu0 0.0
      %2828 = vmatprep.subr.mxu0 0.0
      %2829 = vmatpush1.msra.mxu0 0.0
      %2830 = vmatprep.subr.mxu0 0.0
      %2831 = vmatpush1.msra.mxu0 0.0
      %2832 = vmatprep.subr.mxu0 0.0
      %2833 = vmatpush1.msra.mxu0 0.0
      %2834 = vmatprep.subr.mxu0 0.0
      %2835 = vmatpush1.msra.mxu0 0.0
      %2836 = vmatprep.subr.mxu0 0.0
      %2837 = vmatpush1.msra.mxu0 0.0
      %2838 = vmatprep.subr.mxu0 0.0
      %2839 = vmatpush1.msra.mxu0 0.0
      %2840 = vmatprep.subr.mxu0 0.0
      %2841 = vmatpush1.msra.mxu0 0.0
      %2842 = vmatprep.subr.mxu0 0.0
      %2843 = vmatpush1.msra.mxu0 0.0
      %2844 = vmatprep.subr.mxu0 0.0
      %2845 = vmatpush1.msra.mxu0 0.0
      %2846 = vmatprep.subr.mxu0 0.0
      %2847 = vmatpush1.msra.mxu0 0.0
      %2848 = vmatprep.mubr.f32.mxu0 0.0
      %2849 = vmatmul.mubr.f32.gmra.mrb[0].mxu0 %v2782
      %v2850 = vpop.f32.mrb[0].mxu0
      %v2851 = vadd.f32 0.0, %v2850
      %v2852 = vpop.f32.mrb[0].mxu0
      %2853 = vdwg.mxu0
      %v2854 = vrcp.pop 128.0
      %v2855 = vmul.f32 %v2778, %v2854
      %v2856 = vmul.f32 %v2851, %v2854
      %v2857 = vmul.f32 %v2855, %v2855
      %v2858 = vsub.f32 %v2856, %v2857
      %v2859 = vadd.f32 %v2858, 1e-05
      %v2860 = vrsqrt.pop %v2859
      %v2862 = vsel %vm550, %v2855, 0
      %2864 = vmatprep.subr.mxu0 0.0
      %2865 = vmatpush1.msra.mxu0 %v2562
      %2866 = vmatprep.subr.mxu0 0.0
      %2867 = vmatpush1.msra.mxu0 %v2563
      %2868 = vmatprep.subr.mxu0 0.0
      %2869 = vmatpush1.msra.mxu0 %v2564
      %2870 = vmatprep.subr.mxu0 0.0
      %2871 = vmatpush1.msra.mxu0 %v2565
      %2872 = vmatprep.subr.mxu0 0.0
      %2873 = vmatpush1.msra.mxu0 0.0
      %2874 = vmatprep.subr.mxu0 0.0
      %2875 = vmatpush1.msra.mxu0 0.0
      %2876 = vmatprep.subr.mxu0 0.0
      %2877 = vmatpush1.msra.mxu0 0.0
      %2878 = vmatprep.subr.mxu0 0.0
      %2879 = vmatpush1.msra.mxu0 0.0
      %2880 = vmatprep.subr.mxu0 0.0
      %2881 = vmatpush1.msra.mxu0 0.0
      %2882 = vmatprep.subr.mxu0 0.0
      %2883 = vmatpush1.msra.mxu0 0.0
      %2884 = vmatprep.subr.mxu0 0.0
      %2885 = vmatpush1.msra.mxu0 0.0
      %2886 = vmatprep.subr.mxu0 0.0
      %2887 = vmatpush1.msra.mxu0 0.0
      %2888 = vmatprep.subr.mxu0 0.0
      %2889 = vmatpush1.msra.mxu0 0.0
      %2890 = vmatprep.subr.mxu0 0.0
      %2891 = vmatpush1.msra.mxu0 0.0
      %2892 = vmatprep.subr.mxu0 0.0
      %2893 = vmatpush1.msra.mxu0 0.0
      %2894 = vmatprep.subr.mxu0 0.0
      %2895 = vmatpush1.msra.mxu0 0.0
      %2896 = vmatprep.subr.mxu0 0.0
      %2897 = vmatpush1.msra.mxu0 0.0
      %2898 = vmatprep.subr.mxu0 0.0
      %2899 = vmatpush1.msra.mxu0 0.0
      %2900 = vmatprep.subr.mxu0 0.0
      %2901 = vmatpush1.msra.mxu0 0.0
      %2902 = vmatprep.subr.mxu0 0.0
      %2903 = vmatpush1.msra.mxu0 0.0
      %2904 = vmatprep.subr.mxu0 0.0
      %2905 = vmatpush1.msra.mxu0 0.0
      %2906 = vmatprep.subr.mxu0 0.0
      %2907 = vmatpush1.msra.mxu0 0.0
      %2908 = vmatprep.subr.mxu0 0.0
      %2909 = vmatpush1.msra.mxu0 0.0
      %2910 = vmatprep.subr.mxu0 0.0
      %2911 = vmatpush1.msra.mxu0 0.0
      %2912 = vmatprep.subr.mxu0 0.0
      %2913 = vmatpush1.msra.mxu0 0.0
      %2914 = vmatprep.subr.mxu0 0.0
      %2915 = vmatpush1.msra.mxu0 0.0
      %2916 = vmatprep.subr.mxu0 0.0
      %2917 = vmatpush1.msra.mxu0 0.0
      %2918 = vmatprep.subr.mxu0 0.0
      %2919 = vmatpush1.msra.mxu0 0.0
      %2920 = vmatprep.subr.mxu0 0.0
      %2921 = vmatpush1.msra.mxu0 0.0
      %2922 = vmatprep.subr.mxu0 0.0
      %2923 = vmatpush1.msra.mxu0 0.0
      %2924 = vmatprep.subr.mxu0 0.0
      %2925 = vmatpush1.msra.mxu0 0.0
      %2926 = vmatprep.subr.mxu0 0.0
      %2927 = vmatpush1.msra.mxu0 0.0
      %2928 = vmatprep.mubr.f32.mxu0 0.0
      %2929 = vmatmul.mubr.f32.gmra.mrb[0].mxu0 %v2862
      %v2930 = vpop.f32.mrb[0].mxu0
      %v2931 = vadd.f32 0.0, %v2930
      %v2932 = vpop.f32.mrb[0].mxu0
      %2933 = vdwg.mxu0
      %v2935 = vsel %vm550, %v2860, 0
      %2937 = vmatprep.subr.mxu0 0.0
      %2938 = vmatpush1.msra.mxu0 %v2562
      %2939 = vmatprep.subr.mxu0 0.0
      %2940 = vmatpush1.msra.mxu0 %v2563
      %2941 = vmatprep.subr.mxu0 0.0
      %2942 = vmatpush1.msra.mxu0 %v2564
      %2943 = vmatprep.subr.mxu0 0.0
      %2944 = vmatpush1.msra.mxu0 %v2565
      %2945 = vmatprep.subr.mxu0 0.0
      %2946 = vmatpush1.msra.mxu0 0.0
      %2947 = vmatprep.subr.mxu0 0.0
      %2948 = vmatpush1.msra.mxu0 0.0
      %2949 = vmatprep.subr.mxu0 0.0
      %2950 = vmatpush1.msra.mxu0 0.0
      %2951 = vmatprep.subr.mxu0 0.0
      %2952 = vmatpush1.msra.mxu0 0.0
      %2953 = vmatprep.subr.mxu0 0.0
      %2954 = vmatpush1.msra.mxu0 0.0
      %2955 = vmatprep.subr.mxu0 0.0
      %2956 = vmatpush1.msra.mxu0 0.0
      %2957 = vmatprep.subr.mxu0 0.0
      %2958 = vmatpush1.msra.mxu0 0.0
      %2959 = vmatprep.subr.mxu0 0.0
      %2960 = vmatpush1.msra.mxu0 0.0
      %2961 = vmatprep.subr.mxu0 0.0
      %2962 = vmatpush1.msra.mxu0 0.0
      %2963 = vmatprep.subr.mxu0 0.0
      %2964 = vmatpush1.msra.mxu0 0.0
      %2965 = vmatprep.subr.mxu0 0.0
      %2966 = vmatpush1.msra.mxu0 0.0
      %2967 = vmatprep.subr.mxu0 0.0
      %2968 = vmatpush1.msra.mxu0 0.0
      %2969 = vmatprep.subr.mxu0 0.0
      %2970 = vmatpush1.msra.mxu0 0.0
      %2971 = vmatprep.subr.mxu0 0.0
      %2972 = vmatpush1.msra.mxu0 0.0
      %2973 = vmatprep.subr.mxu0 0.0
      %2974 = vmatpush1.msra.mxu0 0.0
      %2975 = vmatprep.subr.mxu0 0.0
      %2976 = vmatpush1.msra.mxu0 0.0
      %2977 = vmatprep.subr.mxu0 0.0
      %2978 = vmatpush1.msra.mxu0 0.0
      %2979 = vmatprep.subr.mxu0 0.0
      %2980 = vmatpush1.msra.mxu0 0.0
      %2981 = vmatprep.subr.mxu0 0.0
      %2982 = vmatpush1.msra.mxu0 0.0
      %2983 = vmatprep.subr.mxu0 0.0
      %2984 = vmatpush1.msra.mxu0 0.0
      %2985 = vmatprep.subr.mxu0 0.0
      %2986 = vmatpush1.msra.mxu0 0.0
      %2987 = vmatprep.subr.mxu0 0.0
      %2988 = vmatpush1.msra.mxu0 0.0
      %2989 = vmatprep.subr.mxu0 0.0
      %2990 = vmatpush1.msra.mxu0 0.0
      %2991 = vmatprep.subr.mxu0 0.0
      %2992 = vmatpush1.msra.mxu0 0.0
      %2993 = vmatprep.subr.mxu0 0.0
      %2994 = vmatpush1.msra.mxu0 0.0
      %2995 = vmatprep.subr.mxu0 0.0
      %2996 = vmatpush1.msra.mxu0 0.0
      %2997 = vmatprep.subr.mxu0 0.0
      %2998 = vmatpush1.msra.mxu0 0.0
      %2999 = vmatprep.subr.mxu0 0.0
      %3000 = vmatpush1.msra.mxu0 0.0
      %3001 = vmatprep.mubr.f32.mxu0 0.0
      %3002 = vmatmul.mubr.f32.gmra.mrb[0].mxu0 %v2935
      %v3003 = vpop.f32.mrb[0].mxu0
      %v3004 = vadd.f32 0.0, %v3003
      %v3005 = vpop.f32.mrb[0].mxu0
      %3006 = vdwg.mxu0
      %v3007 = vlaneseq
      %v3008 = vshrl.u32 %v3007, 7
      %v3009 = vsub.s32 0, %v3008
      %v3010 = vrot.slane %v2931, %v3009
      %v3011 = vsub.f32 %v2544, %v3010
      %v3012 = vsub.f32 %v2545, %v3010
      %v3013 = vsub.f32 %v2546, %v3010
      %v3014 = vsub.f32 %v2547, %v3010
      %v3015 = vsub.f32 %v2548, %v3010
      %v3016 = vsub.f32 %v2549, %v3010
      %v3017 = vsub.f32 %v2550, %v3010
      %v3018 = vsub.f32 %v2551, %v3010
      %v3019 = vsub.f32 %v2552, %v3010
      %v3020 = vsub.f32 %v2553, %v3010
      %v3021 = vlaneseq
      %v3022 = vshrl.u32 %v3021, 7
      %v3023 = vsub.s32 0, %v3022
      %v3024 = vrot.slane %v3004, %v3023
      %v3025 = vmul.f32 %v3011, %v3024
      %v3026 = vmul.f32 %v3012, %v3024
      %v3027 = vmul.f32 %v3013, %v3024
      %v3028 = vmul.f32 %v3014, %v3024
      %v3029 = vmul.f32 %v3015, %v3024
      %v3030 = vmul.f32 %v3016, %v3024
      %v3031 = vmul.f32 %v3017, %v3024
      %v3032 = vmul.f32 %v3018, %v3024
      %v3033 = vmul.f32 %v3019, %v3024
      %v3034 = vmul.f32 %v3020, %v3024
      %v3036 = vlaneseq
      %v3037 = vshrl.u32 %v3036, 7
      %v3038 = vsub.s32 0, %v3037
      %v3039 = vrot.slane %v2566, %v3038
      %v3041 = vmul.f32 %v3025, %v3039
      %v3042 = vmul.f32 %v3026, %v3039
      %v3043 = vmul.f32 %v3027, %v3039
      %v3044 = vmul.f32 %v3028, %v3039
      %v3045 = vmul.f32 %v3029, %v3039
      %v3046 = vmul.f32 %v3030, %v3039
      %v3047 = vmul.f32 %v3031, %v3039
      %v3048 = vmul.f32 %v3032, %v3039
      %v3049 = vmul.f32 %v3033, %v3039
      %v3050 = vmul.f32 %v3034, %v3039
      %v3052 = vlaneseq
      %v3053 = vshrl.u32 %v3052, 7
      %v3054 = vsub.s32 0, %v3053
      %v3055 = vrot.slane %v2567, %v3054
      %v3057 = vadd.f32 %v3041, %v3055
      %v3058 = vadd.f32 %v3042, %v3055
      %v3059 = vadd.f32 %v3043, %v3055
      %v3060 = vadd.f32 %v3044, %v3055
      %v3061 = vadd.f32 %v3045, %v3055
      %v3062 = vadd.f32 %v3046, %v3055
      %v3063 = vadd.f32 %v3047, %v3055
      %v3064 = vadd.f32 %v3048, %v3055
      %v3065 = vadd.f32 %v3049, %v3055
      %v3066 = vadd.f32 %v3050, %v3055
      %v3067 = vxor.u32 %v3057, 2147483648
      %v3068 = vxor.u32 %v3058, 2147483648
      %v3069 = vxor.u32 %v3059, 2147483648
      %v3070 = vxor.u32 %v3060, 2147483648
      %v3071 = vxor.u32 %v3061, 2147483648
      %v3072 = vxor.u32 %v3062, 2147483648
      %v3073 = vxor.u32 %v3063, 2147483648
      %v3074 = vxor.u32 %v3064, 2147483648
      %v3075 = vxor.u32 %v3065, 2147483648
      %v3076 = vxor.u32 %v3066, 2147483648
      %v3077 = vmul.f32 %v3067, 1.442695
      %v3078 = vpow.pop %v3077
      %v3079 = vmul.f32 %v3068, 1.442695
      %v3080 = vpow.pop %v3079
      %v3081 = vmul.f32 %v3069, 1.442695
      %v3082 = vpow.pop %v3081
      %v3083 = vmul.f32 %v3070, 1.442695
      %v3084 = vpow.pop %v3083
      %v3085 = vmul.f32 %v3071, 1.442695
      %v3086 = vpow.pop %v3085
      %v3087 = vmul.f32 %v3072, 1.442695
      %v3088 = vpow.pop %v3087
      %v3089 = vmul.f32 %v3073, 1.442695
      %v3090 = vpow.pop %v3089
      %v3091 = vmul.f32 %v3074, 1.442695
      %v3092 = vpow.pop %v3091
      %v3093 = vmul.f32 %v3075, 1.442695
      %v3094 = vpow.pop %v3093
      %v3095 = vmul.f32 %v3076, 1.442695
      %v3096 = vpow.pop %v3095
      %v3097 = vadd.f32 %v3078, 1.0
      %v3098 = vadd.f32 %v3080, 1.0
      %v3099 = vadd.f32 %v3082, 1.0
      %v3100 = vadd.f32 %v3084, 1.0
      %v3101 = vadd.f32 %v3086, 1.0
      %v3102 = vadd.f32 %v3088, 1.0
      %v3103 = vadd.f32 %v3090, 1.0
      %v3104 = vadd.f32 %v3092, 1.0
      %v3105 = vadd.f32 %v3094, 1.0
      %v3106 = vadd.f32 %v3096, 1.0
      %v3107 = vrcp.pop %v3097
      %v3108 = vmul.f32 1.0, %v3107
      %v3109 = vrcp.pop %v3098
      %v3110 = vmul.f32 1.0, %v3109
      %v3111 = vrcp.pop %v3099
      %v3112 = vmul.f32 1.0, %v3111
      %v3113 = vrcp.pop %v3100
      %v3114 = vmul.f32 1.0, %v3113
      %v3115 = vrcp.pop %v3101
      %v3116 = vmul.f32 1.0, %v3115
      %v3117 = vrcp.pop %v3102
      %v3118 = vmul.f32 1.0, %v3117
      %v3119 = vrcp.pop %v3103
      %v3120 = vmul.f32 1.0, %v3119
      %v3121 = vrcp.pop %v3104
      %v3122 = vmul.f32 1.0, %v3121
      %v3123 = vrcp.pop %v3105
      %v3124 = vmul.f32 1.0, %v3123
      %v3125 = vrcp.pop %v3106
      %v3126 = vmul.f32 1.0, %v3125
      %v3127 = vmul.f32 %v3057, %v3108
      %v3128 = vmul.f32 %v3058, %v3110
      %v3129 = vmul.f32 %v3059, %v3112
      %v3130 = vmul.f32 %v3060, %v3114
      %v3131 = vmul.f32 %v3061, %v3116
      %v3132 = vmul.f32 %v3062, %v3118
      %v3133 = vmul.f32 %v3063, %v3120
      %v3134 = vmul.f32 %v3064, %v3122
      %v3135 = vmul.f32 %v3065, %v3124
      %v3136 = vmul.f32 %v3066, %v3126
      %v3137 = vsel %vm2628, %v3127, 0.0
      %v3138 = vsel %vm2629, %v3128, 0.0
      %v3139 = vsel %vm2630, %v3129, 0.0
      %v3140 = vsel %vm2631, %v3130, 0.0
      %v3141 = vsel %vm2632, %v3131, 0.0
      %v3142 = vsel %vm2633, %v3132, 0.0
      %v3143 = vsel %vm2634, %v3133, 0.0
      %v3144 = vsel %vm2635, %v3134, 0.0
      %v3145 = vsel %vm2636, %v3135, 0.0
      %v3146 = vsel %vm2637, %v3136, 0.0
      %3147 = vst.msk [vmem:[#allocation3 + $0x10] sm:$0xff] %vm552, %v3137
      %3148 = vst.msk [vmem:[#allocation3 + $0x18] sm:$0xff] %vm552, %v3138
      %3149 = vst.msk [vmem:[#allocation3 + $0x20] sm:$0xff] %vm552, %v3139
      %3150 = vst.msk [vmem:[#allocation3 + $0x28] sm:$0xff] %vm552, %v3140
      %3151 = vst.msk [vmem:[#allocation3 + $0x30] sm:$0xff] %vm552, %v3141
      %3152 = vst.msk [vmem:[#allocation3 + $0x38] sm:$0xff] %vm552, %v3142
      %3153 = vst.msk [vmem:[#allocation3 + $0x40] sm:$0xff] %vm552, %v3143
      %3154 = vst.msk [vmem:[#allocation3 + $0x48] sm:$0xff] %vm552, %v3144
      %3155 = vst.msk [vmem:[#allocation3 + $0x50] sm:$0xff] %vm552, %v3145
      %3156 = vst.msk [vmem:[#allocation3 + $0x58] sm:$0xff] %vm552, %v3146
      %v3157 = vld [vmem:[#allocation3 + $0x5] sm:$0xff]
      %v3158 = vld [vmem:[#allocation3 + $0xd] sm:$0xff]
      %v3159 = vld [vmem:[#allocation3 + $0x15] sm:$0xff]
      %v3160 = vld [vmem:[#allocation3 + $0x1d] sm:$0xff]
      %v3161 = vld [vmem:[#allocation3 + $0x25] sm:$0xff]
      %v3162 = vld [vmem:[#allocation3 + $0x2d] sm:$0xff]
      %v3163 = vld [vmem:[#allocation3 + $0x35] sm:$0xff]
      %v3164 = vld [vmem:[#allocation3 + $0x3d] sm:$0xff]
      %v3165 = vld [vmem:[#allocation3 + $0x45] sm:$0xff]
      %v3166 = vld [vmem:[#allocation3 + $0x4d] sm:$0xff]
      %v3167 = vpack.c.bf16 %v3158, %v3157
      %v3168 = vpack.c.bf16 %v3160, %v3159
      %v3169 = vpack.c.bf16 %v3162, %v3161
      %v3170 = vpack.c.bf16 %v3164, %v3163
      %v3171 = vpack.c.bf16 %v3166, %v3165
      %v3172 = vld [vmem:[%s11] sm:$0xf]
      %v3173 = vld [vmem:[%s11 + $0x4] sm:$0xf]
      %v3174 = vld [vmem:[%s11 + $0x8] sm:$0xf]
      %v3175 = vld [vmem:[%s11 + $0xc] sm:$0xf]
      %v3176 = vld [vmem:[%s11 + $0x10] sm:$0xf]
      %v3177 = vld [vmem:[%s11 + $0x14] sm:$0xf]
      %v3178 = vld [vmem:[%s11 + $0x18] sm:$0xf]
      %v3179 = vld [vmem:[%s11 + $0x1c] sm:$0xf]
      %v3188 = vunpack.c.l.b16 %v3172
      %v3189 = vunpack.c.l.b16 %v3173
      %v3190 = vunpack.c.l.b16 %v3174
      %v3191 = vunpack.c.l.b16 %v3175
      %v3192 = vunpack.c.l.b16 %v3176
      %v3193 = vunpack.c.l.b16 %v3177
      %v3194 = vunpack.c.l.b16 %v3178
      %v3195 = vunpack.c.l.b16 %v3179
      %v3196 = vpack.c.b16 %v3189, %v3188
      %v3197 = vpack.c.b16 %v3191, %v3190
      %v3198 = vpack.c.b16 %v3193, %v3192
      %v3199 = vpack.c.b16 %v3195, %v3194
      %v3205 = vsel %vm552, %v3167, 0
      %v3208 = vsel %vm552, %v3168, 0
      %v3211 = vsel %vm552, %v3169, 0
      %v3214 = vsel %vm552, %v3170, 0
      %v3217 = vsel %vm552, %v3171, 0
      %3219 = vmatprep.subr.bf16.mxu0 0
      %3220 = vmatpush1.bf16.msra.mxu0 %v3196
      %3221 = vmatprep.subr.bf16.mxu0 0
      %3222 = vmatpush1.bf16.msra.mxu0 %v3197
      %3223 = vmatprep.subr.bf16.mxu0 0
      %3224 = vmatpush1.bf16.msra.mxu0 %v3198
      %3225 = vmatprep.subr.bf16.mxu0 0
      %3226 = vmatpush1.bf16.msra.mxu0 %v3199
      %3227 = vmatprep.subr.bf16.mxu0 0
      %3228 = vmatpush1.bf16.msra.mxu0 0
      %3229 = vmatprep.subr.bf16.mxu0 0
      %3230 = vmatpush1.bf16.msra.mxu0 0
      %3231 = vmatprep.subr.bf16.mxu0 0
      %3232 = vmatpush1.bf16.msra.mxu0 0
      %3233 = vmatprep.subr.bf16.mxu0 0
      %3234 = vmatpush1.bf16.msra.mxu0 0
      %3235 = vmatprep.subr.bf16.mxu0 0
      %3236 = vmatpush1.bf16.msra.mxu0 0
      %3237 = vmatprep.subr.bf16.mxu0 0
      %3238 = vmatpush1.bf16.msra.mxu0 0
      %3239 = vmatprep.subr.bf16.mxu0 0
      %3240 = vmatpush1.bf16.msra.mxu0 0
      %3241 = vmatprep.subr.bf16.mxu0 0
      %3242 = vmatpush1.bf16.msra.mxu0 0
      %3243 = vmatprep.subr.bf16.mxu0 0
      %3244 = vmatpush1.bf16.msra.mxu0 0
      %3245 = vmatprep.subr.bf16.mxu0 0
      %3246 = vmatpush1.bf16.msra.mxu0 0
      %3247 = vmatprep.subr.bf16.mxu0 0
      %3248 = vmatpush1.bf16.msra.mxu0 0
      %3249 = vmatprep.subr.bf16.mxu0 0
      %3250 = vmatpush1.bf16.msra.mxu0 0
      %3251 = vmatprep.mubr.bf16.mxu0 0
      %3252 = vmatmul.mubr.bf16.gmra.mrb[0].mxu0 %v3205
      %v3253 = vpop.f32.mrb[0].mxu0
      %v3254 = vadd.f32 0.0, %v3253
      %v3255 = vpop.f32.mrb[0].mxu0
      %v3256 = vpop.f32.mrb[0].mxu0
      %v3257 = vadd.f32 0.0, %v3256
      %v3258 = vpop.f32.mrb[0].mxu0
      %3259 = vmatprep.mubr.bf16.mxu0 0
      %3260 = vmatmul.mubr.bf16.gmra.mrb[0].mxu0 %v3208
      %v3261 = vpop.f32.mrb[0].mxu0
      %v3262 = vadd.f32 0.0, %v3261
      %v3263 = vpop.f32.mrb[0].mxu0
      %v3264 = vpop.f32.mrb[0].mxu0
      %v3265 = vadd.f32 0.0, %v3264
      %v3266 = vpop.f32.mrb[0].mxu0
      %3267 = vmatprep.mubr.bf16.mxu0 0
      %3268 = vmatmul.mubr.bf16.gmra.mrb[0].mxu0 %v3211
      %v3269 = vpop.f32.mrb[0].mxu0
      %v3270 = vadd.f32 0.0, %v3269
      %v3271 = vpop.f32.mrb[0].mxu0
      %v3272 = vpop.f32.mrb[0].mxu0
      %v3273 = vadd.f32 0.0, %v3272
      %v3274 = vpop.f32.mrb[0].mxu0
      %3275 = vmatprep.mubr.bf16.mxu0 0
      %3276 = vmatmul.mubr.bf16.gmra.mrb[0].mxu0 %v3214
      %v3277 = vpop.f32.mrb[0].mxu0
      %v3278 = vadd.f32 0.0, %v3277
      %v3279 = vpop.f32.mrb[0].mxu0
      %v3280 = vpop.f32.mrb[0].mxu0
      %v3281 = vadd.f32 0.0, %v3280
      %v3282 = vpop.f32.mrb[0].mxu0
      %3283 = vmatprep.mubr.bf16.mxu0 0
      %3284 = vmatmul.mubr.bf16.gmra.mrb[0].mxu0 %v3217
      %v3285 = vpop.f32.mrb[0].mxu0
      %v3286 = vadd.f32 0.0, %v3285
      %v3287 = vpop.f32.mrb[0].mxu0
      %v3288 = vpop.f32.mrb[0].mxu0
      %v3289 = vadd.f32 0.0, %v3288
      %v3290 = vpop.f32.mrb[0].mxu0
      %3291 = vdwg.mxu0
      %v3292 = vadd.f32 %v1368, %v3254
      %v3293 = vadd.f32 %v1369, %v3257
      %v3294 = vadd.f32 %v1370, %v3262
      %v3295 = vadd.f32 %v1371, %v3265
      %v3296 = vadd.f32 %v1372, %v3270
      %v3297 = vadd.f32 %v1373, %v3273
      %v3298 = vadd.f32 %v1374, %v3278
      %v3299 = vadd.f32 %v1375, %v3281
      %v3300 = vadd.f32 %v1376, %v3286
      %v3301 = vadd.f32 %v1377, %v3289
      %v3302 = vld [vmem:[#allocation3 + $0x6] sm:$0xff]
      %v3303 = vld [vmem:[#allocation3 + $0xe] sm:$0xff]
      %v3304 = vld [vmem:[#allocation3 + $0x16] sm:$0xff]
      %v3305 = vld [vmem:[#allocation3 + $0x1e] sm:$0xff]
      %v3306 = vld [vmem:[#allocation3 + $0x26] sm:$0xff]
      %v3307 = vld [vmem:[#allocation3 + $0x2e] sm:$0xff]
      %v3308 = vld [vmem:[#allocation3 + $0x36] sm:$0xff]
      %v3309 = vld [vmem:[#allocation3 + $0x3e] sm:$0xff]
      %v3310 = vld [vmem:[#allocation3 + $0x46] sm:$0xff]
      %v3311 = vld [vmem:[#allocation3 + $0x4e] sm:$0xff]
      %v3312 = vpack.c.bf16 %v3303, %v3302
      %v3313 = vpack.c.bf16 %v3305, %v3304
      %v3314 = vpack.c.bf16 %v3307, %v3306
      %v3315 = vpack.c.bf16 %v3309, %v3308
      %v3316 = vpack.c.bf16 %v3311, %v3310
      %s3317 = scalar_lea.vmem %s11, 32
      %v3318 = vld [vmem:[%s3317] sm:$0xf]
      %v3319 = vld [vmem:[%s3317 + $0x4] sm:$0xf]
      %v3320 = vld [vmem:[%s3317 + $0x8] sm:$0xf]
      %v3321 = vld [vmem:[%s3317 + $0xc] sm:$0xf]
      %v3322 = vld [vmem:[%s3317 + $0x10] sm:$0xf]
      %v3323 = vld [vmem:[%s3317 + $0x14] sm:$0xf]
      %v3324 = vld [vmem:[%s3317 + $0x18] sm:$0xf]
      %v3325 = vld [vmem:[%s3317 + $0x1c] sm:$0xf]
      %v3334 = vunpack.c.l.b16 %v3318
      %v3335 = vunpack.c.l.b16 %v3319
      %v3336 = vunpack.c.l.b16 %v3320
      %v3337 = vunpack.c.l.b16 %v3321
      %v3338 = vunpack.c.l.b16 %v3322
      %v3339 = vunpack.c.l.b16 %v3323
      %v3340 = vunpack.c.l.b16 %v3324
      %v3341 = vunpack.c.l.b16 %v3325
      %v3342 = vpack.c.b16 %v3335, %v3334
      %v3343 = vpack.c.b16 %v3337, %v3336
      %v3344 = vpack.c.b16 %v3339, %v3338
      %v3345 = vpack.c.b16 %v3341, %v3340
      %v3351 = vsel %vm552, %v3312, 0
      %v3354 = vsel %vm552, %v3313, 0
      %v3357 = vsel %vm552, %v3314, 0
      %v3360 = vsel %vm552, %v3315, 0
      %v3363 = vsel %vm552, %v3316, 0
      %3365 = vmatprep.subr.bf16.mxu0 0
      %3366 = vmatpush1.bf16.msra.mxu0 %v3342
      %3367 = vmatprep.subr.bf16.mxu0 0
      %3368 = vmatpush1.bf16.msra.mxu0 %v3343
      %3369 = vmatprep.subr.bf16.mxu0 0
      %3370 = vmatpush1.bf16.msra.mxu0 %v3344
      %3371 = vmatprep.subr.bf16.mxu0 0
      %3372 = vmatpush1.bf16.msra.mxu0 %v3345
      %3373 = vmatprep.subr.bf16.mxu0 0
      %3374 = vmatpush1.bf16.msra.mxu0 0
      %3375 = vmatprep.subr.bf16.mxu0 0
      %3376 = vmatpush1.bf16.msra.mxu0 0
      %3377 = vmatprep.subr.bf16.mxu0 0
      %3378 = vmatpush1.bf16.msra.mxu0 0
      %3379 = vmatprep.subr.bf16.mxu0 0
      %3380 = vmatpush1.bf16.msra.mxu0 0
      %3381 = vmatprep.subr.bf16.mxu0 0
      %3382 = vmatpush1.bf16.msra.mxu0 0
      %3383 = vmatprep.subr.bf16.mxu0 0
      %3384 = vmatpush1.bf16.msra.mxu0 0
      %3385 = vmatprep.subr.bf16.mxu0 0
      %3386 = vmatpush1.bf16.msra.mxu0 0
      %3387 = vmatprep.subr.bf16.mxu0 0
      %3388 = vmatpush1.bf16.msra.mxu0 0
      %3389 = vmatprep.subr.bf16.mxu0 0
      %3390 = vmatpush1.bf16.msra.mxu0 0
      %3391 = vmatprep.subr.bf16.mxu0 0
      %3392 = vmatpush1.bf16.msra.mxu0 0
      %3393 = vmatprep.subr.bf16.mxu0 0
      %3394 = vmatpush1.bf16.msra.mxu0 0
      %3395 = vmatprep.subr.bf16.mxu0 0
      %3396 = vmatpush1.bf16.msra.mxu0 0
      %3397 = vmatprep.mubr.bf16.mxu0 0
      %3398 = vmatmul.mubr.bf16.gmra.mrb[0].mxu0 %v3351
      %v3399 = vpop.f32.mrb[0].mxu0
      %v3400 = vadd.f32 0.0, %v3399
      %v3401 = vpop.f32.mrb[0].mxu0
      %v3402 = vpop.f32.mrb[0].mxu0
      %v3403 = vadd.f32 0.0, %v3402
      %v3404 = vpop.f32.mrb[0].mxu0
      %3405 = vmatprep.mubr.bf16.mxu0 0
      %3406 = vmatmul.mubr.bf16.gmra.mrb[0].mxu0 %v3354
      %v3407 = vpop.f32.mrb[0].mxu0
      %v3408 = vadd.f32 0.0, %v3407
      %v3409 = vpop.f32.mrb[0].mxu0
      %v3410 = vpop.f32.mrb[0].mxu0
      %v3411 = vadd.f32 0.0, %v3410
      %v3412 = vpop.f32.mrb[0].mxu0
      %3413 = vmatprep.mubr.bf16.mxu0 0
      %3414 = vmatmul.mubr.bf16.gmra.mrb[0].mxu0 %v3357
      %v3415 = vpop.f32.mrb[0].mxu0
      %v3416 = vadd.f32 0.0, %v3415
      %v3417 = vpop.f32.mrb[0].mxu0
      %v3418 = vpop.f32.mrb[0].mxu0
      %v3419 = vadd.f32 0.0, %v3418
      %v3420 = vpop.f32.mrb[0].mxu0
      %3421 = vmatprep.mubr.bf16.mxu0 0
      %3422 = vmatmul.mubr.bf16.gmra.mrb[0].mxu0 %v3360
      %v3423 = vpop.f32.mrb[0].mxu0
      %v3424 = vadd.f32 0.0, %v3423
      %v3425 = vpop.f32.mrb[0].mxu0
      %v3426 = vpop.f32.mrb[0].mxu0
      %v3427 = vadd.f32 0.0, %v3426
      %v3428 = vpop.f32.mrb[0].mxu0
      %3429 = vmatprep.mubr.bf16.mxu0 0
      %3430 = vmatmul.mubr.bf16.gmra.mrb[0].mxu0 %v3363
      %v3431 = vpop.f32.mrb[0].mxu0
      %v3432 = vadd.f32 0.0, %v3431
      %v3433 = vpop.f32.mrb[0].mxu0
      %v3434 = vpop.f32.mrb[0].mxu0
      %v3435 = vadd.f32 0.0, %v3434
      %v3436 = vpop.f32.mrb[0].mxu0
      %3437 = vdwg.mxu0
      %v3438 = vadd.f32 %v3292, %v3400
      %v3439 = vadd.f32 %v3293, %v3403
      %v3440 = vadd.f32 %v3294, %v3408
      %v3441 = vadd.f32 %v3295, %v3411
      %v3442 = vadd.f32 %v3296, %v3416
      %v3443 = vadd.f32 %v3297, %v3419
      %v3444 = vadd.f32 %v3298, %v3424
      %v3445 = vadd.f32 %v3299, %v3427
      %v3446 = vadd.f32 %v3300, %v3432
      %v3447 = vadd.f32 %v3301, %v3435
      %v3448 = vld [vmem:[#allocation3 + $0x7] sm:$0xff]
      %v3449 = vld [vmem:[#allocation3 + $0xf] sm:$0xff]
      %v3450 = vld [vmem:[#allocation3 + $0x17] sm:$0xff]
      %v3451 = vld [vmem:[#allocation3 + $0x1f] sm:$0xff]
      %v3452 = vld [vmem:[#allocation3 + $0x27] sm:$0xff]
      %v3453 = vld [vmem:[#allocation3 + $0x2f] sm:$0xff]
      %v3454 = vld [vmem:[#allocation3 + $0x37] sm:$0xff]
      %v3455 = vld [vmem:[#allocation3 + $0x3f] sm:$0xff]
      %v3456 = vld [vmem:[#allocation3 + $0x47] sm:$0xff]
      %v3457 = vld [vmem:[#allocation3 + $0x4f] sm:$0xff]
      %v3458 = vpack.c.bf16 %v3449, %v3448
      %v3459 = vpack.c.bf16 %v3451, %v3450
      %v3460 = vpack.c.bf16 %v3453, %v3452
      %v3461 = vpack.c.bf16 %v3455, %v3454
      %v3462 = vpack.c.bf16 %v3457, %v3456
      %s3463 = scalar_lea.vmem %s11, 64
      %v3464 = vld [vmem:[%s3463] sm:$0xf]
      %v3465 = vld [vmem:[%s3463 + $0x4] sm:$0xf]
      %v3466 = vld [vmem:[%s3463 + $0x8] sm:$0xf]
      %v3467 = vld [vmem:[%s3463 + $0xc] sm:$0xf]
      %v3468 = vld [vmem:[%s3463 + $0x10] sm:$0xf]
      %v3469 = vld [vmem:[%s3463 + $0x14] sm:$0xf]
      %v3470 = vld [vmem:[%s3463 + $0x18] sm:$0xf]
      %v3471 = vld [vmem:[%s3463 + $0x1c] sm:$0xf]
      %v3480 = vunpack.c.l.b16 %v3464
      %v3481 = vunpack.c.l.b16 %v3465
      %v3482 = vunpack.c.l.b16 %v3466
      %v3483 = vunpack.c.l.b16 %v3467
      %v3484 = vunpack.c.l.b16 %v3468
      %v3485 = vunpack.c.l.b16 %v3469
      %v3486 = vunpack.c.l.b16 %v3470
      %v3487 = vunpack.c.l.b16 %v3471
      %v3488 = vpack.c.b16 %v3481, %v3480
      %v3489 = vpack.c.b16 %v3483, %v3482
      %v3490 = vpack.c.b16 %v3485, %v3484
      %v3491 = vpack.c.b16 %v3487, %v3486
      %v3497 = vsel %vm552, %v3458, 0
      %v3500 = vsel %vm552, %v3459, 0
      %v3503 = vsel %vm552, %v3460, 0
      %v3506 = vsel %vm552, %v3461, 0
      %v3509 = vsel %vm552, %v3462, 0
      %3511 = vmatprep.subr.bf16.mxu0 0
      %3512 = vmatpush1.bf16.msra.mxu0 %v3488
      %3513 = vmatprep.subr.bf16.mxu0 0
      %3514 = vmatpush1.bf16.msra.mxu0 %v3489
      %3515 = vmatprep.subr.bf16.mxu0 0
      %3516 = vmatpush1.bf16.msra.mxu0 %v3490
      %3517 = vmatprep.subr.bf16.mxu0 0
      %3518 = vmatpush1.bf16.msra.mxu0 %v3491
      %3519 = vmatprep.subr.bf16.mxu0 0
      %3520 = vmatpush1.bf16.msra.mxu0 0
      %3521 = vmatprep.subr.bf16.mxu0 0
      %3522 = vmatpush1.bf16.msra.mxu0 0
      %3523 = vmatprep.subr.bf16.mxu0 0
      %3524 = vmatpush1.bf16.msra.mxu0 0
      %3525 = vmatprep.subr.bf16.mxu0 0
      %3526 = vmatpush1.bf16.msra.mxu0 0
      %3527 = vmatprep.subr.bf16.mxu0 0
      %3528 = vmatpush1.bf16.msra.mxu0 0
      %3529 = vmatprep.subr.bf16.mxu0 0
      %3530 = vmatpush1.bf16.msra.mxu0 0
      %3531 = vmatprep.subr.bf16.mxu0 0
      %3532 = vmatpush1.bf16.msra.mxu0 0
      %3533 = vmatprep.subr.bf16.mxu0 0
      %3534 = vmatpush1.bf16.msra.mxu0 0
      %3535 = vmatprep.subr.bf16.mxu0 0
      %3536 = vmatpush1.bf16.msra.mxu0 0
      %3537 = vmatprep.subr.bf16.mxu0 0
      %3538 = vmatpush1.bf16.msra.mxu0 0
      %3539 = vmatprep.subr.bf16.mxu0 0
      %3540 = vmatpush1.bf16.msra.mxu0 0
      %3541 = vmatprep.subr.bf16.mxu0 0
      %3542 = vmatpush1.bf16.msra.mxu0 0
      %3543 = vmatprep.mubr.bf16.mxu0 0
      %3544 = vmatmul.mubr.bf16.gmra.mrb[0].mxu0 %v3497
      %v3545 = vpop.f32.mrb[0].mxu0
      %v3546 = vadd.f32 0.0, %v3545
      %v3547 = vpop.f32.mrb[0].mxu0
      %v3548 = vpop.f32.mrb[0].mxu0
      %v3549 = vadd.f32 0.0, %v3548
      %v3550 = vpop.f32.mrb[0].mxu0
      %3551 = vmatprep.mubr.bf16.mxu0 0
      %3552 = vmatmul.mubr.bf16.gmra.mrb[0].mxu0 %v3500
      %v3553 = vpop.f32.mrb[0].mxu0
      %v3554 = vadd.f32 0.0, %v3553
      %v3555 = vpop.f32.mrb[0].mxu0
      %v3556 = vpop.f32.mrb[0].mxu0
      %v3557 = vadd.f32 0.0, %v3556
      %v3558 = vpop.f32.mrb[0].mxu0
      %3559 = vmatprep.mubr.bf16.mxu0 0
      %3560 = vmatmul.mubr.bf16.gmra.mrb[0].mxu0 %v3503
      %v3561 = vpop.f32.mrb[0].mxu0
      %v3562 = vadd.f32 0.0, %v3561
      %v3563 = vpop.f32.mrb[0].mxu0
      %v3564 = vpop.f32.mrb[0].mxu0
      %v3565 = vadd.f32 0.0, %v3564
      %v3566 = vpop.f32.mrb[0].mxu0
      %3567 = vmatprep.mubr.bf16.mxu0 0
      %3568 = vmatmul.mubr.bf16.gmra.mrb[0].mxu0 %v3506
      %v3569 = vpop.f32.mrb[0].mxu0
      %v3570 = vadd.f32 0.0, %v3569
      %v3571 = vpop.f32.mrb[0].mxu0
      %v3572 = vpop.f32.mrb[0].mxu0
      %v3573 = vadd.f32 0.0, %v3572
      %v3574 = vpop.f32.mrb[0].mxu0
      %3575 = vmatprep.mubr.bf16.mxu0 0
      %3576 = vmatmul.mubr.bf16.gmra.mrb[0].mxu0 %v3509
      %v3577 = vpop.f32.mrb[0].mxu0
      %v3578 = vadd.f32 0.0, %v3577
      %v3579 = vpop.f32.mrb[0].mxu0
      %v3580 = vpop.f32.mrb[0].mxu0
      %v3581 = vadd.f32 0.0, %v3580
      %v3582 = vpop.f32.mrb[0].mxu0
      %3583 = vdwg.mxu0
      %v3584 = vadd.f32 %v3438, %v3546
      %v3585 = vadd.f32 %v3439, %v3549
      %v3586 = vadd.f32 %v3440, %v3554
      %v3587 = vadd.f32 %v3441, %v3557
      %v3588 = vadd.f32 %v3442, %v3562
      %v3589 = vadd.f32 %v3443, %v3565
      %v3590 = vadd.f32 %v3444, %v3570
      %v3591 = vadd.f32 %v3445, %v3573
      %v3592 = vadd.f32 %v3446, %v3578
      %v3593 = vadd.f32 %v3447, %v3581
      %v3594 = vld [vmem:[#allocation3 + $0xf] sm:$0xff]
      %v3595 = vld [vmem:[#allocation3 + $0x17] sm:$0xff]
      %v3596 = vld [vmem:[#allocation3 + $0x1f] sm:$0xff]
      %v3597 = vld [vmem:[#allocation3 + $0x27] sm:$0xff]
      %v3598 = vld [vmem:[#allocation3 + $0x2f] sm:$0xff]
      %v3599 = vld [vmem:[#allocation3 + $0x37] sm:$0xff]
      %v3600 = vld [vmem:[#allocation3 + $0x3f] sm:$0xff]
      %v3601 = vld [vmem:[#allocation3 + $0x47] sm:$0xff]
      %v3602 = vld [vmem:[#allocation3 + $0x4f] sm:$0xff]
      %v3603 = vld [vmem:[#allocation3 + $0x57] sm:$0xff]
      %v3604 = vpack.c.bf16 %v3595, %v3594
      %v3605 = vpack.c.bf16 %v3597, %v3596
      %v3606 = vpack.c.bf16 %v3599, %v3598
      %v3607 = vpack.c.bf16 %v3601, %v3600
      %v3608 = vpack.c.bf16 %v3603, %v3602
      %s3609 = scalar_lea.vmem %s11, 96
      %v3610 = vld [vmem:[%s3609] sm:$0xf]
      %v3611 = vld [vmem:[%s3609 + $0x4] sm:$0xf]
      %v3612 = vld [vmem:[%s3609 + $0x8] sm:$0xf]
      %v3613 = vld [vmem:[%s3609 + $0xc] sm:$0xf]
      %v3614 = vld [vmem:[%s3609 + $0x10] sm:$0xf]
      %v3615 = vld [vmem:[%s3609 + $0x14] sm:$0xf]
      %v3616 = vld [vmem:[%s3609 + $0x18] sm:$0xf]
      %v3617 = vld [vmem:[%s3609 + $0x1c] sm:$0xf]
      %v3626 = vunpack.c.l.b16 %v3610
      %v3627 = vunpack.c.l.b16 %v3611
      %v3628 = vunpack.c.l.b16 %v3612
      %v3629 = vunpack.c.l.b16 %v3613
      %v3630 = vunpack.c.l.b16 %v3614
      %v3631 = vunpack.c.l.b16 %v3615
      %v3632 = vunpack.c.l.b16 %v3616
      %v3633 = vunpack.c.l.b16 %v3617
      %v3634 = vpack.c.b16 %v3627, %v3626
      %v3635 = vpack.c.b16 %v3629, %v3628
      %v3636 = vpack.c.b16 %v3631, %v3630
      %v3637 = vpack.c.b16 %v3633, %v3632
      %v3643 = vsel %vm552, %v3604, 0
      %v3646 = vsel %vm552, %v3605, 0
      %v3649 = vsel %vm552, %v3606, 0
      %v3652 = vsel %vm552, %v3607, 0
      %v3655 = vsel %vm552, %v3608, 0
      %3657 = vmatprep.subr.bf16.mxu0 0
      %3658 = vmatpush1.bf16.msra.mxu0 %v3634
      %3659 = vmatprep.subr.bf16.mxu0 0
      %3660 = vmatpush1.bf16.msra.mxu0 %v3635
      %3661 = vmatprep.subr.bf16.mxu0 0
      %3662 = vmatpush1.bf16.msra.mxu0 %v3636
      %3663 = vmatprep.subr.bf16.mxu0 0
      %3664 = vmatpush1.bf16.msra.mxu0 %v3637
      %3665 = vmatprep.subr.bf16.mxu0 0
      %3666 = vmatpush1.bf16.msra.mxu0 0
      %3667 = vmatprep.subr.bf16.mxu0 0
      %3668 = vmatpush1.bf16.msra.mxu0 0
      %3669 = vmatprep.subr.bf16.mxu0 0
      %3670 = vmatpush1.bf16.msra.mxu0 0
      %3671 = vmatprep.subr.bf16.mxu0 0
      %3672 = vmatpush1.bf16.msra.mxu0 0
      %3673 = vmatprep.subr.bf16.mxu0 0
      %3674 = vmatpush1.bf16.msra.mxu0 0
      %3675 = vmatprep.subr.bf16.mxu0 0
      %3676 = vmatpush1.bf16.msra.mxu0 0
      %3677 = vmatprep.subr.bf16.mxu0 0
      %3678 = vmatpush1.bf16.msra.mxu0 0
      %3679 = vmatprep.subr.bf16.mxu0 0
      %3680 = vmatpush1.bf16.msra.mxu0 0
      %3681 = vmatprep.subr.bf16.mxu0 0
      %3682 = vmatpush1.bf16.msra.mxu0 0
      %3683 = vmatprep.subr.bf16.mxu0 0
      %3684 = vmatpush1.bf16.msra.mxu0 0
      %3685 = vmatprep.subr.bf16.mxu0 0
      %3686 = vmatpush1.bf16.msra.mxu0 0
      %3687 = vmatprep.subr.bf16.mxu0 0
      %3688 = vmatpush1.bf16.msra.mxu0 0
      %3689 = vmatprep.mubr.bf16.mxu0 0
      %3690 = vmatmul.mubr.bf16.gmra.mrb[0].mxu0 %v3643
      %v3691 = vpop.f32.mrb[0].mxu0
      %v3692 = vadd.f32 0.0, %v3691
      %v3693 = vpop.f32.mrb[0].mxu0
      %v3694 = vpop.f32.mrb[0].mxu0
      %v3695 = vadd.f32 0.0, %v3694
      %v3696 = vpop.f32.mrb[0].mxu0
      %3697 = vmatprep.mubr.bf16.mxu0 0
      %3698 = vmatmul.mubr.bf16.gmra.mrb[0].mxu0 %v3646
      %v3699 = vpop.f32.mrb[0].mxu0
      %v3700 = vadd.f32 0.0, %v3699
      %v3701 = vpop.f32.mrb[0].mxu0
      %v3702 = vpop.f32.mrb[0].mxu0
      %v3703 = vadd.f32 0.0, %v3702
      %v3704 = vpop.f32.mrb[0].mxu0
      %3705 = vmatprep.mubr.bf16.mxu0 0
      %3706 = vmatmul.mubr.bf16.gmra.mrb[0].mxu0 %v3649
      %v3707 = vpop.f32.mrb[0].mxu0
      %v3708 = vadd.f32 0.0, %v3707
      %v3709 = vpop.f32.mrb[0].mxu0
      %v3710 = vpop.f32.mrb[0].mxu0
      %v3711 = vadd.f32 0.0, %v3710
      %v3712 = vpop.f32.mrb[0].mxu0
      %3713 = vmatprep.mubr.bf16.mxu0 0
      %3714 = vmatmul.mubr.bf16.gmra.mrb[0].mxu0 %v3652
      %v3715 = vpop.f32.mrb[0].mxu0
      %v3716 = vadd.f32 0.0, %v3715
      %v3717 = vpop.f32.mrb[0].mxu0
      %v3718 = vpop.f32.mrb[0].mxu0
      %v3719 = vadd.f32 0.0, %v3718
      %v3720 = vpop.f32.mrb[0].mxu0
      %3721 = vmatprep.mubr.bf16.mxu0 0
      %3722 = vmatmul.mubr.bf16.gmra.mrb[0].mxu0 %v3655
      %v3723 = vpop.f32.mrb[0].mxu0
      %v3724 = vadd.f32 0.0, %v3723
      %v3725 = vpop.f32.mrb[0].mxu0
      %v3726 = vpop.f32.mrb[0].mxu0
      %v3727 = vadd.f32 0.0, %v3726
      %v3728 = vpop.f32.mrb[0].mxu0
      %3729 = vdwg.mxu0
      %v3730 = vadd.f32 %v3584, %v3692
      %v3731 = vadd.f32 %v3585, %v3695
      %v3732 = vadd.f32 %v3586, %v3700
      %v3733 = vadd.f32 %v3587, %v3703
      %v3734 = vadd.f32 %v3588, %v3708
      %v3735 = vadd.f32 %v3589, %v3711
      %v3736 = vadd.f32 %v3590, %v3716
      %v3737 = vadd.f32 %v3591, %v3719
      %v3738 = vadd.f32 %v3592, %v3724
      %v3739 = vadd.f32 %v3593, %v3727
      %v3740 = vld [vmem:[#allocation3 + $0x10] sm:$0xff]
      %v3741 = vld [vmem:[#allocation3 + $0x18] sm:$0xff]
      %v3742 = vld [vmem:[#allocation3 + $0x20] sm:$0xff]
      %v3743 = vld [vmem:[#allocation3 + $0x28] sm:$0xff]
      %v3744 = vld [vmem:[#allocation3 + $0x30] sm:$0xff]
      %v3745 = vld [vmem:[#allocation3 + $0x38] sm:$0xff]
      %v3746 = vld [vmem:[#allocation3 + $0x40] sm:$0xff]
      %v3747 = vld [vmem:[#allocation3 + $0x48] sm:$0xff]
      %v3748 = vld [vmem:[#allocation3 + $0x50] sm:$0xff]
      %v3749 = vld [vmem:[#allocation3 + $0x58] sm:$0xff]
      %v3750 = vpack.c.bf16 %v3741, %v3740
      %v3751 = vpack.c.bf16 %v3743, %v3742
      %v3752 = vpack.c.bf16 %v3745, %v3744
      %v3753 = vpack.c.bf16 %v3747, %v3746
      %v3754 = vpack.c.bf16 %v3749, %v3748
      %s3755 = scalar_lea.vmem %s11, 128
      %v3756 = vld [vmem:[%s3755] sm:$0xf]
      %v3757 = vld [vmem:[%s3755 + $0x4] sm:$0xf]
      %v3758 = vld [vmem:[%s3755 + $0x8] sm:$0xf]
      %v3759 = vld [vmem:[%s3755 + $0xc] sm:$0xf]
      %v3760 = vld [vmem:[%s3755 + $0x10] sm:$0xf]
      %v3761 = vld [vmem:[%s3755 + $0x14] sm:$0xf]
      %v3762 = vld [vmem:[%s3755 + $0x18] sm:$0xf]
      %v3763 = vld [vmem:[%s3755 + $0x1c] sm:$0xf]
      %v3772 = vunpack.c.l.b16 %v3756
      %v3773 = vunpack.c.l.b16 %v3757
      %v3774 = vunpack.c.l.b16 %v3758
      %v3775 = vunpack.c.l.b16 %v3759
      %v3776 = vunpack.c.l.b16 %v3760
      %v3777 = vunpack.c.l.b16 %v3761
      %v3778 = vunpack.c.l.b16 %v3762
      %v3779 = vunpack.c.l.b16 %v3763
      %v3780 = vpack.c.b16 %v3773, %v3772
      %v3781 = vpack.c.b16 %v3775, %v3774
      %v3782 = vpack.c.b16 %v3777, %v3776
      %v3783 = vpack.c.b16 %v3779, %v3778
      %v3789 = vsel %vm552, %v3750, 0
      %v3792 = vsel %vm552, %v3751, 0
      %v3795 = vsel %vm552, %v3752, 0
      %v3798 = vsel %vm552, %v3753, 0
      %v3801 = vsel %vm552, %v3754, 0
      %3803 = vmatprep.subr.bf16.mxu0 0
      %3804 = vmatpush1.bf16.msra.mxu0 %v3780
      %3805 = vmatprep.subr.bf16.mxu0 0
      %3806 = vmatpush1.bf16.msra.mxu0 %v3781
      %3807 = vmatprep.subr.bf16.mxu0 0
      %3808 = vmatpush1.bf16.msra.mxu0 %v3782
      %3809 = vmatprep.subr.bf16.mxu0 0
      %3810 = vmatpush1.bf16.msra.mxu0 %v3783
      %3811 = vmatprep.subr.bf16.mxu0 0
      %3812 = vmatpush1.bf16.msra.mxu0 0
      %3813 = vmatprep.subr.bf16.mxu0 0
      %3814 = vmatpush1.bf16.msra.mxu0 0
      %3815 = vmatprep.subr.bf16.mxu0 0
      %3816 = vmatpush1.bf16.msra.mxu0 0
      %3817 = vmatprep.subr.bf16.mxu0 0
      %3818 = vmatpush1.bf16.msra.mxu0 0
      %3819 = vmatprep.subr.bf16.mxu0 0
      %3820 = vmatpush1.bf16.msra.mxu0 0
      %3821 = vmatprep.subr.bf16.mxu0 0
      %3822 = vmatpush1.bf16.msra.mxu0 0
      %3823 = vmatprep.subr.bf16.mxu0 0
      %3824 = vmatpush1.bf16.msra.mxu0 0
      %3825 = vmatprep.subr.bf16.mxu0 0
      %3826 = vmatpush1.bf16.msra.mxu0 0
      %3827 = vmatprep.subr.bf16.mxu0 0
      %3828 = vmatpush1.bf16.msra.mxu0 0
      %3829 = vmatprep.subr.bf16.mxu0 0
      %3830 = vmatpush1.bf16.msra.mxu0 0
      %3831 = vmatprep.subr.bf16.mxu0 0
      %3832 = vmatpush1.bf16.msra.mxu0 0
      %3833 = vmatprep.subr.bf16.mxu0 0
      %3834 = vmatpush1.bf16.msra.mxu0 0
      %3835 = vmatprep.mubr.bf16.mxu0 0
      %3836 = vmatmul.mubr.bf16.gmra.mrb[0].mxu0 %v3789
      %v3837 = vpop.f32.mrb[0].mxu0
      %v3838 = vadd.f32 0.0, %v3837
      %v3839 = vpop.f32.mrb[0].mxu0
      %v3840 = vpop.f32.mrb[0].mxu0
      %v3841 = vadd.f32 0.0, %v3840
      %v3842 = vpop.f32.mrb[0].mxu0
      %3843 = vmatprep.mubr.bf16.mxu0 0
      %3844 = vmatmul.mubr.bf16.gmra.mrb[0].mxu0 %v3792
      %v3845 = vpop.f32.mrb[0].mxu0
      %v3846 = vadd.f32 0.0, %v3845
      %v3847 = vpop.f32.mrb[0].mxu0
      %v3848 = vpop.f32.mrb[0].mxu0
      %v3849 = vadd.f32 0.0, %v3848
      %v3850 = vpop.f32.mrb[0].mxu0
      %3851 = vmatprep.mubr.bf16.mxu0 0
      %3852 = vmatmul.mubr.bf16.gmra.mrb[0].mxu0 %v3795
      %v3853 = vpop.f32.mrb[0].mxu0
      %v3854 = vadd.f32 0.0, %v3853
      %v3855 = vpop.f32.mrb[0].mxu0
      %v3856 = vpop.f32.mrb[0].mxu0
      %v3857 = vadd.f32 0.0, %v3856
      %v3858 = vpop.f32.mrb[0].mxu0
      %3859 = vmatprep.mubr.bf16.mxu0 0
      %3860 = vmatmul.mubr.bf16.gmra.mrb[0].mxu0 %v3798
      %v3861 = vpop.f32.mrb[0].mxu0
      %v3862 = vadd.f32 0.0, %v3861
      %v3863 = vpop.f32.mrb[0].mxu0
      %v3864 = vpop.f32.mrb[0].mxu0
      %v3865 = vadd.f32 0.0, %v3864
      %v3866 = vpop.f32.mrb[0].mxu0
      %3867 = vmatprep.mubr.bf16.mxu0 0
      %3868 = vmatmul.mubr.bf16.gmra.mrb[0].mxu0 %v3801
      %v3869 = vpop.f32.mrb[0].mxu0
      %v3870 = vadd.f32 0.0, %v3869
      %v3871 = vpop.f32.mrb[0].mxu0
      %v3872 = vpop.f32.mrb[0].mxu0
      %v3873 = vadd.f32 0.0, %v3872
      %v3874 = vpop.f32.mrb[0].mxu0
      %3875 = vdwg.mxu0
      %v3876 = vadd.f32 %v3730, %v3838
      %v3877 = vadd.f32 %v3731, %v3841
      %v3878 = vadd.f32 %v3732, %v3846
      %v3879 = vadd.f32 %v3733, %v3849
      %v3880 = vadd.f32 %v3734, %v3854
      %v3881 = vadd.f32 %v3735, %v3857
      %v3882 = vadd.f32 %v3736, %v3862
      %v3883 = vadd.f32 %v3737, %v3865
      %v3884 = vadd.f32 %v3738, %v3870
      %v3885 = vadd.f32 %v3739, %v3873
      %v3886 = vld [vmem:[#allocation3 + $0x11] sm:$0xff]
      %v3887 = vld [vmem:[#allocation3 + $0x19] sm:$0xff]
      %v3888 = vld [vmem:[#allocation3 + $0x21] sm:$0xff]
      %v3889 = vld [vmem:[#allocation3 + $0x29] sm:$0xff]
      %v3890 = vld [vmem:[#allocation3 + $0x31] sm:$0xff]
      %v3891 = vld [vmem:[#allocation3 + $0x39] sm:$0xff]
      %v3892 = vld [vmem:[#allocation3 + $0x41] sm:$0xff]
      %v3893 = vld [vmem:[#allocation3 + $0x49] sm:$0xff]
      %v3894 = vld [vmem:[#allocation3 + $0x51] sm:$0xff]
      %v3895 = vld [vmem:[#allocation3 + $0x59] sm:$0xff]
      %v3896 = vpack.c.bf16 %v3887, %v3886
      %v3897 = vpack.c.bf16 %v3889, %v3888
      %v3898 = vpack.c.bf16 %v3891, %v3890
      %v3899 = vpack.c.bf16 %v3893, %v3892
      %v3900 = vpack.c.bf16 %v3895, %v3894
      %s3901 = scalar_lea.vmem %s11, 160
      %v3902 = vld [vmem:[%s3901] sm:$0xf]
      %v3903 = vld [vmem:[%s3901 + $0x4] sm:$0xf]
      %v3904 = vld [vmem:[%s3901 + $0x8] sm:$0xf]
      %v3905 = vld [vmem:[%s3901 + $0xc] sm:$0xf]
      %v3906 = vld [vmem:[%s3901 + $0x10] sm:$0xf]
      %v3907 = vld [vmem:[%s3901 + $0x14] sm:$0xf]
      %v3908 = vld [vmem:[%s3901 + $0x18] sm:$0xf]
      %v3909 = vld [vmem:[%s3901 + $0x1c] sm:$0xf]
      %v3918 = vunpack.c.l.b16 %v3902
      %v3919 = vunpack.c.l.b16 %v3903
      %v3920 = vunpack.c.l.b16 %v3904
      %v3921 = vunpack.c.l.b16 %v3905
      %v3922 = vunpack.c.l.b16 %v3906
      %v3923 = vunpack.c.l.b16 %v3907
      %v3924 = vunpack.c.l.b16 %v3908
      %v3925 = vunpack.c.l.b16 %v3909
      %v3926 = vpack.c.b16 %v3919, %v3918
      %v3927 = vpack.c.b16 %v3921, %v3920
      %v3928 = vpack.c.b16 %v3923, %v3922
      %v3929 = vpack.c.b16 %v3925, %v3924
      %v3935 = vsel %vm552, %v3896, 0
      %v3938 = vsel %vm552, %v3897, 0
      %v3941 = vsel %vm552, %v3898, 0
      %v3944 = vsel %vm552, %v3899, 0
      %v3947 = vsel %vm552, %v3900, 0
      %3949 = vmatprep.subr.bf16.mxu0 0
      %3950 = vmatpush1.bf16.msra.mxu0 %v3926
      %3951 = vmatprep.subr.bf16.mxu0 0
      %3952 = vmatpush1.bf16.msra.mxu0 %v3927
      %3953 = vmatprep.subr.bf16.mxu0 0
      %3954 = vmatpush1.bf16.msra.mxu0 %v3928
      %3955 = vmatprep.subr.bf16.mxu0 0
      %3956 = vmatpush1.bf16.msra.mxu0 %v3929
      %3957 = vmatprep.subr.bf16.mxu0 0
      %3958 = vmatpush1.bf16.msra.mxu0 0
      %3959 = vmatprep.subr.bf16.mxu0 0
      %3960 = vmatpush1.bf16.msra.mxu0 0
      %3961 = vmatprep.subr.bf16.mxu0 0
      %3962 = vmatpush1.bf16.msra.mxu0 0
      %3963 = vmatprep.subr.bf16.mxu0 0
      %3964 = vmatpush1.bf16.msra.mxu0 0
      %3965 = vmatprep.subr.bf16.mxu0 0
      %3966 = vmatpush1.bf16.msra.mxu0 0
      %3967 = vmatprep.subr.bf16.mxu0 0
      %3968 = vmatpush1.bf16.msra.mxu0 0
      %3969 = vmatprep.subr.bf16.mxu0 0
      %3970 = vmatpush1.bf16.msra.mxu0 0
      %3971 = vmatprep.subr.bf16.mxu0 0
      %3972 = vmatpush1.bf16.msra.mxu0 0
      %3973 = vmatprep.subr.bf16.mxu0 0
      %3974 = vmatpush1.bf16.msra.mxu0 0
      %3975 = vmatprep.subr.bf16.mxu0 0
      %3976 = vmatpush1.bf16.msra.mxu0 0
      %3977 = vmatprep.subr.bf16.mxu0 0
      %3978 = vmatpush1.bf16.msra.mxu0 0
      %3979 = vmatprep.subr.bf16.mxu0 0
      %3980 = vmatpush1.bf16.msra.mxu0 0
      %3981 = vmatprep.mubr.bf16.mxu0 0
      %3982 = vmatmul.mubr.bf16.gmra.mrb[0].mxu0 %v3935
      %v3983 = vpop.f32.mrb[0].mxu0
      %v3984 = vadd.f32 0.0, %v3983
      %v3985 = vpop.f32.mrb[0].mxu0
      %v3986 = vpop.f32.mrb[0].mxu0
      %v3987 = vadd.f32 0.0, %v3986
      %v3988 = vpop.f32.mrb[0].mxu0
      %3989 = vmatprep.mubr.bf16.mxu0 0
      %3990 = vmatmul.mubr.bf16.gmra.mrb[0].mxu0 %v3938
      %v3991 = vpop.f32.mrb[0].mxu0
      %v3992 = vadd.f32 0.0, %v3991
      %v3993 = vpop.f32.mrb[0].mxu0
      %v3994 = vpop.f32.mrb[0].mxu0
      %v3995 = vadd.f32 0.0, %v3994
      %v3996 = vpop.f32.mrb[0].mxu0
      %3997 = vmatprep.mubr.bf16.mxu0 0
      %3998 = vmatmul.mubr.bf16.gmra.mrb[0].mxu0 %v3941
      %v3999 = vpop.f32.mrb[0].mxu0
      %v4000 = vadd.f32 0.0, %v3999
      %v4001 = vpop.f32.mrb[0].mxu0
      %v4002 = vpop.f32.mrb[0].mxu0
      %v4003 = vadd.f32 0.0, %v4002
      %v4004 = vpop.f32.mrb[0].mxu0
      %4005 = vmatprep.mubr.bf16.mxu0 0
      %4006 = vmatmul.mubr.bf16.gmra.mrb[0].mxu0 %v3944
      %v4007 = vpop.f32.mrb[0].mxu0
      %v4008 = vadd.f32 0.0, %v4007
      %v4009 = vpop.f32.mrb[0].mxu0
      %v4010 = vpop.f32.mrb[0].mxu0
      %v4011 = vadd.f32 0.0, %v4010
      %v4012 = vpop.f32.mrb[0].mxu0
      %4013 = vmatprep.mubr.bf16.mxu0 0
      %4014 = vmatmul.mubr.bf16.gmra.mrb[0].mxu0 %v3947
      %v4015 = vpop.f32.mrb[0].mxu0
      %v4016 = vadd.f32 0.0, %v4015
      %v4017 = vpop.f32.mrb[0].mxu0
      %v4018 = vpop.f32.mrb[0].mxu0
      %v4019 = vadd.f32 0.0, %v4018
      %v4020 = vpop.f32.mrb[0].mxu0
      %4021 = vdwg.mxu0
      %v4022 = vadd.f32 %v3876, %v3984
      %v4023 = vadd.f32 %v3877, %v3987
      %v4024 = vadd.f32 %v3878, %v3992
      %v4025 = vadd.f32 %v3879, %v3995
      %v4026 = vadd.f32 %v3880, %v4000
      %v4027 = vadd.f32 %v3881, %v4003
      %v4028 = vadd.f32 %v3882, %v4008
      %v4029 = vadd.f32 %v3883, %v4011
      %v4030 = vadd.f32 %v3884, %v4016
      %v4031 = vadd.f32 %v3885, %v4019
      %v4032 = vld [vmem:[#allocation3 + $0x19] sm:$0xff]
      %v4033 = vld [vmem:[#allocation3 + $0x21] sm:$0xff]
      %v4034 = vld [vmem:[#allocation3 + $0x29] sm:$0xff]
      %v4035 = vld [vmem:[#allocation3 + $0x31] sm:$0xff]
      %v4036 = vld [vmem:[#allocation3 + $0x39] sm:$0xff]
      %v4037 = vld [vmem:[#allocation3 + $0x41] sm:$0xff]
      %v4038 = vld [vmem:[#allocation3 + $0x49] sm:$0xff]
      %v4039 = vld [vmem:[#allocation3 + $0x51] sm:$0xff]
      %v4040 = vld [vmem:[#allocation3 + $0x59] sm:$0xff]
      %v4041 = vld [vmem:[#allocation3 + $0x61] sm:$0xff]
      %v4042 = vpack.c.bf16 %v4033, %v4032
      %v4043 = vpack.c.bf16 %v4035, %v4034
      %v4044 = vpack.c.bf16 %v4037, %v4036
      %v4045 = vpack.c.bf16 %v4039, %v4038
      %v4046 = vpack.c.bf16 %v4041, %v4040
      %s4047 = scalar_lea.vmem %s11, 192
      %v4048 = vld [vmem:[%s4047] sm:$0xf]
      %v4049 = vld [vmem:[%s4047 + $0x4] sm:$0xf]
      %v4050 = vld [vmem:[%s4047 + $0x8] sm:$0xf]
      %v4051 = vld [vmem:[%s4047 + $0xc] sm:$0xf]
      %v4052 = vld [vmem:[%s4047 + $0x10] sm:$0xf]
      %v4053 = vld [vmem:[%s4047 + $0x14] sm:$0xf]
      %v4054 = vld [vmem:[%s4047 + $0x18] sm:$0xf]
      %v4055 = vld [vmem:[%s4047 + $0x1c] sm:$0xf]
      %v4064 = vunpack.c.l.b16 %v4048
      %v4065 = vunpack.c.l.b16 %v4049
      %v4066 = vunpack.c.l.b16 %v4050
      %v4067 = vunpack.c.l.b16 %v4051
      %v4068 = vunpack.c.l.b16 %v4052
      %v4069 = vunpack.c.l.b16 %v4053
      %v4070 = vunpack.c.l.b16 %v4054
      %v4071 = vunpack.c.l.b16 %v4055
      %v4072 = vpack.c.b16 %v4065, %v4064
      %v4073 = vpack.c.b16 %v4067, %v4066
      %v4074 = vpack.c.b16 %v4069, %v4068
      %v4075 = vpack.c.b16 %v4071, %v4070
      %v4081 = vsel %vm552, %v4042, 0
      %v4084 = vsel %vm552, %v4043, 0
      %v4087 = vsel %vm552, %v4044, 0
      %v4090 = vsel %vm552, %v4045, 0
      %v4093 = vsel %vm552, %v4046, 0
      %4095 = vmatprep.subr.bf16.mxu0 0
      %4096 = vmatpush1.bf16.msra.mxu0 %v4072
      %4097 = vmatprep.subr.bf16.mxu0 0
      %4098 = vmatpush1.bf16.msra.mxu0 %v4073
      %4099 = vmatprep.subr.bf16.mxu0 0
      %4100 = vmatpush1.bf16.msra.mxu0 %v4074
      %4101 = vmatprep.subr.bf16.mxu0 0
      %4102 = vmatpush1.bf16.msra.mxu0 %v4075
      %4103 = vmatprep.subr.bf16.mxu0 0
      %4104 = vmatpush1.bf16.msra.mxu0 0
      %4105 = vmatprep.subr.bf16.mxu0 0
      %4106 = vmatpush1.bf16.msra.mxu0 0
      %4107 = vmatprep.subr.bf16.mxu0 0
      %4108 = vmatpush1.bf16.msra.mxu0 0
      %4109 = vmatprep.subr.bf16.mxu0 0
      %4110 = vmatpush1.bf16.msra.mxu0 0
      %4111 = vmatprep.subr.bf16.mxu0 0
      %4112 = vmatpush1.bf16.msra.mxu0 0
      %4113 = vmatprep.subr.bf16.mxu0 0
      %4114 = vmatpush1.bf16.msra.mxu0 0
      %4115 = vmatprep.subr.bf16.mxu0 0
      %4116 = vmatpush1.bf16.msra.mxu0 0
      %4117 = vmatprep.subr.bf16.mxu0 0
      %4118 = vmatpush1.bf16.msra.mxu0 0
      %4119 = vmatprep.subr.bf16.mxu0 0
      %4120 = vmatpush1.bf16.msra.mxu0 0
      %4121 = vmatprep.subr.bf16.mxu0 0
      %4122 = vmatpush1.bf16.msra.mxu0 0
      %4123 = vmatprep.subr.bf16.mxu0 0
      %4124 = vmatpush1.bf16.msra.mxu0 0
      %4125 = vmatprep.subr.bf16.mxu0 0
      %4126 = vmatpush1.bf16.msra.mxu0 0
      %4127 = vmatprep.mubr.bf16.mxu0 0
      %4128 = vmatmul.mubr.bf16.gmra.mrb[0].mxu0 %v4081
      %v4129 = vpop.f32.mrb[0].mxu0
      %v4130 = vadd.f32 0.0, %v4129
      %v4131 = vpop.f32.mrb[0].mxu0
      %v4132 = vpop.f32.mrb[0].mxu0
      %v4133 = vadd.f32 0.0, %v4132
      %v4134 = vpop.f32.mrb[0].mxu0
      %4135 = vmatprep.mubr.bf16.mxu0 0
      %4136 = vmatmul.mubr.bf16.gmra.mrb[0].mxu0 %v4084
      %v4137 = vpop.f32.mrb[0].mxu0
      %v4138 = vadd.f32 0.0, %v4137
      %v4139 = vpop.f32.mrb[0].mxu0
      %v4140 = vpop.f32.mrb[0].mxu0
      %v4141 = vadd.f32 0.0, %v4140
      %v4142 = vpop.f32.mrb[0].mxu0
      %4143 = vmatprep.mubr.bf16.mxu0 0
      %4144 = vmatmul.mubr.bf16.gmra.mrb[0].mxu0 %v4087
      %v4145 = vpop.f32.mrb[0].mxu0
      %v4146 = vadd.f32 0.0, %v4145
      %v4147 = vpop.f32.mrb[0].mxu0
      %v4148 = vpop.f32.mrb[0].mxu0
      %v4149 = vadd.f32 0.0, %v4148
      %v4150 = vpop.f32.mrb[0].mxu0
      %4151 = vmatprep.mubr.bf16.mxu0 0
      %4152 = vmatmul.mubr.bf16.gmra.mrb[0].mxu0 %v4090
      %v4153 = vpop.f32.mrb[0].mxu0
      %v4154 = vadd.f32 0.0, %v4153
      %v4155 = vpop.f32.mrb[0].mxu0
      %v4156 = vpop.f32.mrb[0].mxu0
      %v4157 = vadd.f32 0.0, %v4156
      %v4158 = vpop.f32.mrb[0].mxu0
      %4159 = vmatprep.mubr.bf16.mxu0 0
      %4160 = vmatmul.mubr.bf16.gmra.mrb[0].mxu0 %v4093
      %v4161 = vpop.f32.mrb[0].mxu0
      %v4162 = vadd.f32 0.0, %v4161
      %v4163 = vpop.f32.mrb[0].mxu0
      %v4164 = vpop.f32.mrb[0].mxu0
      %v4165 = vadd.f32 0.0, %v4164
      %v4166 = vpop.f32.mrb[0].mxu0
      %4167 = vdwg.mxu0
      %v4168 = vadd.f32 %v4022, %v4130
      %v4169 = vadd.f32 %v4023, %v4133
      %v4170 = vadd.f32 %v4024, %v4138
      %v4171 = vadd.f32 %v4025, %v4141
      %v4172 = vadd.f32 %v4026, %v4146
      %v4173 = vadd.f32 %v4027, %v4149
      %v4174 = vadd.f32 %v4028, %v4154
      %v4175 = vadd.f32 %v4029, %v4157
      %v4176 = vadd.f32 %v4030, %v4162
      %v4177 = vadd.f32 %v4031, %v4165
      %v4178 = vld [vmem:[#allocation3 + $0x1a] sm:$0xff]
      %v4179 = vld [vmem:[#allocation3 + $0x22] sm:$0xff]
      %v4180 = vld [vmem:[#allocation3 + $0x2a] sm:$0xff]
      %v4181 = vld [vmem:[#allocation3 + $0x32] sm:$0xff]
      %v4182 = vld [vmem:[#allocation3 + $0x3a] sm:$0xff]
      %v4183 = vld [vmem:[#allocation3 + $0x42] sm:$0xff]
      %v4184 = vld [vmem:[#allocation3 + $0x4a] sm:$0xff]
      %v4185 = vld [vmem:[#allocation3 + $0x52] sm:$0xff]
      %v4186 = vld [vmem:[#allocation3 + $0x5a] sm:$0xff]
      %v4187 = vld [vmem:[#allocation3 + $0x62] sm:$0xff]
      %v4188 = vpack.c.bf16 %v4179, %v4178
      %v4189 = vpack.c.bf16 %v4181, %v4180
      %v4190 = vpack.c.bf16 %v4183, %v4182
      %v4191 = vpack.c.bf16 %v4185, %v4184
      %v4192 = vpack.c.bf16 %v4187, %v4186
      %s4193 = scalar_lea.vmem %s11, 224
      %v4194 = vld [vmem:[%s4193] sm:$0xf]
      %v4195 = vld [vmem:[%s4193 + $0x4] sm:$0xf]
      %v4196 = vld [vmem:[%s4193 + $0x8] sm:$0xf]
      %v4197 = vld [vmem:[%s4193 + $0xc] sm:$0xf]
      %v4198 = vld [vmem:[%s4193 + $0x10] sm:$0xf]
      %v4199 = vld [vmem:[%s4193 + $0x14] sm:$0xf]
      %v4200 = vld [vmem:[%s4193 + $0x18] sm:$0xf]
      %v4201 = vld [vmem:[%s4193 + $0x1c] sm:$0xf]
      %v4210 = vunpack.c.l.b16 %v4194
      %v4211 = vunpack.c.l.b16 %v4195
      %v4212 = vunpack.c.l.b16 %v4196
      %v4213 = vunpack.c.l.b16 %v4197
      %v4214 = vunpack.c.l.b16 %v4198
      %v4215 = vunpack.c.l.b16 %v4199
      %v4216 = vunpack.c.l.b16 %v4200
      %v4217 = vunpack.c.l.b16 %v4201
      %v4218 = vpack.c.b16 %v4211, %v4210
      %v4219 = vpack.c.b16 %v4213, %v4212
      %v4220 = vpack.c.b16 %v4215, %v4214
      %v4221 = vpack.c.b16 %v4217, %v4216
      %v4227 = vsel %vm552, %v4188, 0
      %v4230 = vsel %vm552, %v4189, 0
      %v4233 = vsel %vm552, %v4190, 0
      %v4236 = vsel %vm552, %v4191, 0
      %v4239 = vsel %vm552, %v4192, 0
      %4241 = vmatprep.subr.bf16.mxu0 0
      %4242 = vmatpush1.bf16.msra.mxu0 %v4218
      %4243 = vmatprep.subr.bf16.mxu0 0
      %4244 = vmatpush1.bf16.msra.mxu0 %v4219
      %4245 = vmatprep.subr.bf16.mxu0 0
      %4246 = vmatpush1.bf16.msra.mxu0 %v4220
      %4247 = vmatprep.subr.bf16.mxu0 0
      %4248 = vmatpush1.bf16.msra.mxu0 %v4221
      %4249 = vmatprep.subr.bf16.mxu0 0
      %4250 = vmatpush1.bf16.msra.mxu0 0
      %4251 = vmatprep.subr.bf16.mxu0 0
      %4252 = vmatpush1.bf16.msra.mxu0 0
      %4253 = vmatprep.subr.bf16.mxu0 0
      %4254 = vmatpush1.bf16.msra.mxu0 0
      %4255 = vmatprep.subr.bf16.mxu0 0
      %4256 = vmatpush1.bf16.msra.mxu0 0
      %4257 = vmatprep.subr.bf16.mxu0 0
      %4258 = vmatpush1.bf16.msra.mxu0 0
      %4259 = vmatprep.subr.bf16.mxu0 0
      %4260 = vmatpush1.bf16.msra.mxu0 0
      %4261 = vmatprep.subr.bf16.mxu0 0
      %4262 = vmatpush1.bf16.msra.mxu0 0
      %4263 = vmatprep.subr.bf16.mxu0 0
      %4264 = vmatpush1.bf16.msra.mxu0 0
      %4265 = vmatprep.subr.bf16.mxu0 0
      %4266 = vmatpush1.bf16.msra.mxu0 0
      %4267 = vmatprep.subr.bf16.mxu0 0
      %4268 = vmatpush1.bf16.msra.mxu0 0
      %4269 = vmatprep.subr.bf16.mxu0 0
      %4270 = vmatpush1.bf16.msra.mxu0 0
      %4271 = vmatprep.subr.bf16.mxu0 0
      %4272 = vmatpush1.bf16.msra.mxu0 0
      %4273 = vmatprep.mubr.bf16.mxu0 0
      %4274 = vmatmul.mubr.bf16.gmra.mrb[0].mxu0 %v4227
      %v4275 = vpop.f32.mrb[0].mxu0
      %v4276 = vadd.f32 0.0, %v4275
      %v4277 = vpop.f32.mrb[0].mxu0
      %v4278 = vpop.f32.mrb[0].mxu0
      %v4279 = vadd.f32 0.0, %v4278
      %v4280 = vpop.f32.mrb[0].mxu0
      %4281 = vmatprep.mubr.bf16.mxu0 0
      %4282 = vmatmul.mubr.bf16.gmra.mrb[0].mxu0 %v4230
      %v4283 = vpop.f32.mrb[0].mxu0
      %v4284 = vadd.f32 0.0, %v4283
      %v4285 = vpop.f32.mrb[0].mxu0
      %v4286 = vpop.f32.mrb[0].mxu0
      %v4287 = vadd.f32 0.0, %v4286
      %v4288 = vpop.f32.mrb[0].mxu0
      %4289 = vmatprep.mubr.bf16.mxu0 0
      %4290 = vmatmul.mubr.bf16.gmra.mrb[0].mxu0 %v4233
      %v4291 = vpop.f32.mrb[0].mxu0
      %v4292 = vadd.f32 0.0, %v4291
      %v4293 = vpop.f32.mrb[0].mxu0
      %v4294 = vpop.f32.mrb[0].mxu0
      %v4295 = vadd.f32 0.0, %v4294
      %v4296 = vpop.f32.mrb[0].mxu0
      %4297 = vmatprep.mubr.bf16.mxu0 0
      %4298 = vmatmul.mubr.bf16.gmra.mrb[0].mxu0 %v4236
      %v4299 = vpop.f32.mrb[0].mxu0
      %v4300 = vadd.f32 0.0, %v4299
      %v4301 = vpop.f32.mrb[0].mxu0
      %v4302 = vpop.f32.mrb[0].mxu0
      %v4303 = vadd.f32 0.0, %v4302
      %v4304 = vpop.f32.mrb[0].mxu0
      %4305 = vmatprep.mubr.bf16.mxu0 0
      %4306 = vmatmul.mubr.bf16.gmra.mrb[0].mxu0 %v4239
      %v4307 = vpop.f32.mrb[0].mxu0
      %v4308 = vadd.f32 0.0, %v4307
      %v4309 = vpop.f32.mrb[0].mxu0
      %v4310 = vpop.f32.mrb[0].mxu0
      %v4311 = vadd.f32 0.0, %v4310
      %v4312 = vpop.f32.mrb[0].mxu0
      %4313 = vdwg.mxu0
      %v4314 = vadd.f32 %v4168, %v4276
      %v4315 = vadd.f32 %v4169, %v4279
      %v4316 = vadd.f32 %v4170, %v4284
      %v4317 = vadd.f32 %v4171, %v4287
      %v4318 = vadd.f32 %v4172, %v4292
      %v4319 = vadd.f32 %v4173, %v4295
      %v4320 = vadd.f32 %v4174, %v4300
      %v4321 = vadd.f32 %v4175, %v4303
      %v4322 = vadd.f32 %v4176, %v4308
      %v4323 = vadd.f32 %v4177, %v4311
      %v4324 = vld [vmem:[#allocation3 + $0x1b] sm:$0xff]
      %v4325 = vld [vmem:[#allocation3 + $0x23] sm:$0xff]
      %v4326 = vld [vmem:[#allocation3 + $0x2b] sm:$0xff]
      %v4327 = vld [vmem:[#allocation3 + $0x33] sm:$0xff]
      %v4328 = vld [vmem:[#allocation3 + $0x3b] sm:$0xff]
      %v4329 = vld [vmem:[#allocation3 + $0x43] sm:$0xff]
      %v4330 = vld [vmem:[#allocation3 + $0x4b] sm:$0xff]
      %v4331 = vld [vmem:[#allocation3 + $0x53] sm:$0xff]
      %v4332 = vld [vmem:[#allocation3 + $0x5b] sm:$0xff]
      %v4333 = vld [vmem:[#allocation3 + $0x63] sm:$0xff]
      %v4334 = vpack.c.bf16 %v4325, %v4324
      %v4335 = vpack.c.bf16 %v4327, %v4326
      %v4336 = vpack.c.bf16 %v4329, %v4328
      %v4337 = vpack.c.bf16 %v4331, %v4330
      %v4338 = vpack.c.bf16 %v4333, %v4332
      %s4339 = scalar_lea.vmem %s11, 256
      %v4340 = vld [vmem:[%s4339] sm:$0xf]
      %v4341 = vld [vmem:[%s4339 + $0x4] sm:$0xf]
      %v4342 = vld [vmem:[%s4339 + $0x8] sm:$0xf]
      %v4343 = vld [vmem:[%s4339 + $0xc] sm:$0xf]
      %v4344 = vld [vmem:[%s4339 + $0x10] sm:$0xf]
      %v4345 = vld [vmem:[%s4339 + $0x14] sm:$0xf]
      %v4346 = vld [vmem:[%s4339 + $0x18] sm:$0xf]
      %v4347 = vld [vmem:[%s4339 + $0x1c] sm:$0xf]
      %v4356 = vunpack.c.l.b16 %v4340
      %v4357 = vunpack.c.l.b16 %v4341
      %v4358 = vunpack.c.l.b16 %v4342
      %v4359 = vunpack.c.l.b16 %v4343
      %v4360 = vunpack.c.l.b16 %v4344
      %v4361 = vunpack.c.l.b16 %v4345
      %v4362 = vunpack.c.l.b16 %v4346
      %v4363 = vunpack.c.l.b16 %v4347
      %v4364 = vpack.c.b16 %v4357, %v4356
      %v4365 = vpack.c.b16 %v4359, %v4358
      %v4366 = vpack.c.b16 %v4361, %v4360
      %v4367 = vpack.c.b16 %v4363, %v4362
      %v4373 = vsel %vm552, %v4334, 0
      %v4376 = vsel %vm552, %v4335, 0
      %v4379 = vsel %vm552, %v4336, 0
      %v4382 = vsel %vm552, %v4337, 0
      %v4385 = vsel %vm552, %v4338, 0
      %4387 = vmatprep.subr.bf16.mxu0 0
      %4388 = vmatpush1.bf16.msra.mxu0 %v4364
      %4389 = vmatprep.subr.bf16.mxu0 0
      %4390 = vmatpush1.bf16.msra.mxu0 %v4365
      %4391 = vmatprep.subr.bf16.mxu0 0
      %4392 = vmatpush1.bf16.msra.mxu0 %v4366
      %4393 = vmatprep.subr.bf16.mxu0 0
      %4394 = vmatpush1.bf16.msra.mxu0 %v4367
      %4395 = vmatprep.subr.bf16.mxu0 0
      %4396 = vmatpush1.bf16.msra.mxu0 0
      %4397 = vmatprep.subr.bf16.mxu0 0
      %4398 = vmatpush1.bf16.msra.mxu0 0
      %4399 = vmatprep.subr.bf16.mxu0 0
      %4400 = vmatpush1.bf16.msra.mxu0 0
      %4401 = vmatprep.subr.bf16.mxu0 0
      %4402 = vmatpush1.bf16.msra.mxu0 0
      %4403 = vmatprep.subr.bf16.mxu0 0
      %4404 = vmatpush1.bf16.msra.mxu0 0
      %4405 = vmatprep.subr.bf16.mxu0 0
      %4406 = vmatpush1.bf16.msra.mxu0 0
      %4407 = vmatprep.subr.bf16.mxu0 0
      %4408 = vmatpush1.bf16.msra.mxu0 0
      %4409 = vmatprep.subr.bf16.mxu0 0
      %4410 = vmatpush1.bf16.msra.mxu0 0
      %4411 = vmatprep.subr.bf16.mxu0 0
      %4412 = vmatpush1.bf16.msra.mxu0 0
      %4413 = vmatprep.subr.bf16.mxu0 0
      %4414 = vmatpush1.bf16.msra.mxu0 0
      %4415 = vmatprep.subr.bf16.mxu0 0
      %4416 = vmatpush1.bf16.msra.mxu0 0
      %4417 = vmatprep.subr.bf16.mxu0 0
      %4418 = vmatpush1.bf16.msra.mxu0 0
      %4419 = vmatprep.mubr.bf16.mxu0 0
      %4420 = vmatmul.mubr.bf16.gmra.mrb[0].mxu0 %v4373
      %v4421 = vpop.f32.mrb[0].mxu0
      %v4422 = vadd.f32 0.0, %v4421
      %v4423 = vpop.f32.mrb[0].mxu0
      %v4424 = vpop.f32.mrb[0].mxu0
      %v4425 = vadd.f32 0.0, %v4424
      %v4426 = vpop.f32.mrb[0].mxu0
      %4427 = vmatprep.mubr.bf16.mxu0 0
      %4428 = vmatmul.mubr.bf16.gmra.mrb[0].mxu0 %v4376
      %v4429 = vpop.f32.mrb[0].mxu0
      %v4430 = vadd.f32 0.0, %v4429
      %v4431 = vpop.f32.mrb[0].mxu0
      %v4432 = vpop.f32.mrb[0].mxu0
      %v4433 = vadd.f32 0.0, %v4432
      %v4434 = vpop.f32.mrb[0].mxu0
      %4435 = vmatprep.mubr.bf16.mxu0 0
      %4436 = vmatmul.mubr.bf16.gmra.mrb[0].mxu0 %v4379
      %v4437 = vpop.f32.mrb[0].mxu0
      %v4438 = vadd.f32 0.0, %v4437
      %v4439 = vpop.f32.mrb[0].mxu0
      %v4440 = vpop.f32.mrb[0].mxu0
      %v4441 = vadd.f32 0.0, %v4440
      %v4442 = vpop.f32.mrb[0].mxu0
      %4443 = vmatprep.mubr.bf16.mxu0 0
      %4444 = vmatmul.mubr.bf16.gmra.mrb[0].mxu0 %v4382
      %v4445 = vpop.f32.mrb[0].mxu0
      %v4446 = vadd.f32 0.0, %v4445
      %v4447 = vpop.f32.mrb[0].mxu0
      %v4448 = vpop.f32.mrb[0].mxu0
      %v4449 = vadd.f32 0.0, %v4448
      %v4450 = vpop.f32.mrb[0].mxu0
      %4451 = vmatprep.mubr.bf16.mxu0 0
      %4452 = vmatmul.mubr.bf16.gmra.mrb[0].mxu0 %v4385
      %v4453 = vpop.f32.mrb[0].mxu0
      %v4454 = vadd.f32 0.0, %v4453
      %v4455 = vpop.f32.mrb[0].mxu0
      %v4456 = vpop.f32.mrb[0].mxu0
      %v4457 = vadd.f32 0.0, %v4456
      %v4458 = vpop.f32.mrb[0].mxu0
      %4459 = vdwg.mxu0
      %v4460 = vadd.f32 %v4314, %v4422
      %v4461 = vadd.f32 %v4315, %v4425
      %v4462 = vadd.f32 %v4316, %v4430
      %v4463 = vadd.f32 %v4317, %v4433
      %v4464 = vadd.f32 %v4318, %v4438
      %v4465 = vadd.f32 %v4319, %v4441
      %v4466 = vadd.f32 %v4320, %v4446
      %v4467 = vadd.f32 %v4321, %v4449
      %v4468 = vadd.f32 %v4322, %v4454
      %v4469 = vadd.f32 %v4323, %v4457
      %4470 = vst.msk [vmem:[%s548] sm:$0xff] %vm552, %v4460
      %4471 = vst.msk [vmem:[%s548 + $0x8] sm:$0xff] %vm552, %v4461
      %4472 = vst.msk [vmem:[%s548 + $0x10] sm:$0xff] %vm552, %v4462
      %4473 = vst.msk [vmem:[%s548 + $0x18] sm:$0xff] %vm552, %v4463
      %4474 = vst.msk [vmem:[%s548 + $0x20] sm:$0xff] %vm552, %v4464
      %4475 = vst.msk [vmem:[%s548 + $0x28] sm:$0xff] %vm552, %v4465
      %4476 = vst.msk [vmem:[%s548 + $0x30] sm:$0xff] %vm552, %v4466
      %4477 = vst.msk [vmem:[%s548 + $0x38] sm:$0xff] %vm552, %v4467
      %4478 = vst.msk [vmem:[%s548 + $0x40] sm:$0xff] %vm552, %v4468
      %4479 = vst.msk [vmem:[%s548 + $0x48] sm:$0xff] %vm552, %v4469
      %p4480 = scmp.lt.s32.totalorder %s28, 1
      %s4481 = scalar_select %p4480, %s28, 1
      %s4482 = smul.addr %s4481, 10
      %s4483 = smul.addr %s4482, 8
      %s4484 = scalar_lea.vmem %s17, %s4483
      // Predicated region
      $region89: #{tpu_custom_call.1} parent=87 // pred_check
        %p4485 = pneg %p408
      $region90: #{tpu_custom_call.1} parent=87 // pred_check_branch
        %4487 = sbr.rel (%p4485) target = $region92
      $region91: #{tpu_custom_call.1} parent=87 // pred_region
        _
      $region92: #{tpu_custom_call.1} parent=87 // pred_fallthru
        _
    $region88: #{tpu_custom_call.1} parent=5 // pred_fallthru
      _
    %p4488 = scmp.le.s32.totalorder 2, %s23
    // Predicated region
    $region93: #{tpu_custom_call.1} parent=5 // pred_check
      %p4489 = pneg %p4488
    $region94: #{tpu_custom_call.1} parent=5 // pred_check_branch
      %4491 = sbr.rel (%p4489) target = $region96
    $region95: #{tpu_custom_call.1} parent=5 // pred_region
      %s4492 = ssub.s32 %s23, 2
      // Predicated region
      $region97: #{tpu_custom_call.1} parent=95 // pred_check
        %p4493 = pneg %p414
      $region98: #{tpu_custom_call.1} parent=95 // pred_check_branch
        %4495 = sbr.rel (%p4493) target = $region100
      $region99: #{tpu_custom_call.1} parent=95 // pred_region
        %p4496 = scmp.lt.s32.totalorder %s29, 1
        %s4497 = scalar_select %p4496, %s29, 1
        %s4498 = smul.addr %s4497, 10
        %s4499 = smul.addr %s4498, 8
        %s4500 = scalar_lea.vmem %s17, %s4499
      $region100: #{tpu_custom_call.1} parent=95 // pred_fallthru
        _
    $region96: #{tpu_custom_call.1} parent=5 // pred_fallthru
      _
  $region6: #{tpu_custom_call.1} parent=0 // loop_footer
    %s27 = sadd.s32 1, %s23
  $region7: #{tpu_custom_call.1} parent=0 // loop_footer_branch
    %22 = sbr.rel target = $region3
  $region8: #{tpu_custom_call.1} parent=0 // loop_exit
    _

</llo_original>
